<compile_context>
chip_gen: v5e
topology: v5e:2x2
jax: 0.10.0
libtpu: 0.0.40
codegen_flags: <defaults>
</compile_context>

<pallas_src>
import functools
import math

import jax
import jax.numpy as jnp
import numpy as np
from jax.experimental import pallas as pl
from jax.experimental.pallas import tpu as pltpu

LANE = 128
SUB = 16  # bf16 sublane tile

# (Cin, Cout) per layer — static configuration of the PyTorch module.
ENC_CFG = [(3, 12), (12, 24), (24, 48), (48, 96)]
DEC_CFG = [(96, 48), (48, 24), (24, 12), (12, 3)]


def _round_up(x, m):
    return (x + m - 1) // m * m


def _cdiv(a, b):
    return -(-a // b)


# ----------------------------------------------------------------------------
# Pallas kernel: out = act(sum_t p2d[rows + offs[t]] @ W_t + b), f32 accumulation
# ----------------------------------------------------------------------------
def _conv_taps_kernel(p_ref, w_ref, b_ref, o_ref, *, offs, act, single_tile):
    tm = o_ref.shape[0]
    base = 0 if single_tile else pl.program_id(0) * tm
    acc = None
    for t, off in enumerate(offs):
        start = off if single_tile else base + off          # static slice when grid=(1,)
        lhs = p_ref[pl.ds(start, tm), :]
        part = jnp.dot(lhs, w_ref[t], preferred_element_type=jnp.float32)
        acc = part if acc is None else acc + part
    acc = acc + b_ref[...]                                  # (1, Np) f32 broadcast
    if act == "relu":
        acc = jnp.maximum(acc, 0.0)
    elif act == "sigmoid":
        acc = jax.nn.sigmoid(acc)
    o_ref[...] = acc.astype(o_ref.dtype)


def fused_conv_taps(p2d, wstack, bias, offs, act, *, tm_max=512, out_dtype=jnp.bfloat16):
    """out[m, :] = act(sum_t p2d[m + offs[t], :] @ wstack[t] + bias).

    p2d:    (rows, K_tap) flattened activation; rows beyond the real data (up to
            max(offs) + tile padding) are zero-padded here.
    wstack: (T, K_tap, Np) bf16, Np a multiple of 128 (lane-dense output).
    bias:   (1, Np) f32.
    Returns (rows, Np) in out_dtype.
    """
    m, k = p2d.shape
    n_taps, kw_, npad = wstack.shape
    assert kw_ == k and npad % LANE == 0 and len(offs) == n_taps

    # M-tile policy: waste < one tile, tiles multiple of 16; split into >=2 tiles
    # (v7x megacore) only once per-tile work clearly exceeds per-step overhead.
    nt = _cdiv(m, tm_max)
    if m >= 2048:
        nt = max(nt, 2)
    tm = _round_up(_cdiv(m, nt), SUB)
    nt = _cdiv(m, tm)
    m_pad = nt * tm

    rows_in = _round_up(m_pad + max(offs), 8)
    p2d = p2d.astype(wstack.dtype)
    p2d = jnp.pad(p2d, ((0, rows_in - m), (0, 0)))

    out = pl.pallas_call(
        functools.partial(_conv_taps_kernel, offs=tuple(offs), act=act,
                          single_tile=(nt == 1)),
        out_shape=jax.ShapeDtypeStruct((m_pad, npad), out_dtype),
        grid=(nt,),
        in_specs=[
            pl.BlockSpec((rows_in, k), lambda i: (0, 0)),      # whole p2d VMEM-resident
            pl.BlockSpec(wstack.shape, lambda i: (0, 0, 0)),
            pl.BlockSpec((1, npad), lambda i: (0, 0)),
        ],
        out_specs=pl.BlockSpec((tm, npad), lambda i: (i, 0)),
        compiler_params=pltpu.CompilerParams(
            dimension_semantics=("parallel",),
        ),
    )(p2d, wstack, bias)
    return out[:m]


# ----------------------------------------------------------------------------
# Layers (NHWC bf16 activations)
# ----------------------------------------------------------------------------
def conv2d_s2(x, wstack, bias, cout, act):
    """Conv2d(k=4, s=2, p=1): space-to-depth in XLA, im2col+matmul fused in the kernel."""
    n, h, w, c = x.shape
    ho, wo = h // 2, w // 2
    hb, wb = ho + 1, wo + 1
    cpad = wstack.shape[1] // 4
    # spatial pad 1 + channel pad (so K_tap = 4*cpad is a multiple of 16) in one op
    xp = jnp.pad(x, ((0, 0), (1, 1), (1, 1), (0, cpad - c)))
    # p2d[(n, I, J), (rp, cp, ci)] = xpad[n, 2I+rp, 2J+cp, ci]  (stride-2 -> stride-1 grid)
    p2d = xp.reshape(n, hb, 2, wb, 2, cpad).transpose(0, 1, 3, 2, 4, 5)
    p2d = p2d.reshape(n * hb * wb, 4 * cpad)
    offs = (0, 1, wb, wb + 1)                       # taps (di, dj) in row-major order
    out = fused_conv_taps(p2d, wstack, bias, offs, act)
    return out.reshape(n, hb, wb, -1)[:, :ho, :wo, :cout]


def conv_transpose2d_s2(x, wstack, bias, cout, act):
    """ConvTranspose2d(k=4, s=2, p=1) via sub-pixel decomposition, fused kernel."""
    n, h, w, c = x.shape
    hp, wp = h + 2, w + 2
    g0, g1 = h + 1, w + 1
    cpad = wstack.shape[1]
    xp = jnp.pad(x, ((0, 0), (1, 1), (1, 1), (0, cpad - c)))
    p2d = xp.reshape(n * hp * wp, cpad)
    offs = (0, 1, wp, wp + 1)                       # taps (u, v) in row-major order
    out = fused_conv_taps(p2d, wstack, bias, offs, act)
    # out rows = (n, J, I) over the (hp, wp) grid; lanes = (p, q, co) with p=1-r, q=1-c,
    # so decoded is a plain pixel-shuffle followed by a [1:1+2h, 1:1+2w] crop.
    y = out.reshape(n, hp, wp, -1)[:, :g0, :g1, :4 * cout]
    y = y.reshape(n, g0, g1, 2, 2, cout).transpose(0, 1, 3, 2, 4, 5)
    y = y.reshape(n, 2 * g0, 2 * g1, cout)
    return y[:, 1:1 + 2 * h, 1:1 + 2 * w, :]


# ----------------------------------------------------------------------------
# Parameter init (PyTorch-style uniform) and prep into tap-stacked matmul form
# ----------------------------------------------------------------------------
def init_raw_params(key):
    keys = jax.random.split(key, 2 * (len(ENC_CFG) + len(DEC_CFG)))
    enc, dec = [], []
    i = 0
    for cin, cout in ENC_CFG:
        bound = 1.0 / math.sqrt(cin * 16)
        w = jax.random.uniform(keys[i], (cout, cin, 4, 4), jnp.float32, -bound, bound)
        b = jax.random.uniform(keys[i + 1], (cout,), jnp.float32, -bound, bound)
        enc.append((w, b))
        i += 2
    for cin, cout in DEC_CFG:
        bound = 1.0 / math.sqrt(cout * 16)  # PyTorch fan_in for ConvTranspose2d
        w = jax.random.uniform(keys[i], (cin, cout, 4, 4), jnp.float32, -bound, bound)
        b = jax.random.uniform(keys[i + 1], (cout,), jnp.float32, -bound, bound)
        dec.append((w, b))
        i += 2
    return enc, dec


def _prep_conv(w, b, dtype=jnp.bfloat16):
    """Conv2d (Cout, Cin, 4, 4) -> (4 taps, K_tap=4*Cin_pad, Np) bf16 + (1, Np) f32 bias.

    wstack[(di,dj), (rp,cp,ci), co] = w[co, ci, 2*di+rp, 2*dj+cp].
    """
    cout, cin, _, _ = w.shape
    cpad = _round_up(cin, 4)                        # K_tap = 4*cpad -> multiple of 16
    wp = jnp.pad(w, ((0, 0), (0, cpad - cin), (0, 0), (0, 0)))
    wr = wp.reshape(cout, cpad, 2, 2, 2, 2)         # (co, ci, di, rp, dj, cp)
    wstack = jnp.transpose(wr, (2, 4, 3, 5, 1, 0)).reshape(4, 4 * cpad, cout)
    npad = _round_up(cout, LANE)
    wstack = jnp.pad(wstack, ((0, 0), (0, 0), (0, npad - cout))).astype(dtype)
    bias = jnp.pad(b, (0, npad - cout)).reshape(1, npad).astype(jnp.float32)
    return wstack, bias


def _prep_convT(w, b, dtype=jnp.bfloat16):
    """ConvTranspose2d (Cin, Cout, 4, 4) -> (4 taps, K_tap=Cin_pad, Np>=4*Cout) + bias.

    Tap t=(u,v) over the 2x2 window on the padded input; columns ordered (p, q, co) with
    p = 1 - row_phase, q = 1 - col_phase (flipped so the interleave is a plain pixel-shuffle).
    wstack[(u,v), ci, (p,q,co)] = w[ci, co, 2-2u+p, 2-2v+q].
    """
    cin, cout, _, _ = w.shape
    cpad = _round_up(cin, SUB)
    wp = jnp.pad(w, ((0, cpad - cin), (0, 0), (0, 0), (0, 0)))
    wr = wp.reshape(cpad, cout, 2, 2, 2, 2)         # (ci, co, uu, p, vv, q); kh = 2*uu+p
    wf = wr[:, :, ::-1, :, ::-1, :]                 # u = 1 - uu, v = 1 - vv
    wstack = jnp.transpose(wf, (2, 4, 0, 3, 5, 1)).reshape(4, cpad, 4 * cout)
    nval = 4 * cout
    npad = _round_up(nval, LANE)
    wstack = jnp.pad(wstack, ((0, 0), (0, 0), (0, npad - nval))).astype(dtype)
    bias = jnp.pad(jnp.tile(b, 4), (0, npad - nval)).reshape(1, npad).astype(jnp.float32)
    return wstack, bias


def prepare_params(raw):
    enc_raw, dec_raw = raw
    return ([_prep_conv(w, b) for (w, b) in enc_raw],
            [_prep_convT(w, b) for (w, b) in dec_raw])


# ----------------------------------------------------------------------------
# Forward pass (matches Autoencoder.forward -> (encoded, decoded)), NCHW API
# ----------------------------------------------------------------------------
def autoencoder_forward(params, x_nchw):
    enc, dec = params
    h = jnp.transpose(x_nchw, (0, 2, 3, 1)).astype(jnp.bfloat16)  # NHWC bf16 internally
    for (_, cout), (wstack, bias) in zip(ENC_CFG, enc):
        h = conv2d_s2(h, wstack, bias, cout, "relu")
    encoded = h
    for i, ((_, cout), (wstack, bias)) in enumerate(zip(DEC_CFG, dec)):
        act = "sigmoid" if i == len(dec) - 1 else "relu"
        h = conv_transpose2d_s2(h, wstack, bias, cout, act)
    decoded = h
    encoded = jnp.transpose(encoded, (0, 3, 1, 2)).astype(jnp.float32)
    decoded = jnp.transpose(decoded, (0, 3, 1, 2)).astype(jnp.float32)
    return encoded, decoded


# ----------------------------------------------------------------------------
# Pure-XLA f32 reference (PyTorch semantics) for a loose-tolerance check
# ----------------------------------------------------------------------------
def _reference_forward(raw, x_nchw):
    enc_raw, dec_raw = raw
    dn = ("NHWC", "HWIO", "NHWC")
    h = jnp.transpose(x_nchw, (0, 2, 3, 1))
    for w, b in enc_raw:
        wh = jnp.transpose(w, (2, 3, 1, 0))
        h = jax.lax.conv_general_dilated(h, wh, (2, 2), [(1, 1), (1, 1)],
                                         dimension_numbers=dn) + b
        h = jax.nn.relu(h)
    encoded = h
    for i, (w, b) in enumerate(dec_raw):
        wh = jnp.transpose(w[:, :, ::-1, ::-1], (2, 3, 0, 1))
        h = jax.lax.conv_general_dilated(h, wh, (1, 1), [(2, 2), (2, 2)],
                                         lhs_dilation=(2, 2), dimension_numbers=dn) + b
        h = jax.nn.sigmoid(h) if i == len(dec_raw) - 1 else jax.nn.relu(h)
    decoded = h
    return (jnp.transpose(encoded, (0, 3, 1, 2)),
            jnp.transpose(decoded, (0, 3, 1, 2)))


if __name__ == "__main__":
    key = jax.random.PRNGKey(0)
    k_param, k_x = jax.random.split(key)
    raw = init_raw_params(k_param)
    params = prepare_params(raw)

    # Small NCHW input consistent with the module (3 input channels).
    x = jax.random.uniform(k_x, (2, 3, 16, 16), jnp.float32)

    fwd = jax.jit(autoencoder_forward)
    encoded, decoded = fwd(params, x)
    jax.block_until_ready((encoded, decoded))

    assert encoded.shape == (2, 96, 1, 1), encoded.shape
    assert decoded.shape == (2, 3, 16, 16), decoded.shape
    assert bool(jnp.all(decoded >= 0.0) & jnp.all(decoded <= 1.0))

    # Loose-tolerance check vs. f32 XLA reference (kernel path runs bf16 on the MXU).
    ref_enc, ref_dec = jax.jit(_reference_forward)(raw, x)
    np.testing.assert_allclose(np.asarray(encoded), np.asarray(ref_enc), atol=5e-2, rtol=0)
    np.testing.assert_allclose(np.asarray(decoded), np.asarray(ref_dec), atol=5e-2, rtol=0)

    print("KERNEL_OK")
</pallas_src>

<mosaic_0001>
module attributes {stable_mosaic.version = 11 : i64} {
  func.func @_conv_taps_kernel(%arg0: i32, %arg1: memref<192x16xbf16, #tpu.memory_space<vmem>>, %arg2: memref<4x16x128xbf16, #tpu.memory_space<vmem>>, %arg3: memref<1x128xf32, #tpu.memory_space<vmem>>, %arg4: memref<176x128xbf16, #tpu.memory_space<vmem>>) attributes {dimension_semantics = [#tpu.dimension_semantics<parallel>], iteration_bounds = array<i64: 1>, scalar_prefetch = 0 : i64, scratch_operands = 0 : i64, tpu.core_type = #tpu.core_type<tc>, window_params = [{pipeline_mode = #tpu.pipeline_mode<synchronous>, transform_indices = @transform_0, window_bounds = array<i64: 192, 16>}, {pipeline_mode = #tpu.pipeline_mode<synchronous>, transform_indices = @transform_1, window_bounds = array<i64: 4, 16, 128>}, {pipeline_mode = #tpu.pipeline_mode<synchronous>, transform_indices = @transform_2, window_bounds = array<i64: 1, 128>}, {transform_indices = @transform_3, window_bounds = array<i64: 176, 128>}]} {
    %c0 = arith.constant 0 : index
    %c0_0 = arith.constant 0 : index
    %0 = vector.load %arg1[%c0, %c0_0] : memref<192x16xbf16, #tpu.memory_space<vmem>>, vector<176x16xbf16>
    %c0_1 = arith.constant 0 : index
    %c0_2 = arith.constant 0 : index
    %c0_3 = arith.constant 0 : index
    %1 = vector.load %arg2[%c0_1, %c0_2, %c0_3] : memref<4x16x128xbf16, #tpu.memory_space<vmem>>, vector<1x16x128xbf16>
    %2 = vector.shape_cast %1 : vector<1x16x128xbf16> to vector<16x128xbf16>
    %cst = arith.constant dense<0.000000e+00> : vector<176x128xf32>
    %3 = tpu.matmul %0, %2, %cst {dimension_numbers = #tpu.dot_dimension_numbers<[1], [0], [0], [1], [0, 0, 1, 1], [], []>} : vector<176x16xbf16>, vector<16x128xbf16>, vector<176x128xf32> -> vector<176x128xf32>
    %c1 = arith.constant 1 : index
    %c0_4 = arith.constant 0 : index
    %4 = vector.load %arg1[%c1, %c0_4] : memref<192x16xbf16, #tpu.memory_space<vmem>>, vector<176x16xbf16>
    %c1_5 = arith.constant 1 : index
    %c0_6 = arith.constant 0 : index
    %c0_7 = arith.constant 0 : index
    %5 = vector.load %arg2[%c1_5, %c0_6, %c0_7] : memref<4x16x128xbf16, #tpu.memory_space<vmem>>, vector<1x16x128xbf16>
    %6 = vector.shape_cast %5 : vector<1x16x128xbf16> to vector<16x128xbf16>
    %cst_8 = arith.constant dense<0.000000e+00> : vector<176x128xf32>
    %7 = tpu.matmul %4, %6, %cst_8 {dimension_numbers = #tpu.dot_dimension_numbers<[1], [0], [0], [1], [0, 0, 1, 1], [], []>} : vector<176x16xbf16>, vector<16x128xbf16>, vector<176x128xf32> -> vector<176x128xf32>
    %8 = arith.addf %3, %7 : vector<176x128xf32>
    %c9 = arith.constant 9 : index
    %c0_9 = arith.constant 0 : index
    %9 = vector.load %arg1[%c9, %c0_9] : memref<192x16xbf16, #tpu.memory_space<vmem>>, vector<176x16xbf16>
    %c2 = arith.constant 2 : index
    %c0_10 = arith.constant 0 : index
    %c0_11 = arith.constant 0 : index
    %10 = vector.load %arg2[%c2, %c0_10, %c0_11] : memref<4x16x128xbf16, #tpu.memory_space<vmem>>, vector<1x16x128xbf16>
    %11 = vector.shape_cast %10 : vector<1x16x128xbf16> to vector<16x128xbf16>
    %cst_12 = arith.constant dense<0.000000e+00> : vector<176x128xf32>
    %12 = tpu.matmul %9, %11, %cst_12 {dimension_numbers = #tpu.dot_dimension_numbers<[1], [0], [0], [1], [0, 0, 1, 1], [], []>} : vector<176x16xbf16>, vector<16x128xbf16>, vector<176x128xf32> -> vector<176x128xf32>
    %13 = arith.addf %8, %12 : vector<176x128xf32>
    %c10 = arith.constant 10 : index
    %c0_13 = arith.constant 0 : index
    %14 = vector.load %arg1[%c10, %c0_13] : memref<192x16xbf16, #tpu.memory_space<vmem>>, vector<176x16xbf16>
    %c3 = arith.constant 3 : index
    %c0_14 = arith.constant 0 : index
    %c0_15 = arith.constant 0 : index
    %15 = vector.load %arg2[%c3, %c0_14, %c0_15] : memref<4x16x128xbf16, #tpu.memory_space<vmem>>, vector<1x16x128xbf16>
    %16 = vector.shape_cast %15 : vector<1x16x128xbf16> to vector<16x128xbf16>
    %cst_16 = arith.constant dense<0.000000e+00> : vector<176x128xf32>
    %17 = tpu.matmul %14, %16, %cst_16 {dimension_numbers = #tpu.dot_dimension_numbers<[1], [0], [0], [1], [0, 0, 1, 1], [], []>} : vector<176x16xbf16>, vector<16x128xbf16>, vector<176x128xf32> -> vector<176x128xf32>
    %18 = arith.addf %13, %17 : vector<176x128xf32>
    %c0_17 = arith.constant 0 : index
    %c0_18 = arith.constant 0 : index
    %19 = vector.load %arg3[%c0_17, %c0_18] : memref<1x128xf32, #tpu.memory_space<vmem>>, vector<1x128xf32>
    %20 = vector.broadcast %19 : vector<1x128xf32> to vector<176x128xf32>
    %21 = arith.addf %18, %20 : vector<176x128xf32>
    %cst_19 = arith.constant 0.000000e+00 : f32
    %22 = vector.broadcast %cst_19 : f32 to vector<176x128xf32>
    %23 = arith.maximumf %21, %22 : vector<176x128xf32>
    %24 = arith.truncf %23 : vector<176x128xf32> to vector<176x128xbf16>
    %c0_20 = arith.constant 0 : index
    %c0_21 = arith.constant 0 : index
    %25 = vector.load %arg4[%c0_20, %c0_21] : memref<176x128xbf16, #tpu.memory_space<vmem>>, vector<176x128xbf16>
    tpu.vector_store %arg4[%c0_20, %c0_21], %24 {strides = array<i32>} : memref<176x128xbf16, #tpu.memory_space<vmem>>, vector<176x128xbf16>,
    return
  }
  func.func @transform_0(%arg0: i32) -> (i32, i32) {
    %c0_i32 = arith.constant 0 : i32
    %c0_i32_0 = arith.constant 0 : i32
    %c0_i32_1 = arith.constant 0 : i32
    return %c0_i32, %c0_i32_0 : i32, i32
  }
  func.func @transform_1(%arg0: i32) -> (i32, i32, i32) {
    %c0_i32 = arith.constant 0 : i32
    %c0_i32_0 = arith.constant 0 : i32
    %c0_i32_1 = arith.constant 0 : i32
    %c0_i32_2 = arith.constant 0 : i32
    return %c0_i32, %c0_i32_0, %c0_i32_1 : i32, i32, i32
  }
  func.func @transform_2(%arg0: i32) -> (i32, i32) {
    %c0_i32 = arith.constant 0 : i32
    %c0_i32_0 = arith.constant 0 : i32
    %c0_i32_1 = arith.constant 0 : i32
    return %c0_i32, %c0_i32_0 : i32, i32
  }
  func.func @transform_3(%arg0: i32) -> (i32, i32) {
    %c0_i32 = arith.constant 0 : i32
    %c0_i32_0 = arith.constant 0 : i32
    return %arg0, %c0_i32 : i32, i32
  }
}

module attributes {stable_mosaic.version = 11 : i64} {
  func.func @_conv_taps_kernel(%arg0: i32, %arg1: memref<40x96xbf16, #tpu.memory_space<vmem>>, %arg2: memref<4x96x128xbf16, #tpu.memory_space<vmem>>, %arg3: memref<1x128xf32, #tpu.memory_space<vmem>>, %arg4: memref<32x128xbf16, #tpu.memory_space<vmem>>) attributes {dimension_semantics = [#tpu.dimension_semantics<parallel>], iteration_bounds = array<i64: 1>, scalar_prefetch = 0 : i64, scratch_operands = 0 : i64, tpu.core_type = #tpu.core_type<tc>, window_params = [{pipeline_mode = #tpu.pipeline_mode<synchronous>, transform_indices = @transform_0, window_bounds = array<i64: 40, 96>}, {pipeline_mode = #tpu.pipeline_mode<synchronous>, transform_indices = @transform_1, window_bounds = array<i64: 4, 96, 128>}, {pipeline_mode = #tpu.pipeline_mode<synchronous>, transform_indices = @transform_2, window_bounds = array<i64: 1, 128>}, {transform_indices = @transform_3, window_bounds = array<i64: 32, 128>}]} {
    %c0 = arith.constant 0 : index
    %c0_0 = arith.constant 0 : index
    %0 = vector.load %arg1[%c0, %c0_0] : memref<40x96xbf16, #tpu.memory_space<vmem>>, vector<32x96xbf16>
    %c0_1 = arith.constant 0 : index
    %c0_2 = arith.constant 0 : index
    %c0_3 = arith.constant 0 : index
    %1 = vector.load %arg2[%c0_1, %c0_2, %c0_3] : memref<4x96x128xbf16, #tpu.memory_space<vmem>>, vector<1x96x128xbf16>
    %2 = vector.shape_cast %1 : vector<1x96x128xbf16> to vector<96x128xbf16>
    %cst = arith.constant dense<0.000000e+00> : vector<32x128xf32>
    %3 = tpu.matmul %0, %2, %cst {dimension_numbers = #tpu.dot_dimension_numbers<[1], [0], [0], [1], [0, 0, 1, 1], [], []>} : vector<32x96xbf16>, vector<96x128xbf16>, vector<32x128xf32> -> vector<32x128xf32>
    %c1 = arith.constant 1 : index
    %c0_4 = arith.constant 0 : index
    %4 = vector.load %arg1[%c1, %c0_4] : memref<40x96xbf16, #tpu.memory_space<vmem>>, vector<32x96xbf16>
    %c1_5 = arith.constant 1 : index
    %c0_6 = arith.constant 0 : index
    %c0_7 = arith.constant 0 : index
    %5 = vector.load %arg2[%c1_5, %c0_6, %c0_7] : memref<4x96x128xbf16, #tpu.memory_space<vmem>>, vector<1x96x128xbf16>
    %6 = vector.shape_cast %5 : vector<1x96x128xbf16> to vector<96x128xbf16>
    %cst_8 = arith.constant dense<0.000000e+00> : vector<32x128xf32>
    %7 = tpu.matmul %4, %6, %cst_8 {dimension_numbers = #tpu.dot_dimension_numbers<[1], [0], [0], [1], [0, 0, 1, 1], [], []>} : vector<32x96xbf16>, vector<96x128xbf16>, vector<32x128xf32> -> vector<32x128xf32>
    %8 = arith.addf %3, %7 : vector<32x128xf32>
    %c3 = arith.constant 3 : index
    %c0_9 = arith.constant 0 : index
    %9 = vector.load %arg1[%c3, %c0_9] : memref<40x96xbf16, #tpu.memory_space<vmem>>, vector<32x96xbf16>
    %c2 = arith.constant 2 : index
    %c0_10 = arith.constant 0 : index
    %c0_11 = arith.constant 0 : index
    %10 = vector.load %arg2[%c2, %c0_10, %c0_11] : memref<4x96x128xbf16, #tpu.memory_space<vmem>>, vector<1x96x128xbf16>
    %11 = vector.shape_cast %10 : vector<1x96x128xbf16> to vector<96x128xbf16>
    %cst_12 = arith.constant dense<0.000000e+00> : vector<32x128xf32>
    %12 = tpu.matmul %9, %11, %cst_12 {dimension_numbers = #tpu.dot_dimension_numbers<[1], [0], [0], [1], [0, 0, 1, 1], [], []>} : vector<32x96xbf16>, vector<96x128xbf16>, vector<32x128xf32> -> vector<32x128xf32>
    %13 = arith.addf %8, %12 : vector<32x128xf32>
    %c4 = arith.constant 4 : index
    %c0_13 = arith.constant 0 : index
    %14 = vector.load %arg1[%c4, %c0_13] : memref<40x96xbf16, #tpu.memory_space<vmem>>, vector<32x96xbf16>
    %c3_14 = arith.constant 3 : index
    %c0_15 = arith.constant 0 : index
    %c0_16 = arith.constant 0 : index
    %15 = vector.load %arg2[%c3_14, %c0_15, %c0_16] : memref<4x96x128xbf16, #tpu.memory_space<vmem>>, vector<1x96x128xbf16>
    %16 = vector.shape_cast %15 : vector<1x96x128xbf16> to vector<96x128xbf16>
    %cst_17 = arith.constant dense<0.000000e+00> : vector<32x128xf32>
    %17 = tpu.matmul %14, %16, %cst_17 {dimension_numbers = #tpu.dot_dimension_numbers<[1], [0], [0], [1], [0, 0, 1, 1], [], []>} : vector<32x96xbf16>, vector<96x128xbf16>, vector<32x128xf32> -> vector<32x128xf32>
    %18 = arith.addf %13, %17 : vector<32x128xf32>
    %c0_18 = arith.constant 0 : index
    %c0_19 = arith.constant 0 : index
    %19 = vector.load %arg3[%c0_18, %c0_19] : memref<1x128xf32, #tpu.memory_space<vmem>>, vector<1x128xf32>
    %20 = vector.broadcast %19 : vector<1x128xf32> to vector<32x128xf32>
    %21 = arith.addf %18, %20 : vector<32x128xf32>
    %cst_20 = arith.constant 0.000000e+00 : f32
    %22 = vector.broadcast %cst_20 : f32 to vector<32x128xf32>
    %23 = arith.maximumf %21, %22 : vector<32x128xf32>
    %24 = arith.truncf %23 : vector<32x128xf32> to vector<32x128xbf16>
    %c0_21 = arith.constant 0 : index
    %c0_22 = arith.constant 0 : index
    %25 = vector.load %arg4[%c0_21, %c0_22] : memref<32x128xbf16, #tpu.memory_space<vmem>>, vector<32x128xbf16>
    tpu.vector_store %arg4[%c0_21, %c0_22], %24 {strides = array<i32>} : memref<32x128xbf16, #tpu.memory_space<vmem>>, vector<32x128xbf16>,
    return
  }
  func.func @transform_0(%arg0: i32) -> (i32, i32) {
    %c0_i32 = arith.constant 0 : i32
    %c0_i32_0 = arith.constant 0 : i32
    %c0_i32_1 = arith.constant 0 : i32
    return %c0_i32, %c0_i32_0 : i32, i32
  }
  func.func @transform_1(%arg0: i32) -> (i32, i32, i32) {
    %c0_i32 = arith.constant 0 : i32
    %c0_i32_0 = arith.constant 0 : i32
    %c0_i32_1 = arith.constant 0 : i32
    %c0_i32_2 = arith.constant 0 : i32
    return %c0_i32, %c0_i32_0, %c0_i32_1 : i32, i32, i32
  }
  func.func @transform_2(%arg0: i32) -> (i32, i32) {
    %c0_i32 = arith.constant 0 : i32
    %c0_i32_0 = arith.constant 0 : i32
    %c0_i32_1 = arith.constant 0 : i32
    return %c0_i32, %c0_i32_0 : i32, i32
  }
  func.func @transform_3(%arg0: i32) -> (i32, i32) {
    %c0_i32 = arith.constant 0 : i32
    %c0_i32_0 = arith.constant 0 : i32
    return %arg0, %c0_i32 : i32, i32
  }
}

module attributes {stable_mosaic.version = 11 : i64} {
  func.func @_conv_taps_kernel(%arg0: i32, %arg1: memref<72x48xbf16, #tpu.memory_space<vmem>>, %arg2: memref<4x48x128xbf16, #tpu.memory_space<vmem>>, %arg3: memref<1x128xf32, #tpu.memory_space<vmem>>, %arg4: memref<64x128xbf16, #tpu.memory_space<vmem>>) attributes {dimension_semantics = [#tpu.dimension_semantics<parallel>], iteration_bounds = array<i64: 1>, scalar_prefetch = 0 : i64, scratch_operands = 0 : i64, tpu.core_type = #tpu.core_type<tc>, window_params = [{pipeline_mode = #tpu.pipeline_mode<synchronous>, transform_indices = @transform_0, window_bounds = array<i64: 72, 48>}, {pipeline_mode = #tpu.pipeline_mode<synchronous>, transform_indices = @transform_1, window_bounds = array<i64: 4, 48, 128>}, {pipeline_mode = #tpu.pipeline_mode<synchronous>, transform_indices = @transform_2, window_bounds = array<i64: 1, 128>}, {transform_indices = @transform_3, window_bounds = array<i64: 64, 128>}]} {
    %c0 = arith.constant 0 : index
    %c0_0 = arith.constant 0 : index
    %0 = vector.load %arg1[%c0, %c0_0] : memref<72x48xbf16, #tpu.memory_space<vmem>>, vector<64x48xbf16>
    %c0_1 = arith.constant 0 : index
    %c0_2 = arith.constant 0 : index
    %c0_3 = arith.constant 0 : index
    %1 = vector.load %arg2[%c0_1, %c0_2, %c0_3] : memref<4x48x128xbf16, #tpu.memory_space<vmem>>, vector<1x48x128xbf16>
    %2 = vector.shape_cast %1 : vector<1x48x128xbf16> to vector<48x128xbf16>
    %cst = arith.constant dense<0.000000e+00> : vector<64x128xf32>
    %3 = tpu.matmul %0, %2, %cst {dimension_numbers = #tpu.dot_dimension_numbers<[1], [0], [0], [1], [0, 0, 1, 1], [], []>} : vector<64x48xbf16>, vector<48x128xbf16>, vector<64x128xf32> -> vector<64x128xf32>
    %c1 = arith.constant 1 : index
    %c0_4 = arith.constant 0 : index
    %4 = vector.load %arg1[%c1, %c0_4] : memref<72x48xbf16, #tpu.memory_space<vmem>>, vector<64x48xbf16>
    %c1_5 = arith.constant 1 : index
    %c0_6 = arith.constant 0 : index
    %c0_7 = arith.constant 0 : index
    %5 = vector.load %arg2[%c1_5, %c0_6, %c0_7] : memref<4x48x128xbf16, #tpu.memory_space<vmem>>, vector<1x48x128xbf16>
    %6 = vector.shape_cast %5 : vector<1x48x128xbf16> to vector<48x128xbf16>
    %cst_8 = arith.constant dense<0.000000e+00> : vector<64x128xf32>
    %7 = tpu.matmul %4, %6, %cst_8 {dimension_numbers = #tpu.dot_dimension_numbers<[1], [0], [0], [1], [0, 0, 1, 1], [], []>} : vector<64x48xbf16>, vector<48x128xbf16>, vector<64x128xf32> -> vector<64x128xf32>
    %8 = arith.addf %3, %7 : vector<64x128xf32>
    %c5 = arith.constant 5 : index
    %c0_9 = arith.constant 0 : index
    %9 = vector.load %arg1[%c5, %c0_9] : memref<72x48xbf16, #tpu.memory_space<vmem>>, vector<64x48xbf16>
    %c2 = arith.constant 2 : index
    %c0_10 = arith.constant 0 : index
    %c0_11 = arith.constant 0 : index
    %10 = vector.load %arg2[%c2, %c0_10, %c0_11] : memref<4x48x128xbf16, #tpu.memory_space<vmem>>, vector<1x48x128xbf16>
    %11 = vector.shape_cast %10 : vector<1x48x128xbf16> to vector<48x128xbf16>
    %cst_12 = arith.constant dense<0.000000e+00> : vector<64x128xf32>
    %12 = tpu.matmul %9, %11, %cst_12 {dimension_numbers = #tpu.dot_dimension_numbers<[1], [0], [0], [1], [0, 0, 1, 1], [], []>} : vector<64x48xbf16>, vector<48x128xbf16>, vector<64x128xf32> -> vector<64x128xf32>
    %13 = arith.addf %8, %12 : vector<64x128xf32>
    %c6 = arith.constant 6 : index
    %c0_13 = arith.constant 0 : index
    %14 = vector.load %arg1[%c6, %c0_13] : memref<72x48xbf16, #tpu.memory_space<vmem>>, vector<64x48xbf16>
    %c3 = arith.constant 3 : index
    %c0_14 = arith.constant 0 : index
    %c0_15 = arith.constant 0 : index
    %15 = vector.load %arg2[%c3, %c0_14, %c0_15] : memref<4x48x128xbf16, #tpu.memory_space<vmem>>, vector<1x48x128xbf16>
    %16 = vector.shape_cast %15 : vector<1x48x128xbf16> to vector<48x128xbf16>
    %cst_16 = arith.constant dense<0.000000e+00> : vector<64x128xf32>
    %17 = tpu.matmul %14, %16, %cst_16 {dimension_numbers = #tpu.dot_dimension_numbers<[1], [0], [0], [1], [0, 0, 1, 1], [], []>} : vector<64x48xbf16>, vector<48x128xbf16>, vector<64x128xf32> -> vector<64x128xf32>
    %18 = arith.addf %13, %17 : vector<64x128xf32>
    %c0_17 = arith.constant 0 : index
    %c0_18 = arith.constant 0 : index
    %19 = vector.load %arg3[%c0_17, %c0_18] : memref<1x128xf32, #tpu.memory_space<vmem>>, vector<1x128xf32>
    %20 = vector.broadcast %19 : vector<1x128xf32> to vector<64x128xf32>
    %21 = arith.addf %18, %20 : vector<64x128xf32>
    %cst_19 = arith.constant 0.000000e+00 : f32
    %22 = vector.broadcast %cst_19 : f32 to vector<64x128xf32>
    %23 = arith.maximumf %21, %22 : vector<64x128xf32>
    %24 = arith.truncf %23 : vector<64x128xf32> to vector<64x128xbf16>
    %c0_20 = arith.constant 0 : index
    %c0_21 = arith.constant 0 : index
    %25 = vector.load %arg4[%c0_20, %c0_21] : memref<64x128xbf16, #tpu.memory_space<vmem>>, vector<64x128xbf16>
    tpu.vector_store %arg4[%c0_20, %c0_21], %24 {strides = array<i32>} : memref<64x128xbf16, #tpu.memory_space<vmem>>, vector<64x128xbf16>,
    return
  }
  func.func @transform_0(%arg0: i32) -> (i32, i32) {
    %c0_i32 = arith.constant 0 : i32
    %c0_i32_0 = arith.constant 0 : i32
    %c0_i32_1 = arith.constant 0 : i32
    return %c0_i32, %c0_i32_0 : i32, i32
  }
  func.func @transform_1(%arg0: i32) -> (i32, i32, i32) {
    %c0_i32 = arith.constant 0 : i32
    %c0_i32_0 = arith.constant 0 : i32
    %c0_i32_1 = arith.constant 0 : i32
    %c0_i32_2 = arith.constant 0 : i32
    return %c0_i32, %c0_i32_0, %c0_i32_1 : i32, i32, i32
  }
  func.func @transform_2(%arg0: i32) -> (i32, i32) {
    %c0_i32 = arith.constant 0 : i32
    %c0_i32_0 = arith.constant 0 : i32
    %c0_i32_1 = arith.constant 0 : i32
    return %c0_i32, %c0_i32_0 : i32, i32
  }
  func.func @transform_3(%arg0: i32) -> (i32, i32) {
    %c0_i32 = arith.constant 0 : i32
    %c0_i32_0 = arith.constant 0 : i32
    return %arg0, %c0_i32 : i32, i32
  }
}

module attributes {stable_mosaic.version = 11 : i64} {
  func.func @_conv_taps_kernel(%arg0: i32, %arg1: memref<24x192xbf16, #tpu.memory_space<vmem>>, %arg2: memref<4x192x128xbf16, #tpu.memory_space<vmem>>, %arg3: memref<1x128xf32, #tpu.memory_space<vmem>>, %arg4: memref<16x128xbf16, #tpu.memory_space<vmem>>) attributes {dimension_semantics = [#tpu.dimension_semantics<parallel>], iteration_bounds = array<i64: 1>, scalar_prefetch = 0 : i64, scratch_operands = 0 : i64, tpu.core_type = #tpu.core_type<tc>, window_params = [{pipeline_mode = #tpu.pipeline_mode<synchronous>, transform_indices = @transform_0, window_bounds = array<i64: 24, 192>}, {pipeline_mode = #tpu.pipeline_mode<synchronous>, transform_indices = @transform_1, window_bounds = array<i64: 4, 192, 128>}, {pipeline_mode = #tpu.pipeline_mode<synchronous>, transform_indices = @transform_2, window_bounds = array<i64: 1, 128>}, {transform_indices = @transform_3, window_bounds = array<i64: 16, 128>}]} {
    %c0 = arith.constant 0 : index
    %c0_0 = arith.constant 0 : index
    %0 = vector.load %arg1[%c0, %c0_0] : memref<24x192xbf16, #tpu.memory_space<vmem>>, vector<16x192xbf16>
    %c0_1 = arith.constant 0 : index
    %c0_2 = arith.constant 0 : index
    %c0_3 = arith.constant 0 : index
    %1 = vector.load %arg2[%c0_1, %c0_2, %c0_3] : memref<4x192x128xbf16, #tpu.memory_space<vmem>>, vector<1x192x128xbf16>
    %2 = vector.shape_cast %1 : vector<1x192x128xbf16> to vector<192x128xbf16>
    %cst = arith.constant dense<0.000000e+00> : vector<16x128xf32>
    %3 = tpu.matmul %0, %2, %cst {dimension_numbers = #tpu.dot_dimension_numbers<[1], [0], [0], [1], [0, 0, 1, 1], [], []>} : vector<16x192xbf16>, vector<192x128xbf16>, vector<16x128xf32> -> vector<16x128xf32>
    %c1 = arith.constant 1 : index
    %c0_4 = arith.constant 0 : index
    %4 = vector.load %arg1[%c1, %c0_4] : memref<24x192xbf16, #tpu.memory_space<vmem>>, vector<16x192xbf16>
    %c1_5 = arith.constant 1 : index
    %c0_6 = arith.constant 0 : index
    %c0_7 = arith.constant 0 : index
    %5 = vector.load %arg2[%c1_5, %c0_6, %c0_7] : memref<4x192x128xbf16, #tpu.memory_space<vmem>>, vector<1x192x128xbf16>
    %6 = vector.shape_cast %5 : vector<1x192x128xbf16> to vector<192x128xbf16>
    %cst_8 = arith.constant dense<0.000000e+00> : vector<16x128xf32>
    %7 = tpu.matmul %4, %6, %cst_8 {dimension_numbers = #tpu.dot_dimension_numbers<[1], [0], [0], [1], [0, 0, 1, 1], [], []>} : vector<16x192xbf16>, vector<192x128xbf16>, vector<16x128xf32> -> vector<16x128xf32>
    %8 = arith.addf %3, %7 : vector<16x128xf32>
    %c2 = arith.constant 2 : index
    %c0_9 = arith.constant 0 : index
    %9 = vector.load %arg1[%c2, %c0_9] : memref<24x192xbf16, #tpu.memory_space<vmem>>, vector<16x192xbf16>
    %c2_10 = arith.constant 2 : index
    %c0_11 = arith.constant 0 : index
    %c0_12 = arith.constant 0 : index
    %10 = vector.load %arg2[%c2_10, %c0_11, %c0_12] : memref<4x192x128xbf16, #tpu.memory_space<vmem>>, vector<1x192x128xbf16>
    %11 = vector.shape_cast %10 : vector<1x192x128xbf16> to vector<192x128xbf16>
    %cst_13 = arith.constant dense<0.000000e+00> : vector<16x128xf32>
    %12 = tpu.matmul %9, %11, %cst_13 {dimension_numbers = #tpu.dot_dimension_numbers<[1], [0], [0], [1], [0, 0, 1, 1], [], []>} : vector<16x192xbf16>, vector<192x128xbf16>, vector<16x128xf32> -> vector<16x128xf32>
    %13 = arith.addf %8, %12 : vector<16x128xf32>
    %c3 = arith.constant 3 : index
    %c0_14 = arith.constant 0 : index
    %14 = vector.load %arg1[%c3, %c0_14] : memref<24x192xbf16, #tpu.memory_space<vmem>>, vector<16x192xbf16>
    %c3_15 = arith.constant 3 : index
    %c0_16 = arith.constant 0 : index
    %c0_17 = arith.constant 0 : index
    %15 = vector.load %arg2[%c3_15, %c0_16, %c0_17] : memref<4x192x128xbf16, #tpu.memory_space<vmem>>, vector<1x192x128xbf16>
    %16 = vector.shape_cast %15 : vector<1x192x128xbf16> to vector<192x128xbf16>
    %cst_18 = arith.constant dense<0.000000e+00> : vector<16x128xf32>
    %17 = tpu.matmul %14, %16, %cst_18 {dimension_numbers = #tpu.dot_dimension_numbers<[1], [0], [0], [1], [0, 0, 1, 1], [], []>} : vector<16x192xbf16>, vector<192x128xbf16>, vector<16x128xf32> -> vector<16x128xf32>
    %18 = arith.addf %13, %17 : vector<16x128xf32>
    %c0_19 = arith.constant 0 : index
    %c0_20 = arith.constant 0 : index
    %19 = vector.load %arg3[%c0_19, %c0_20] : memref<1x128xf32, #tpu.memory_space<vmem>>, vector<1x128xf32>
    %20 = vector.broadcast %19 : vector<1x128xf32> to vector<16x128xf32>
    %21 = arith.addf %18, %20 : vector<16x128xf32>
    %cst_21 = arith.constant 0.000000e+00 : f32
    %22 = vector.broadcast %cst_21 : f32 to vector<16x128xf32>
    %23 = arith.maximumf %21, %22 : vector<16x128xf32>
    %24 = arith.truncf %23 : vector<16x128xf32> to vector<16x128xbf16>
    %c0_22 = arith.constant 0 : index
    %c0_23 = arith.constant 0 : index
    %25 = vector.load %arg4[%c0_22, %c0_23] : memref<16x128xbf16, #tpu.memory_space<vmem>>, vector<16x128xbf16>
    tpu.vector_store %arg4[%c0_22, %c0_23], %24 {strides = array<i32>} : memref<16x128xbf16, #tpu.memory_space<vmem>>, vector<16x128xbf16>,
    return
  }
  func.func @transform_0(%arg0: i32) -> (i32, i32) {
    %c0_i32 = arith.constant 0 : i32
    %c0_i32_0 = arith.constant 0 : i32
    %c0_i32_1 = arith.constant 0 : i32
    return %c0_i32, %c0_i32_0 : i32, i32
  }
  func.func @transform_1(%arg0: i32) -> (i32, i32, i32) {
    %c0_i32 = arith.constant 0 : i32
    %c0_i32_0 = arith.constant 0 : i32
    %c0_i32_1 = arith.constant 0 : i32
    %c0_i32_2 = arith.constant 0 : i32
    return %c0_i32, %c0_i32_0, %c0_i32_1 : i32, i32, i32
  }
  func.func @transform_2(%arg0: i32) -> (i32, i32) {
    %c0_i32 = arith.constant 0 : i32
    %c0_i32_0 = arith.constant 0 : i32
    %c0_i32_1 = arith.constant 0 : i32
    return %c0_i32, %c0_i32_0 : i32, i32
  }
  func.func @transform_3(%arg0: i32) -> (i32, i32) {
    %c0_i32 = arith.constant 0 : i32
    %c0_i32_0 = arith.constant 0 : i32
    return %arg0, %c0_i32 : i32, i32
  }
}

module attributes {stable_mosaic.version = 11 : i64} {
  func.func @_conv_taps_kernel(%arg0: i32, %arg1: memref<40x96xbf16, #tpu.memory_space<vmem>>, %arg2: memref<4x96x256xbf16, #tpu.memory_space<vmem>>, %arg3: memref<1x256xf32, #tpu.memory_space<vmem>>, %arg4: memref<32x256xbf16, #tpu.memory_space<vmem>>) attributes {dimension_semantics = [#tpu.dimension_semantics<parallel>], iteration_bounds = array<i64: 1>, scalar_prefetch = 0 : i64, scratch_operands = 0 : i64, tpu.core_type = #tpu.core_type<tc>, window_params = [{pipeline_mode = #tpu.pipeline_mode<synchronous>, transform_indices = @transform_0, window_bounds = array<i64: 40, 96>}, {pipeline_mode = #tpu.pipeline_mode<synchronous>, transform_indices = @transform_1, window_bounds = array<i64: 4, 96, 256>}, {pipeline_mode = #tpu.pipeline_mode<synchronous>, transform_indices = @transform_2, window_bounds = array<i64: 1, 256>}, {transform_indices = @transform_3, window_bounds = array<i64: 32, 256>}]} {
    %c0 = arith.constant 0 : index
    %c0_0 = arith.constant 0 : index
    %0 = vector.load %arg1[%c0, %c0_0] : memref<40x96xbf16, #tpu.memory_space<vmem>>, vector<32x96xbf16>
    %c0_1 = arith.constant 0 : index
    %c0_2 = arith.constant 0 : index
    %c0_3 = arith.constant 0 : index
    %1 = vector.load %arg2[%c0_1, %c0_2, %c0_3] : memref<4x96x256xbf16, #tpu.memory_space<vmem>>, vector<1x96x256xbf16>
    %2 = vector.shape_cast %1 : vector<1x96x256xbf16> to vector<96x256xbf16>
    %cst = arith.constant dense<0.000000e+00> : vector<32x256xf32>
    %3 = tpu.matmul %0, %2, %cst {dimension_numbers = #tpu.dot_dimension_numbers<[1], [0], [0], [1], [0, 0, 1, 1], [], []>} : vector<32x96xbf16>, vector<96x256xbf16>, vector<32x256xf32> -> vector<32x256xf32>
    %c1 = arith.constant 1 : index
    %c0_4 = arith.constant 0 : index
    %4 = vector.load %arg1[%c1, %c0_4] : memref<40x96xbf16, #tpu.memory_space<vmem>>, vector<32x96xbf16>
    %c1_5 = arith.constant 1 : index
    %c0_6 = arith.constant 0 : index
    %c0_7 = arith.constant 0 : index
    %5 = vector.load %arg2[%c1_5, %c0_6, %c0_7] : memref<4x96x256xbf16, #tpu.memory_space<vmem>>, vector<1x96x256xbf16>
    %6 = vector.shape_cast %5 : vector<1x96x256xbf16> to vector<96x256xbf16>
    %cst_8 = arith.constant dense<0.000000e+00> : vector<32x256xf32>
    %7 = tpu.matmul %4, %6, %cst_8 {dimension_numbers = #tpu.dot_dimension_numbers<[1], [0], [0], [1], [0, 0, 1, 1], [], []>} : vector<32x96xbf16>, vector<96x256xbf16>, vector<32x256xf32> -> vector<32x256xf32>
    %8 = arith.addf %3, %7 : vector<32x256xf32>
    %c3 = arith.constant 3 : index
    %c0_9 = arith.constant 0 : index
    %9 = vector.load %arg1[%c3, %c0_9] : memref<40x96xbf16, #tpu.memory_space<vmem>>, vector<32x96xbf16>
    %c2 = arith.constant 2 : index
    %c0_10 = arith.constant 0 : index
    %c0_11 = arith.constant 0 : index
    %10 = vector.load %arg2[%c2, %c0_10, %c0_11] : memref<4x96x256xbf16, #tpu.memory_space<vmem>>, vector<1x96x256xbf16>
    %11 = vector.shape_cast %10 : vector<1x96x256xbf16> to vector<96x256xbf16>
    %cst_12 = arith.constant dense<0.000000e+00> : vector<32x256xf32>
    %12 = tpu.matmul %9, %11, %cst_12 {dimension_numbers = #tpu.dot_dimension_numbers<[1], [0], [0], [1], [0, 0, 1, 1], [], []>} : vector<32x96xbf16>, vector<96x256xbf16>, vector<32x256xf32> -> vector<32x256xf32>
    %13 = arith.addf %8, %12 : vector<32x256xf32>
    %c4 = arith.constant 4 : index
    %c0_13 = arith.constant 0 : index
    %14 = vector.load %arg1[%c4, %c0_13] : memref<40x96xbf16, #tpu.memory_space<vmem>>, vector<32x96xbf16>
    %c3_14 = arith.constant 3 : index
    %c0_15 = arith.constant 0 : index
    %c0_16 = arith.constant 0 : index
    %15 = vector.load %arg2[%c3_14, %c0_15, %c0_16] : memref<4x96x256xbf16, #tpu.memory_space<vmem>>, vector<1x96x256xbf16>
    %16 = vector.shape_cast %15 : vector<1x96x256xbf16> to vector<96x256xbf16>
    %cst_17 = arith.constant dense<0.000000e+00> : vector<32x256xf32>
    %17 = tpu.matmul %14, %16, %cst_17 {dimension_numbers = #tpu.dot_dimension_numbers<[1], [0], [0], [1], [0, 0, 1, 1], [], []>} : vector<32x96xbf16>, vector<96x256xbf16>, vector<32x256xf32> -> vector<32x256xf32>
    %18 = arith.addf %13, %17 : vector<32x256xf32>
    %c0_18 = arith.constant 0 : index
    %c0_19 = arith.constant 0 : index
    %19 = vector.load %arg3[%c0_18, %c0_19] : memref<1x256xf32, #tpu.memory_space<vmem>>, vector<1x256xf32>
    %20 = vector.broadcast %19 : vector<1x256xf32> to vector<32x256xf32>
    %21 = arith.addf %18, %20 : vector<32x256xf32>
    %cst_20 = arith.constant 0.000000e+00 : f32
    %22 = vector.broadcast %cst_20 : f32 to vector<32x256xf32>
    %23 = arith.maximumf %21, %22 : vector<32x256xf32>
    %24 = arith.truncf %23 : vector<32x256xf32> to vector<32x256xbf16>
    %c0_21 = arith.constant 0 : index
    %c0_22 = arith.constant 0 : index
    %25 = vector.load %arg4[%c0_21, %c0_22] : memref<32x256xbf16, #tpu.memory_space<vmem>>, vector<32x256xbf16>
    tpu.vector_store %arg4[%c0_21, %c0_22], %24 {strides = array<i32>} : memref<32x256xbf16, #tpu.memory_space<vmem>>, vector<32x256xbf16>,
    return
  }
  func.func @transform_0(%arg0: i32) -> (i32, i32) {
    %c0_i32 = arith.constant 0 : i32
    %c0_i32_0 = arith.constant 0 : i32
    %c0_i32_1 = arith.constant 0 : i32
    return %c0_i32, %c0_i32_0 : i32, i32
  }
  func.func @transform_1(%arg0: i32) -> (i32, i32, i32) {
    %c0_i32 = arith.constant 0 : i32
    %c0_i32_0 = arith.constant 0 : i32
    %c0_i32_1 = arith.constant 0 : i32
    %c0_i32_2 = arith.constant 0 : i32
    return %c0_i32, %c0_i32_0, %c0_i32_1 : i32, i32, i32
  }
  func.func @transform_2(%arg0: i32) -> (i32, i32) {
    %c0_i32 = arith.constant 0 : i32
    %c0_i32_0 = arith.constant 0 : i32
    %c0_i32_1 = arith.constant 0 : i32
    return %c0_i32, %c0_i32_0 : i32, i32
  }
  func.func @transform_3(%arg0: i32) -> (i32, i32) {
    %c0_i32 = arith.constant 0 : i32
    %c0_i32_0 = arith.constant 0 : i32
    return %arg0, %c0_i32 : i32, i32
  }
}

module attributes {stable_mosaic.version = 11 : i64} {
  func.func @_conv_taps_kernel(%arg0: i32, %arg1: memref<40x48xbf16, #tpu.memory_space<vmem>>, %arg2: memref<4x48x128xbf16, #tpu.memory_space<vmem>>, %arg3: memref<1x128xf32, #tpu.memory_space<vmem>>, %arg4: memref<32x128xbf16, #tpu.memory_space<vmem>>) attributes {dimension_semantics = [#tpu.dimension_semantics<parallel>], iteration_bounds = array<i64: 1>, scalar_prefetch = 0 : i64, scratch_operands = 0 : i64, tpu.core_type = #tpu.core_type<tc>, window_params = [{pipeline_mode = #tpu.pipeline_mode<synchronous>, transform_indices = @transform_0, window_bounds = array<i64: 40, 48>}, {pipeline_mode = #tpu.pipeline_mode<synchronous>, transform_indices = @transform_1, window_bounds = array<i64: 4, 48, 128>}, {pipeline_mode = #tpu.pipeline_mode<synchronous>, transform_indices = @transform_2, window_bounds = array<i64: 1, 128>}, {transform_indices = @transform_3, window_bounds = array<i64: 32, 128>}]} {
    %c0 = arith.constant 0 : index
    %c0_0 = arith.constant 0 : index
    %0 = vector.load %arg1[%c0, %c0_0] : memref<40x48xbf16, #tpu.memory_space<vmem>>, vector<32x48xbf16>
    %c0_1 = arith.constant 0 : index
    %c0_2 = arith.constant 0 : index
    %c0_3 = arith.constant 0 : index
    %1 = vector.load %arg2[%c0_1, %c0_2, %c0_3] : memref<4x48x128xbf16, #tpu.memory_space<vmem>>, vector<1x48x128xbf16>
    %2 = vector.shape_cast %1 : vector<1x48x128xbf16> to vector<48x128xbf16>
    %cst = arith.constant dense<0.000000e+00> : vector<32x128xf32>
    %3 = tpu.matmul %0, %2, %cst {dimension_numbers = #tpu.dot_dimension_numbers<[1], [0], [0], [1], [0, 0, 1, 1], [], []>} : vector<32x48xbf16>, vector<48x128xbf16>, vector<32x128xf32> -> vector<32x128xf32>
    %c1 = arith.constant 1 : index
    %c0_4 = arith.constant 0 : index
    %4 = vector.load %arg1[%c1, %c0_4] : memref<40x48xbf16, #tpu.memory_space<vmem>>, vector<32x48xbf16>
    %c1_5 = arith.constant 1 : index
    %c0_6 = arith.constant 0 : index
    %c0_7 = arith.constant 0 : index
    %5 = vector.load %arg2[%c1_5, %c0_6, %c0_7] : memref<4x48x128xbf16, #tpu.memory_space<vmem>>, vector<1x48x128xbf16>
    %6 = vector.shape_cast %5 : vector<1x48x128xbf16> to vector<48x128xbf16>
    %cst_8 = arith.constant dense<0.000000e+00> : vector<32x128xf32>
    %7 = tpu.matmul %4, %6, %cst_8 {dimension_numbers = #tpu.dot_dimension_numbers<[1], [0], [0], [1], [0, 0, 1, 1], [], []>} : vector<32x48xbf16>, vector<48x128xbf16>, vector<32x128xf32> -> vector<32x128xf32>
    %8 = arith.addf %3, %7 : vector<32x128xf32>
    %c4 = arith.constant 4 : index
    %c0_9 = arith.constant 0 : index
    %9 = vector.load %arg1[%c4, %c0_9] : memref<40x48xbf16, #tpu.memory_space<vmem>>, vector<32x48xbf16>
    %c2 = arith.constant 2 : index
    %c0_10 = arith.constant 0 : index
    %c0_11 = arith.constant 0 : index
    %10 = vector.load %arg2[%c2, %c0_10, %c0_11] : memref<4x48x128xbf16, #tpu.memory_space<vmem>>, vector<1x48x128xbf16>
    %11 = vector.shape_cast %10 : vector<1x48x128xbf16> to vector<48x128xbf16>
    %cst_12 = arith.constant dense<0.000000e+00> : vector<32x128xf32>
    %12 = tpu.matmul %9, %11, %cst_12 {dimension_numbers = #tpu.dot_dimension_numbers<[1], [0], [0], [1], [0, 0, 1, 1], [], []>} : vector<32x48xbf16>, vector<48x128xbf16>, vector<32x128xf32> -> vector<32x128xf32>
    %13 = arith.addf %8, %12 : vector<32x128xf32>
    %c5 = arith.constant 5 : index
    %c0_13 = arith.constant 0 : index
    %14 = vector.load %arg1[%c5, %c0_13] : memref<40x48xbf16, #tpu.memory_space<vmem>>, vector<32x48xbf16>
    %c3 = arith.constant 3 : index
    %c0_14 = arith.constant 0 : index
    %c0_15 = arith.constant 0 : index
    %15 = vector.load %arg2[%c3, %c0_14, %c0_15] : memref<4x48x128xbf16, #tpu.memory_space<vmem>>, vector<1x48x128xbf16>
    %16 = vector.shape_cast %15 : vector<1x48x128xbf16> to vector<48x128xbf16>
    %cst_16 = arith.constant dense<0.000000e+00> : vector<32x128xf32>
    %17 = tpu.matmul %14, %16, %cst_16 {dimension_numbers = #tpu.dot_dimension_numbers<[1], [0], [0], [1], [0, 0, 1, 1], [], []>} : vector<32x48xbf16>, vector<48x128xbf16>, vector<32x128xf32> -> vector<32x128xf32>
    %18 = arith.addf %13, %17 : vector<32x128xf32>
    %c0_17 = arith.constant 0 : index
    %c0_18 = arith.constant 0 : index
    %19 = vector.load %arg3[%c0_17, %c0_18] : memref<1x128xf32, #tpu.memory_space<vmem>>, vector<1x128xf32>
    %20 = vector.broadcast %19 : vector<1x128xf32> to vector<32x128xf32>
    %21 = arith.addf %18, %20 : vector<32x128xf32>
    %cst_19 = arith.constant 0.000000e+00 : f32
    %22 = vector.broadcast %cst_19 : f32 to vector<32x128xf32>
    %23 = arith.maximumf %21, %22 : vector<32x128xf32>
    %24 = arith.truncf %23 : vector<32x128xf32> to vector<32x128xbf16>
    %c0_20 = arith.constant 0 : index
    %c0_21 = arith.constant 0 : index
    %25 = vector.load %arg4[%c0_20, %c0_21] : memref<32x128xbf16, #tpu.memory_space<vmem>>, vector<32x128xbf16>
    tpu.vector_store %arg4[%c0_20, %c0_21], %24 {strides = array<i32>} : memref<32x128xbf16, #tpu.memory_space<vmem>>, vector<32x128xbf16>,
    return
  }
  func.func @transform_0(%arg0: i32) -> (i32, i32) {
    %c0_i32 = arith.constant 0 : i32
    %c0_i32_0 = arith.constant 0 : i32
    %c0_i32_1 = arith.constant 0 : i32
    return %c0_i32, %c0_i32_0 : i32, i32
  }
  func.func @transform_1(%arg0: i32) -> (i32, i32, i32) {
    %c0_i32 = arith.constant 0 : i32
    %c0_i32_0 = arith.constant 0 : i32
    %c0_i32_1 = arith.constant 0 : i32
    %c0_i32_2 = arith.constant 0 : i32
    return %c0_i32, %c0_i32_0, %c0_i32_1 : i32, i32, i32
  }
  func.func @transform_2(%arg0: i32) -> (i32, i32) {
    %c0_i32 = arith.constant 0 : i32
    %c0_i32_0 = arith.constant 0 : i32
    %c0_i32_1 = arith.constant 0 : i32
    return %c0_i32, %c0_i32_0 : i32, i32
  }
  func.func @transform_3(%arg0: i32) -> (i32, i32) {
    %c0_i32 = arith.constant 0 : i32
    %c0_i32_0 = arith.constant 0 : i32
    return %arg0, %c0_i32 : i32, i32
  }
}

module attributes {stable_mosaic.version = 11 : i64} {
  func.func @_conv_taps_kernel(%arg0: i32, %arg1: memref<88x32xbf16, #tpu.memory_space<vmem>>, %arg2: memref<4x32x128xbf16, #tpu.memory_space<vmem>>, %arg3: memref<1x128xf32, #tpu.memory_space<vmem>>, %arg4: memref<80x128xbf16, #tpu.memory_space<vmem>>) attributes {dimension_semantics = [#tpu.dimension_semantics<parallel>], iteration_bounds = array<i64: 1>, scalar_prefetch = 0 : i64, scratch_operands = 0 : i64, tpu.core_type = #tpu.core_type<tc>, window_params = [{pipeline_mode = #tpu.pipeline_mode<synchronous>, transform_indices = @transform_0, window_bounds = array<i64: 88, 32>}, {pipeline_mode = #tpu.pipeline_mode<synchronous>, transform_indices = @transform_1, window_bounds = array<i64: 4, 32, 128>}, {pipeline_mode = #tpu.pipeline_mode<synchronous>, transform_indices = @transform_2, window_bounds = array<i64: 1, 128>}, {transform_indices = @transform_3, window_bounds = array<i64: 80, 128>}]} {
    %c0 = arith.constant 0 : index
    %c0_0 = arith.constant 0 : index
    %0 = vector.load %arg1[%c0, %c0_0] : memref<88x32xbf16, #tpu.memory_space<vmem>>, vector<80x32xbf16>
    %c0_1 = arith.constant 0 : index
    %c0_2 = arith.constant 0 : index
    %c0_3 = arith.constant 0 : index
    %1 = vector.load %arg2[%c0_1, %c0_2, %c0_3] : memref<4x32x128xbf16, #tpu.memory_space<vmem>>, vector<1x32x128xbf16>
    %2 = vector.shape_cast %1 : vector<1x32x128xbf16> to vector<32x128xbf16>
    %cst = arith.constant dense<0.000000e+00> : vector<80x128xf32>
    %3 = tpu.matmul %0, %2, %cst {dimension_numbers = #tpu.dot_dimension_numbers<[1], [0], [0], [1], [0, 0, 1, 1], [], []>} : vector<80x32xbf16>, vector<32x128xbf16>, vector<80x128xf32> -> vector<80x128xf32>
    %c1 = arith.constant 1 : index
    %c0_4 = arith.constant 0 : index
    %4 = vector.load %arg1[%c1, %c0_4] : memref<88x32xbf16, #tpu.memory_space<vmem>>, vector<80x32xbf16>
    %c1_5 = arith.constant 1 : index
    %c0_6 = arith.constant 0 : index
    %c0_7 = arith.constant 0 : index
    %5 = vector.load %arg2[%c1_5, %c0_6, %c0_7] : memref<4x32x128xbf16, #tpu.memory_space<vmem>>, vector<1x32x128xbf16>
    %6 = vector.shape_cast %5 : vector<1x32x128xbf16> to vector<32x128xbf16>
    %cst_8 = arith.constant dense<0.000000e+00> : vector<80x128xf32>
    %7 = tpu.matmul %4, %6, %cst_8 {dimension_numbers = #tpu.dot_dimension_numbers<[1], [0], [0], [1], [0, 0, 1, 1], [], []>} : vector<80x32xbf16>, vector<32x128xbf16>, vector<80x128xf32> -> vector<80x128xf32>
    %8 = arith.addf %3, %7 : vector<80x128xf32>
    %c6 = arith.constant 6 : index
    %c0_9 = arith.constant 0 : index
    %9 = vector.load %arg1[%c6, %c0_9] : memref<88x32xbf16, #tpu.memory_space<vmem>>, vector<80x32xbf16>
    %c2 = arith.constant 2 : index
    %c0_10 = arith.constant 0 : index
    %c0_11 = arith.constant 0 : index
    %10 = vector.load %arg2[%c2, %c0_10, %c0_11] : memref<4x32x128xbf16, #tpu.memory_space<vmem>>, vector<1x32x128xbf16>
    %11 = vector.shape_cast %10 : vector<1x32x128xbf16> to vector<32x128xbf16>
    %cst_12 = arith.constant dense<0.000000e+00> : vector<80x128xf32>
    %12 = tpu.matmul %9, %11, %cst_12 {dimension_numbers = #tpu.dot_dimension_numbers<[1], [0], [0], [1], [0, 0, 1, 1], [], []>} : vector<80x32xbf16>, vector<32x128xbf16>, vector<80x128xf32> -> vector<80x128xf32>
    %13 = arith.addf %8, %12 : vector<80x128xf32>
    %c7 = arith.constant 7 : index
    %c0_13 = arith.constant 0 : index
    %14 = vector.load %arg1[%c7, %c0_13] : memref<88x32xbf16, #tpu.memory_space<vmem>>, vector<80x32xbf16>
    %c3 = arith.constant 3 : index
    %c0_14 = arith.constant 0 : index
    %c0_15 = arith.constant 0 : index
    %15 = vector.load %arg2[%c3, %c0_14, %c0_15] : memref<4x32x128xbf16, #tpu.memory_space<vmem>>, vector<1x32x128xbf16>
    %16 = vector.shape_cast %15 : vector<1x32x128xbf16> to vector<32x128xbf16>
    %cst_16 = arith.constant dense<0.000000e+00> : vector<80x128xf32>
    %17 = tpu.matmul %14, %16, %cst_16 {dimension_numbers = #tpu.dot_dimension_numbers<[1], [0], [0], [1], [0, 0, 1, 1], [], []>} : vector<80x32xbf16>, vector<32x128xbf16>, vector<80x128xf32> -> vector<80x128xf32>
    %18 = arith.addf %13, %17 : vector<80x128xf32>
    %c0_17 = arith.constant 0 : index
    %c0_18 = arith.constant 0 : index
    %19 = vector.load %arg3[%c0_17, %c0_18] : memref<1x128xf32, #tpu.memory_space<vmem>>, vector<1x128xf32>
    %20 = vector.broadcast %19 : vector<1x128xf32> to vector<80x128xf32>
    %21 = arith.addf %18, %20 : vector<80x128xf32>
    %cst_19 = arith.constant 0.000000e+00 : f32
    %22 = vector.broadcast %cst_19 : f32 to vector<80x128xf32>
    %23 = arith.maximumf %21, %22 : vector<80x128xf32>
    %24 = arith.truncf %23 : vector<80x128xf32> to vector<80x128xbf16>
    %c0_20 = arith.constant 0 : index
    %c0_21 = arith.constant 0 : index
    %25 = vector.load %arg4[%c0_20, %c0_21] : memref<80x128xbf16, #tpu.memory_space<vmem>>, vector<80x128xbf16>
    tpu.vector_store %arg4[%c0_20, %c0_21], %24 {strides = array<i32>} : memref<80x128xbf16, #tpu.memory_space<vmem>>, vector<80x128xbf16>,
    return
  }
  func.func @transform_0(%arg0: i32) -> (i32, i32) {
    %c0_i32 = arith.constant 0 : i32
    %c0_i32_0 = arith.constant 0 : i32
    %c0_i32_1 = arith.constant 0 : i32
    return %c0_i32, %c0_i32_0 : i32, i32
  }
  func.func @transform_1(%arg0: i32) -> (i32, i32, i32) {
    %c0_i32 = arith.constant 0 : i32
    %c0_i32_0 = arith.constant 0 : i32
    %c0_i32_1 = arith.constant 0 : i32
    %c0_i32_2 = arith.constant 0 : i32
    return %c0_i32, %c0_i32_0, %c0_i32_1 : i32, i32, i32
  }
  func.func @transform_2(%arg0: i32) -> (i32, i32) {
    %c0_i32 = arith.constant 0 : i32
    %c0_i32_0 = arith.constant 0 : i32
    %c0_i32_1 = arith.constant 0 : i32
    return %c0_i32, %c0_i32_0 : i32, i32
  }
  func.func @transform_3(%arg0: i32) -> (i32, i32) {
    %c0_i32 = arith.constant 0 : i32
    %c0_i32_0 = arith.constant 0 : i32
    return %arg0, %c0_i32 : i32, i32
  }
}

module attributes {stable_mosaic.version = 11 : i64} {
  func.func @_conv_taps_kernel(%arg0: i32, %arg1: memref<224x16xbf16, #tpu.memory_space<vmem>>, %arg2: memref<4x16x128xbf16, #tpu.memory_space<vmem>>, %arg3: memref<1x128xf32, #tpu.memory_space<vmem>>, %arg4: memref<208x128xbf16, #tpu.memory_space<vmem>>) attributes {dimension_semantics = [#tpu.dimension_semantics<parallel>], iteration_bounds = array<i64: 1>, scalar_prefetch = 0 : i64, scratch_operands = 0 : i64, tpu.core_type = #tpu.core_type<tc>, window_params = [{pipeline_mode = #tpu.pipeline_mode<synchronous>, transform_indices = @transform_0, window_bounds = array<i64: 224, 16>}, {pipeline_mode = #tpu.pipeline_mode<synchronous>, transform_indices = @transform_1, window_bounds = array<i64: 4, 16, 128>}, {pipeline_mode = #tpu.pipeline_mode<synchronous>, transform_indices = @transform_2, window_bounds = array<i64: 1, 128>}, {transform_indices = @transform_3, window_bounds = array<i64: 208, 128>}]} {
    %c0 = arith.constant 0 : index
    %c0_0 = arith.constant 0 : index
    %0 = vector.load %arg1[%c0, %c0_0] : memref<224x16xbf16, #tpu.memory_space<vmem>>, vector<208x16xbf16>
    %c0_1 = arith.constant 0 : index
    %c0_2 = arith.constant 0 : index
    %c0_3 = arith.constant 0 : index
    %1 = vector.load %arg2[%c0_1, %c0_2, %c0_3] : memref<4x16x128xbf16, #tpu.memory_space<vmem>>, vector<1x16x128xbf16>
    %2 = vector.shape_cast %1 : vector<1x16x128xbf16> to vector<16x128xbf16>
    %cst = arith.constant dense<0.000000e+00> : vector<208x128xf32>
    %3 = tpu.matmul %0, %2, %cst {dimension_numbers = #tpu.dot_dimension_numbers<[1], [0], [0], [1], [0, 0, 1, 1], [], []>} : vector<208x16xbf16>, vector<16x128xbf16>, vector<208x128xf32> -> vector<208x128xf32>
    %c1 = arith.constant 1 : index
    %c0_4 = arith.constant 0 : index
    %4 = vector.load %arg1[%c1, %c0_4] : memref<224x16xbf16, #tpu.memory_space<vmem>>, vector<208x16xbf16>
    %c1_5 = arith.constant 1 : index
    %c0_6 = arith.constant 0 : index
    %c0_7 = arith.constant 0 : index
    %5 = vector.load %arg2[%c1_5, %c0_6, %c0_7] : memref<4x16x128xbf16, #tpu.memory_space<vmem>>, vector<1x16x128xbf16>
    %6 = vector.shape_cast %5 : vector<1x16x128xbf16> to vector<16x128xbf16>
    %cst_8 = arith.constant dense<0.000000e+00> : vector<208x128xf32>
    %7 = tpu.matmul %4, %6, %cst_8 {dimension_numbers = #tpu.dot_dimension_numbers<[1], [0], [0], [1], [0, 0, 1, 1], [], []>} : vector<208x16xbf16>, vector<16x128xbf16>, vector<208x128xf32> -> vector<208x128xf32>
    %8 = arith.addf %3, %7 : vector<208x128xf32>
    %c10 = arith.constant 10 : index
    %c0_9 = arith.constant 0 : index
    %9 = vector.load %arg1[%c10, %c0_9] : memref<224x16xbf16, #tpu.memory_space<vmem>>, vector<208x16xbf16>
    %c2 = arith.constant 2 : index
    %c0_10 = arith.constant 0 : index
    %c0_11 = arith.constant 0 : index
    %10 = vector.load %arg2[%c2, %c0_10, %c0_11] : memref<4x16x128xbf16, #tpu.memory_space<vmem>>, vector<1x16x128xbf16>
    %11 = vector.shape_cast %10 : vector<1x16x128xbf16> to vector<16x128xbf16>
    %cst_12 = arith.constant dense<0.000000e+00> : vector<208x128xf32>
    %12 = tpu.matmul %9, %11, %cst_12 {dimension_numbers = #tpu.dot_dimension_numbers<[1], [0], [0], [1], [0, 0, 1, 1], [], []>} : vector<208x16xbf16>, vector<16x128xbf16>, vector<208x128xf32> -> vector<208x128xf32>
    %13 = arith.addf %8, %12 : vector<208x128xf32>
    %c11 = arith.constant 11 : index
    %c0_13 = arith.constant 0 : index
    %14 = vector.load %arg1[%c11, %c0_13] : memref<224x16xbf16, #tpu.memory_space<vmem>>, vector<208x16xbf16>
    %c3 = arith.constant 3 : index
    %c0_14 = arith.constant 0 : index
    %c0_15 = arith.constant 0 : index
    %15 = vector.load %arg2[%c3, %c0_14, %c0_15] : memref<4x16x128xbf16, #tpu.memory_space<vmem>>, vector<1x16x128xbf16>
    %16 = vector.shape_cast %15 : vector<1x16x128xbf16> to vector<16x128xbf16>
    %cst_16 = arith.constant dense<0.000000e+00> : vector<208x128xf32>
    %17 = tpu.matmul %14, %16, %cst_16 {dimension_numbers = #tpu.dot_dimension_numbers<[1], [0], [0], [1], [0, 0, 1, 1], [], []>} : vector<208x16xbf16>, vector<16x128xbf16>, vector<208x128xf32> -> vector<208x128xf32>
    %18 = arith.addf %13, %17 : vector<208x128xf32>
    %c0_17 = arith.constant 0 : index
    %c0_18 = arith.constant 0 : index
    %19 = vector.load %arg3[%c0_17, %c0_18] : memref<1x128xf32, #tpu.memory_space<vmem>>, vector<1x128xf32>
    %20 = vector.broadcast %19 : vector<1x128xf32> to vector<208x128xf32>
    %21 = arith.addf %18, %20 : vector<208x128xf32>
    %22 = arith.negf %21 : vector<208x128xf32>
    %23 = math.exp %22 : vector<208x128xf32>
    %cst_19 = arith.constant 1.000000e+00 : f32
    %24 = vector.broadcast %cst_19 : f32 to vector<208x128xf32>
    %25 = arith.addf %24, %23 : vector<208x128xf32>
    %26 = arith.divf %24, %25 : vector<208x128xf32>
    %27 = arith.truncf %26 : vector<208x128xf32> to vector<208x128xbf16>
    %c0_20 = arith.constant 0 : index
    %c0_21 = arith.constant 0 : index
    %28 = vector.load %arg4[%c0_20, %c0_21] : memref<208x128xbf16, #tpu.memory_space<vmem>>, vector<208x128xbf16>
    tpu.vector_store %arg4[%c0_20, %c0_21], %27 {strides = array<i32>} : memref<208x128xbf16, #tpu.memory_space<vmem>>, vector<208x128xbf16>,
    return
  }
  func.func @transform_0(%arg0: i32) -> (i32, i32) {
    %c0_i32 = arith.constant 0 : i32
    %c0_i32_0 = arith.constant 0 : i32
    %c0_i32_1 = arith.constant 0 : i32
    return %c0_i32, %c0_i32_0 : i32, i32
  }
  func.func @transform_1(%arg0: i32) -> (i32, i32, i32) {
    %c0_i32 = arith.constant 0 : i32
    %c0_i32_0 = arith.constant 0 : i32
    %c0_i32_1 = arith.constant 0 : i32
    %c0_i32_2 = arith.constant 0 : i32
    return %c0_i32, %c0_i32_0, %c0_i32_1 : i32, i32, i32
  }
  func.func @transform_2(%arg0: i32) -> (i32, i32) {
    %c0_i32 = arith.constant 0 : i32
    %c0_i32_0 = arith.constant 0 : i32
    %c0_i32_1 = arith.constant 0 : i32
    return %c0_i32, %c0_i32_0 : i32, i32
  }
  func.func @transform_3(%arg0: i32) -> (i32, i32) {
    %c0_i32 = arith.constant 0 : i32
    %c0_i32_0 = arith.constant 0 : i32
    return %arg0, %c0_i32 : i32, i32
  }
}

</mosaic_0001>

<llo_original>
// kernel: autoencoder_forward.10
$region0: #{autoencoder_forward.10}
  #allocation0 [shape = 'u32[]', space=smem, size = 0x4, offset = 0x4, fixed_abs, tag = 'smem constant byte address 0x4 - core index']
  #allocation1 [shape = 'u32[72,128]{1,0:T(1,128)}', space=vmem, size = 0x9000, scoped, tag = 'internal scratch']
  %s0 = inlined_call_operand.vmem [shape: bf16[40,96], index: 0, kind: input, shape index: {}]
  %s1 = inlined_call_operand.vmem [shape: bf16[4,96,128], index: 1, kind: input, shape index: {}]
  %s2 = inlined_call_operand.vmem [shape: f32[1,128], index: 2, kind: input, shape index: {}]
  %s3 = inlined_call_operand.vmem [shape: bf16[32,128], index: 3, kind: output, shape index: {}]
  %s4 = sld [smem:[#allocation0]]
  $region22: #{autoencoder_forward.10} parent=0
    _
  %s6 = ssub.s32 1, %s4
  %s7 = scalar_select 0, %s6, %s4
  // Predicated region
  $region2: #{autoencoder_forward.10} parent=0 // pred_check
    _
  $region3: #{autoencoder_forward.10} parent=0 // pred_check_branch
    %9 = sbr.rel (0) target = $region5
  $region4: #{autoencoder_forward.10} parent=0 // pred_region
    _
  $region5: #{autoencoder_forward.10} parent=0 // pred_fallthru
    _
  // Predicated region
  $region6: #{autoencoder_forward.10} parent=0 // pred_check
    _
  $region7: #{autoencoder_forward.10} parent=0 // pred_check_branch
    %11 = sbr.rel (0) target = $region9
  $region8: #{autoencoder_forward.10} parent=0 // pred_region
    _
  $region9: #{autoencoder_forward.10} parent=0 // pred_fallthru
    _
  // Predicated region
  $region10: #{autoencoder_forward.10} parent=0 // pred_check
    _
  $region11: #{autoencoder_forward.10} parent=0 // pred_check_branch
    %13 = sbr.rel (0) target = $region13
  $region12: #{autoencoder_forward.10} parent=0 // pred_region
    _
  $region13: #{autoencoder_forward.10} parent=0 // pred_fallthru
    _
  %v15 = vld [vmem:[%s0] sm:$0xf]
  %v16 = vld [vmem:[%s0 + $0x4] sm:$0xf]
  %v17 = vld [vmem:[%s0 + $0x8] sm:$0xf]
  %v18 = vld [vmem:[%s0 + $0xc] sm:$0xf]
  %v19 = vld [vmem:[%s1] sm:$0xf]
  %v20 = vld [vmem:[%s1 + $0x4] sm:$0xf]
  %v21 = vld [vmem:[%s1 + $0x8] sm:$0xf]
  %v22 = vld [vmem:[%s1 + $0xc] sm:$0xf]
  %v23 = vld [vmem:[%s1 + $0x10] sm:$0xf]
  %v24 = vld [vmem:[%s1 + $0x14] sm:$0xf]
  %v25 = vld [vmem:[%s1 + $0x18] sm:$0xf]
  %v26 = vld [vmem:[%s1 + $0x1c] sm:$0xf]
  %v27 = vld [vmem:[%s1 + $0x20] sm:$0xf]
  %v28 = vld [vmem:[%s1 + $0x24] sm:$0xf]
  %v29 = vld [vmem:[%s1 + $0x28] sm:$0xf]
  %v30 = vld [vmem:[%s1 + $0x2c] sm:$0xf]
  %v31 = vld [vmem:[%s0 + $0x10] sm:$0x1]
  %s32 = scalar_lea.vmem %s1, 48
  %v33 = vld [vmem:[%s32] sm:$0xf]
  %v34 = vld [vmem:[%s32 + $0x4] sm:$0xf]
  %v35 = vld [vmem:[%s32 + $0x8] sm:$0xf]
  %v36 = vld [vmem:[%s32 + $0xc] sm:$0xf]
  %v37 = vld [vmem:[%s32 + $0x10] sm:$0xf]
  %v38 = vld [vmem:[%s32 + $0x14] sm:$0xf]
  %v39 = vld [vmem:[%s32 + $0x18] sm:$0xf]
  %v40 = vld [vmem:[%s32 + $0x1c] sm:$0xf]
  %v41 = vld [vmem:[%s32 + $0x20] sm:$0xf]
  %v42 = vld [vmem:[%s32 + $0x24] sm:$0xf]
  %v43 = vld [vmem:[%s32 + $0x28] sm:$0xf]
  %v44 = vld [vmem:[%s32 + $0x2c] sm:$0xf]
  %v50 = vunpack.c.l.b16 %v15
  %v51 = vunpack.c.l.b16 %v16
  %v52 = vunpack.c.l.b16 %v17
  %v53 = vunpack.c.l.b16 %v18
  %v54 = vunpack.c.l.b16 %v31
  %v55 = vpack.c.b16 %v51, %v50
  %v56 = vpack.c.b16 %v53, %v52
  %v57 = vpack.c.b16 %v54, %v54
  %vm58 = vsmask.f32 7424
  %v60 = vshrl.u32 %v55, 16
  %v62 = vshll.u32 %v55, 16
  %v64 = vrot.slane %v62, 1
  %v65 = vor.u32 %v60, %v64
  %v67 = vshll.u32 %v56, 16
  %v69 = vrot.slane %v67, 1
  %v70 = vsel %vm58, %v65, %v69
  %v71 = vshrl.u32 %v56, 16
  %v73 = vor.u32 %v71, %v69
  %v75 = vshll.u32 %v57, 16
  %v77 = vrot.slane %v75, 1
  %v78 = vsel %vm58, %v73, %v77
  %v91 = vunpack.c.l.b16 %v33
  %v92 = vunpack.c.l.b16 %v34
  %v93 = vunpack.c.l.b16 %v35
  %v94 = vunpack.c.l.b16 %v36
  %v95 = vunpack.c.l.b16 %v37
  %v96 = vunpack.c.l.b16 %v38
  %v97 = vunpack.c.l.b16 %v39
  %v98 = vunpack.c.l.b16 %v40
  %v99 = vunpack.c.l.b16 %v41
  %v100 = vunpack.c.l.b16 %v42
  %v101 = vunpack.c.l.b16 %v43
  %v102 = vunpack.c.l.b16 %v44
  %v103 = vpack.c.b16 %v92, %v91
  %v104 = vpack.c.b16 %v94, %v93
  %v105 = vpack.c.b16 %v96, %v95
  %v106 = vpack.c.b16 %v98, %v97
  %v107 = vpack.c.b16 %v100, %v99
  %v108 = vpack.c.b16 %v102, %v101
  %vm115 = vcmask 785408
  %v117 = vsel %vm115, %v70, 0
  %v120 = vsel %vm115, %v78, 0
  %122 = vmatpush.bf16.msra.mxu0 0
  %123 = vmatpush.bf16.msra.mxu0 0
  %124 = vmatpush.bf16.msra.mxu0 %v108
  %125 = vmatpush.bf16.msra.mxu0 %v107
  %126 = vmatpush.bf16.msra.mxu0 %v106
  %127 = vmatpush.bf16.msra.mxu0 %v105
  %128 = vmatpush.bf16.msra.mxu0 %v104
  %129 = vmatpush.bf16.msra.mxu0 %v103
  %130 = vmatmul.bf16.gmra.mxu0 %v117
  %v131 = vpop.f32.mrf.mxu0
  %v132 = vadd.f32 0.0, %v131
  %v133 = vpop.f32.mrf.mxu0
  %v134 = vadd.f32 0.0, %v133
  %135 = vmatmul.bf16.gmra.mxu0 %v120
  %v136 = vpop.f32.mrf.mxu0
  %v137 = vadd.f32 0.0, %v136
  %v138 = vpop.f32.mrf.mxu0
  %v139 = vadd.f32 0.0, %v138
  %140 = vdwg.mxu0
  %v153 = vunpack.c.l.b16 %v19
  %v154 = vunpack.c.l.b16 %v20
  %v155 = vunpack.c.l.b16 %v21
  %v156 = vunpack.c.l.b16 %v22
  %v157 = vunpack.c.l.b16 %v23
  %v158 = vunpack.c.l.b16 %v24
  %v159 = vunpack.c.l.b16 %v25
  %v160 = vunpack.c.l.b16 %v26
  %v161 = vunpack.c.l.b16 %v27
  %v162 = vunpack.c.l.b16 %v28
  %v163 = vunpack.c.l.b16 %v29
  %v164 = vunpack.c.l.b16 %v30
  %v165 = vpack.c.b16 %v154, %v153
  %v166 = vpack.c.b16 %v156, %v155
  %v167 = vpack.c.b16 %v158, %v157
  %v168 = vpack.c.b16 %v160, %v159
  %v169 = vpack.c.b16 %v162, %v161
  %v170 = vpack.c.b16 %v164, %v163
  %v177 = vsel %vm115, %v55, 0
  %v179 = vsel %vm115, %v56, 0
  %181 = vmatpush.bf16.msra.mxu0 0
  %182 = vmatpush.bf16.msra.mxu0 0
  %183 = vmatpush.bf16.msra.mxu0 %v170
  %184 = vmatpush.bf16.msra.mxu0 %v169
  %185 = vmatpush.bf16.msra.mxu0 %v168
  %186 = vmatpush.bf16.msra.mxu0 %v167
  %187 = vmatpush.bf16.msra.mxu0 %v166
  %188 = vmatpush.bf16.msra.mxu0 %v165
  %189 = vmatmul.bf16.gmra.mxu0 %v177
  %v190 = vpop.f32.mrf.mxu0
  %v191 = vadd.f32 %v132, %v190
  %v192 = vpop.f32.mrf.mxu0
  %v193 = vadd.f32 %v134, %v192
  %194 = vmatmul.bf16.gmra.mxu0 %v179
  %v195 = vpop.f32.mrf.mxu0
  %v196 = vadd.f32 %v137, %v195
  %v197 = vpop.f32.mrf.mxu0
  %v198 = vadd.f32 %v139, %v197
  %199 = vdwg.mxu0
  %v200 = vld [vmem:[%s0] sm:$0xe]
  %v201 = vld [vmem:[%s0 + $0x10] sm:$0x3]
  %s202 = scalar_lea.vmem %s1, 96
  %v203 = vld [vmem:[%s202] sm:$0xf]
  %v204 = vld [vmem:[%s202 + $0x4] sm:$0xf]
  %v205 = vld [vmem:[%s202 + $0x8] sm:$0xf]
  %v206 = vld [vmem:[%s202 + $0xc] sm:$0xf]
  %v207 = vld [vmem:[%s202 + $0x10] sm:$0xf]
  %v208 = vld [vmem:[%s202 + $0x14] sm:$0xf]
  %v209 = vld [vmem:[%s202 + $0x18] sm:$0xf]
  %v210 = vld [vmem:[%s202 + $0x1c] sm:$0xf]
  %v211 = vld [vmem:[%s202 + $0x20] sm:$0xf]
  %v212 = vld [vmem:[%s202 + $0x24] sm:$0xf]
  %v213 = vld [vmem:[%s202 + $0x28] sm:$0xf]
  %v214 = vld [vmem:[%s202 + $0x2c] sm:$0xf]
  %v217 = vunpack.c.l.b16 %v200
  %v218 = vunpack.c.l.b16 %v201
  %v219 = vpack.c.b16 %v51, %v217
  %v220 = vpack.c.b16 %v218, %v218
  %vm221 = vsmask.f32 6400
  %v223 = vshrl.u32 %v219, 16
  %v225 = vrot.slane %v223, 1
  %v226 = vshll.u32 %v219, 16
  %v228 = vrot.slane %v226, 2
  %v229 = vor.u32 %v225, %v228
  %v230 = vrot.slane %v71, 1
  %v231 = vrot.slane %v67, 2
  %v232 = vor.u32 %v230, %v231
  %v233 = vsel %vm221, %v229, %v232
  %v235 = vshrl.u32 %v220, 16
  %v237 = vrot.slane %v235, 1
  %v238 = vshll.u32 %v220, 16
  %v240 = vrot.slane %v238, 2
  %v241 = vor.u32 %v237, %v240
  %v242 = vsel %vm221, %v232, %v241
  %v255 = vunpack.c.l.b16 %v203
  %v256 = vunpack.c.l.b16 %v204
  %v257 = vunpack.c.l.b16 %v205
  %v258 = vunpack.c.l.b16 %v206
  %v259 = vunpack.c.l.b16 %v207
  %v260 = vunpack.c.l.b16 %v208
  %v261 = vunpack.c.l.b16 %v209
  %v262 = vunpack.c.l.b16 %v210
  %v263 = vunpack.c.l.b16 %v211
  %v264 = vunpack.c.l.b16 %v212
  %v265 = vunpack.c.l.b16 %v213
  %v266 = vunpack.c.l.b16 %v214
  %v267 = vpack.c.b16 %v256, %v255
  %v268 = vpack.c.b16 %v258, %v257
  %v269 = vpack.c.b16 %v260, %v259
  %v270 = vpack.c.b16 %v262, %v261
  %v271 = vpack.c.b16 %v264, %v263
  %v272 = vpack.c.b16 %v266, %v265
  %v280 = vsel %vm115, %v233, 0
  %v283 = vsel %vm115, %v242, 0
  %285 = vmatpush.bf16.msra.mxu0 0
  %286 = vmatpush.bf16.msra.mxu0 0
  %287 = vmatpush.bf16.msra.mxu0 %v272
  %288 = vmatpush.bf16.msra.mxu0 %v271
  %289 = vmatpush.bf16.msra.mxu0 %v270
  %290 = vmatpush.bf16.msra.mxu0 %v269
  %291 = vmatpush.bf16.msra.mxu0 %v268
  %292 = vmatpush.bf16.msra.mxu0 %v267
  %293 = vmatmul.bf16.gmra.mxu0 %v280
  %v294 = vpop.f32.mrf.mxu0
  %v295 = vadd.f32 0.0, %v294
  %v296 = vpop.f32.mrf.mxu0
  %v297 = vadd.f32 0.0, %v296
  %298 = vmatmul.bf16.gmra.mxu0 %v283
  %v299 = vpop.f32.mrf.mxu0
  %v300 = vadd.f32 0.0, %v299
  %v301 = vpop.f32.mrf.mxu0
  %v302 = vadd.f32 0.0, %v301
  %303 = vdwg.mxu0
  %v304 = vadd.f32 %v191, %v295
  %v305 = vadd.f32 %v193, %v297
  %v306 = vadd.f32 %v196, %v300
  %v307 = vadd.f32 %v198, %v302
  %v308 = vld [vmem:[%s0] sm:$0xc]
  %s309 = scalar_lea.vmem %s1, 144
  %v310 = vld [vmem:[%s309] sm:$0xf]
  %v311 = vld [vmem:[%s309 + $0x4] sm:$0xf]
  %v312 = vld [vmem:[%s309 + $0x8] sm:$0xf]
  %v313 = vld [vmem:[%s309 + $0xc] sm:$0xf]
  %v314 = vld [vmem:[%s309 + $0x10] sm:$0xf]
  %v315 = vld [vmem:[%s309 + $0x14] sm:$0xf]
  %v316 = vld [vmem:[%s309 + $0x18] sm:$0xf]
  %v317 = vld [vmem:[%s309 + $0x1c] sm:$0xf]
  %v318 = vld [vmem:[%s309 + $0x20] sm:$0xf]
  %v319 = vld [vmem:[%s309 + $0x24] sm:$0xf]
  %v320 = vld [vmem:[%s309 + $0x28] sm:$0xf]
  %v321 = vld [vmem:[%s309 + $0x2c] sm:$0xf]
  %v323 = vunpack.c.l.b16 %v308
  %v324 = vpack.c.b16 %v51, %v323
  %vm325 = vcmask 1045504
  %v326 = vrot.slane %v324, 2
  %v327 = vrot.slane %v56, 2
  %v328 = vsel %vm325, %v326, %v327
  %v329 = vrot.slane %v220, 2
  %v330 = vsel %vm325, %v327, %v329
  %v343 = vunpack.c.l.b16 %v310
  %v344 = vunpack.c.l.b16 %v311
  %v345 = vunpack.c.l.b16 %v312
  %v346 = vunpack.c.l.b16 %v313
  %v347 = vunpack.c.l.b16 %v314
  %v348 = vunpack.c.l.b16 %v315
  %v349 = vunpack.c.l.b16 %v316
  %v350 = vunpack.c.l.b16 %v317
  %v351 = vunpack.c.l.b16 %v318
  %v352 = vunpack.c.l.b16 %v319
  %v353 = vunpack.c.l.b16 %v320
  %v354 = vunpack.c.l.b16 %v321
  %v355 = vpack.c.b16 %v344, %v343
  %v356 = vpack.c.b16 %v346, %v345
  %v357 = vpack.c.b16 %v348, %v347
  %v358 = vpack.c.b16 %v350, %v349
  %v359 = vpack.c.b16 %v352, %v351
  %v360 = vpack.c.b16 %v354, %v353
  %v368 = vsel %vm115, %v328, 0
  %v371 = vsel %vm115, %v330, 0
  %373 = vmatpush.bf16.msra.mxu0 0
  %374 = vmatpush.bf16.msra.mxu0 0
  %375 = vmatpush.bf16.msra.mxu0 %v360
  %376 = vmatpush.bf16.msra.mxu0 %v359
  %377 = vmatpush.bf16.msra.mxu0 %v358
  %378 = vmatpush.bf16.msra.mxu0 %v357
  %379 = vmatpush.bf16.msra.mxu0 %v356
  %380 = vmatpush.bf16.msra.mxu0 %v355
  %381 = vmatmul.bf16.gmra.mxu0 %v368
  %v382 = vpop.f32.mrf.mxu0
  %v383 = vadd.f32 0.0, %v382
  %v384 = vpop.f32.mrf.mxu0
  %v385 = vadd.f32 0.0, %v384
  %386 = vmatmul.bf16.gmra.mxu0 %v371
  %v387 = vpop.f32.mrf.mxu0
  %v388 = vadd.f32 0.0, %v387
  %v389 = vpop.f32.mrf.mxu0
  %v390 = vadd.f32 0.0, %v389
  %391 = vdwg.mxu0
  %v392 = vadd.f32 %v304, %v383
  %v393 = vadd.f32 %v305, %v385
  %v394 = vadd.f32 %v306, %v388
  %v395 = vadd.f32 %v307, %v390
  %v396 = vld [vmem:[%s2] sm:$0x1]
  %v398 = vperm.slane %v396, 0
  %v400 = vadd.f32 %v392, %v398
  %v401 = vadd.f32 %v393, %v398
  %v402 = vadd.f32 %v394, %v398
  %v403 = vadd.f32 %v395, %v398
  %v404 = vmax.f32 %v400, 0.0
  %v405 = vmax.f32 %v401, 0.0
  %v406 = vmax.f32 %v402, 0.0
  %v407 = vmax.f32 %v403, 0.0
  %v408 = vpack.c.bf16 %v404, %v404
  %v409 = vpack.c.bf16 %v405, %v405
  %v410 = vpack.c.bf16 %v406, %v406
  %v411 = vpack.c.bf16 %v407, %v407
  %412 = vst [vmem:[%s3] sm:$0xf] %v408
  %413 = vst [vmem:[%s3 + $0x4] sm:$0xf] %v409
  %414 = vst [vmem:[%s3 + $0x8] sm:$0xf] %v410
  %415 = vst [vmem:[%s3 + $0xc] sm:$0xf] %v411
  // Predicated region
  $region14: #{autoencoder_forward.10} parent=0 // pred_check
    _
  $region15: #{autoencoder_forward.10} parent=0 // pred_check_branch
    %417 = sbr.rel (0) target = $region17
  $region16: #{autoencoder_forward.10} parent=0 // pred_region
    _
  $region17: #{autoencoder_forward.10} parent=0 // pred_fallthru
    _
  // Predicated region
  $region18: #{autoencoder_forward.10} parent=0 // pred_check
    _
  $region19: #{autoencoder_forward.10} parent=0 // pred_check_branch
    %419 = sbr.rel (0) target = $region21
  $region20: #{autoencoder_forward.10} parent=0 // pred_region
    _
  $region21: #{autoencoder_forward.10} parent=0 // pred_fallthru
    _

// kernel: autoencoder_forward.9
$region0: #{autoencoder_forward.9}
  #allocation0 [shape = 'u32[]', space=smem, size = 0x4, offset = 0x4, fixed_abs, tag = 'smem constant byte address 0x4 - core index']
  #allocation1 [shape = 'u32[72,128]{1,0:T(1,128)}', space=vmem, size = 0x9000, scoped, tag = 'internal scratch']
  %s0 = inlined_call_operand.vmem [shape: bf16[72,48], index: 0, kind: input, shape index: {}]
  %s1 = inlined_call_operand.vmem [shape: bf16[4,48,128], index: 1, kind: input, shape index: {}]
  %s2 = inlined_call_operand.vmem [shape: f32[1,128], index: 2, kind: input, shape index: {}]
  %s3 = inlined_call_operand.vmem [shape: bf16[64,128], index: 3, kind: output, shape index: {}]
  %s4 = sld [smem:[#allocation0]]
  $region22: #{autoencoder_forward.9} parent=0
    _
  %s6 = ssub.s32 1, %s4
  %s7 = scalar_select 0, %s6, %s4
  // Predicated region
  $region2: #{autoencoder_forward.9} parent=0 // pred_check
    _
  $region3: #{autoencoder_forward.9} parent=0 // pred_check_branch
    %9 = sbr.rel (0) target = $region5
  $region4: #{autoencoder_forward.9} parent=0 // pred_region
    _
  $region5: #{autoencoder_forward.9} parent=0 // pred_fallthru
    _
  // Predicated region
  $region6: #{autoencoder_forward.9} parent=0 // pred_check
    _
  $region7: #{autoencoder_forward.9} parent=0 // pred_check_branch
    %11 = sbr.rel (0) target = $region9
  $region8: #{autoencoder_forward.9} parent=0 // pred_region
    _
  $region9: #{autoencoder_forward.9} parent=0 // pred_fallthru
    _
  // Predicated region
  $region10: #{autoencoder_forward.9} parent=0 // pred_check
    _
  $region11: #{autoencoder_forward.9} parent=0 // pred_check_branch
    %13 = sbr.rel (0) target = $region13
  $region12: #{autoencoder_forward.9} parent=0 // pred_region
    _
  $region13: #{autoencoder_forward.9} parent=0 // pred_fallthru
    _
  %v15 = vld [vmem:[%s0] sm:$0xf]
  %v16 = vld [vmem:[%s0 + $0x4] sm:$0xf]
  %v17 = vld [vmem:[%s0 + $0x8] sm:$0xf]
  %v18 = vld [vmem:[%s0 + $0xc] sm:$0xf]
  %v19 = vld [vmem:[%s0 + $0x10] sm:$0xf]
  %v20 = vld [vmem:[%s0 + $0x14] sm:$0xf]
  %v21 = vld [vmem:[%s0 + $0x18] sm:$0xf]
  %v22 = vld [vmem:[%s0 + $0x1c] sm:$0xf]
  %v23 = vld [vmem:[%s1] sm:$0xf]
  %v24 = vld [vmem:[%s1 + $0x4] sm:$0xf]
  %v25 = vld [vmem:[%s1 + $0x8] sm:$0xf]
  %v26 = vld [vmem:[%s1 + $0xc] sm:$0xf]
  %v27 = vld [vmem:[%s1 + $0x10] sm:$0xf]
  %v28 = vld [vmem:[%s1 + $0x14] sm:$0xf]
  %v29 = vld [vmem:[%s0 + $0x20] sm:$0x1]
  %s30 = scalar_lea.vmem %s1, 24
  %v31 = vld [vmem:[%s30] sm:$0xf]
  %v32 = vld [vmem:[%s30 + $0x4] sm:$0xf]
  %v33 = vld [vmem:[%s30 + $0x8] sm:$0xf]
  %v34 = vld [vmem:[%s30 + $0xc] sm:$0xf]
  %v35 = vld [vmem:[%s30 + $0x10] sm:$0xf]
  %v36 = vld [vmem:[%s30 + $0x14] sm:$0xf]
  %v46 = vunpack.c.l.b16 %v15
  %v47 = vunpack.c.l.b16 %v16
  %v48 = vunpack.c.l.b16 %v17
  %v49 = vunpack.c.l.b16 %v18
  %v50 = vunpack.c.l.b16 %v19
  %v51 = vunpack.c.l.b16 %v20
  %v52 = vunpack.c.l.b16 %v21
  %v53 = vunpack.c.l.b16 %v22
  %v54 = vunpack.c.l.b16 %v29
  %v55 = vpack.c.b16 %v47, %v46
  %v56 = vpack.c.b16 %v49, %v48
  %v57 = vpack.c.b16 %v51, %v50
  %v58 = vpack.c.b16 %v53, %v52
  %v59 = vpack.c.b16 %v54, %v54
  %vm60 = vsmask.f32 7424
  %v62 = vshrl.u32 %v55, 16
  %v64 = vshll.u32 %v55, 16
  %v66 = vrot.slane %v64, 1
  %v67 = vor.u32 %v62, %v66
  %v69 = vshll.u32 %v56, 16
  %v71 = vrot.slane %v69, 1
  %v72 = vsel %vm60, %v67, %v71
  %v73 = vshrl.u32 %v56, 16
  %v75 = vor.u32 %v73, %v71
  %v77 = vshll.u32 %v57, 16
  %v79 = vrot.slane %v77, 1
  %v80 = vsel %vm60, %v75, %v79
  %v81 = vshrl.u32 %v57, 16
  %v83 = vor.u32 %v81, %v79
  %v85 = vshll.u32 %v58, 16
  %v87 = vrot.slane %v85, 1
  %v88 = vsel %vm60, %v83, %v87
  %v89 = vshrl.u32 %v58, 16
  %v91 = vor.u32 %v89, %v87
  %v93 = vshll.u32 %v59, 16
  %v95 = vrot.slane %v93, 1
  %v96 = vsel %vm60, %v91, %v95
  %v103 = vunpack.c.l.b16 %v31
  %v104 = vunpack.c.l.b16 %v32
  %v105 = vunpack.c.l.b16 %v33
  %v106 = vunpack.c.l.b16 %v34
  %v107 = vunpack.c.l.b16 %v35
  %v108 = vunpack.c.l.b16 %v36
  %v109 = vpack.c.b16 %v104, %v103
  %v110 = vpack.c.b16 %v106, %v105
  %v111 = vpack.c.b16 %v108, %v107
  %vm115 = vcmask 392192
  %v117 = vsel %vm115, %v72, 0
  %v120 = vsel %vm115, %v80, 0
  %v123 = vsel %vm115, %v88, 0
  %v126 = vsel %vm115, %v96, 0
  %128 = vmatpush.bf16.msra.mxu0 0
  %129 = vmatpush.bf16.msra.mxu0 0
  %130 = vmatpush.bf16.msra.mxu0 0
  %131 = vmatpush.bf16.msra.mxu0 0
  %132 = vmatpush.bf16.msra.mxu0 0
  %133 = vmatpush.bf16.msra.mxu0 %v111
  %134 = vmatpush.bf16.msra.mxu0 %v110
  %135 = vmatpush.bf16.msra.mxu0 %v109
  %136 = vmatmul.bf16.gmra.mxu0 %v117
  %v137 = vpop.f32.mrf.mxu0
  %v138 = vadd.f32 0.0, %v137
  %v139 = vpop.f32.mrf.mxu0
  %v140 = vadd.f32 0.0, %v139
  %141 = vmatmul.bf16.gmra.mxu0 %v120
  %v142 = vpop.f32.mrf.mxu0
  %v143 = vadd.f32 0.0, %v142
  %v144 = vpop.f32.mrf.mxu0
  %v145 = vadd.f32 0.0, %v144
  %146 = vmatmul.bf16.gmra.mxu0 %v123
  %v147 = vpop.f32.mrf.mxu0
  %v148 = vadd.f32 0.0, %v147
  %v149 = vpop.f32.mrf.mxu0
  %v150 = vadd.f32 0.0, %v149
  %151 = vmatmul.bf16.gmra.mxu0 %v126
  %v152 = vpop.f32.mrf.mxu0
  %v153 = vadd.f32 0.0, %v152
  %v154 = vpop.f32.mrf.mxu0
  %v155 = vadd.f32 0.0, %v154
  %156 = vdwg.mxu0
  %v163 = vunpack.c.l.b16 %v23
  %v164 = vunpack.c.l.b16 %v24
  %v165 = vunpack.c.l.b16 %v25
  %v166 = vunpack.c.l.b16 %v26
  %v167 = vunpack.c.l.b16 %v27
  %v168 = vunpack.c.l.b16 %v28
  %v169 = vpack.c.b16 %v164, %v163
  %v170 = vpack.c.b16 %v166, %v165
  %v171 = vpack.c.b16 %v168, %v167
  %v175 = vsel %vm115, %v55, 0
  %v177 = vsel %vm115, %v56, 0
  %v179 = vsel %vm115, %v57, 0
  %v181 = vsel %vm115, %v58, 0
  %183 = vmatpush.bf16.msra.mxu0 0
  %184 = vmatpush.bf16.msra.mxu0 0
  %185 = vmatpush.bf16.msra.mxu0 0
  %186 = vmatpush.bf16.msra.mxu0 0
  %187 = vmatpush.bf16.msra.mxu0 0
  %188 = vmatpush.bf16.msra.mxu0 %v171
  %189 = vmatpush.bf16.msra.mxu0 %v170
  %190 = vmatpush.bf16.msra.mxu0 %v169
  %191 = vmatmul.bf16.gmra.mxu0 %v175
  %v192 = vpop.f32.mrf.mxu0
  %v193 = vadd.f32 %v138, %v192
  %v194 = vpop.f32.mrf.mxu0
  %v195 = vadd.f32 %v140, %v194
  %196 = vmatmul.bf16.gmra.mxu0 %v177
  %v197 = vpop.f32.mrf.mxu0
  %v198 = vadd.f32 %v143, %v197
  %v199 = vpop.f32.mrf.mxu0
  %v200 = vadd.f32 %v145, %v199
  %201 = vmatmul.bf16.gmra.mxu0 %v179
  %v202 = vpop.f32.mrf.mxu0
  %v203 = vadd.f32 %v148, %v202
  %v204 = vpop.f32.mrf.mxu0
  %v205 = vadd.f32 %v150, %v204
  %206 = vmatmul.bf16.gmra.mxu0 %v181
  %v207 = vpop.f32.mrf.mxu0
  %v208 = vadd.f32 %v153, %v207
  %v209 = vpop.f32.mrf.mxu0
  %v210 = vadd.f32 %v155, %v209
  %211 = vdwg.mxu0
  %v212 = vld [vmem:[%s0] sm:$0xc]
  %v213 = vld [vmem:[%s0 + $0x20] sm:$0x7]
  %s214 = scalar_lea.vmem %s1, 48
  %v215 = vld [vmem:[%s214] sm:$0xf]
  %v216 = vld [vmem:[%s214 + $0x4] sm:$0xf]
  %v217 = vld [vmem:[%s214 + $0x8] sm:$0xf]
  %v218 = vld [vmem:[%s214 + $0xc] sm:$0xf]
  %v219 = vld [vmem:[%s214 + $0x10] sm:$0xf]
  %v220 = vld [vmem:[%s214 + $0x14] sm:$0xf]
  %v223 = vunpack.c.l.b16 %v212
  %v224 = vunpack.c.l.b16 %v213
  %v225 = vpack.c.b16 %v47, %v223
  %v226 = vpack.c.b16 %v224, %v224
  %vm227 = vsmask.f32 5376
  %v229 = vshrl.u32 %v225, 16
  %v231 = vrot.slane %v229, 2
  %v232 = vshll.u32 %v225, 16
  %v234 = vrot.slane %v232, 3
  %v235 = vor.u32 %v231, %v234
  %v236 = vrot.slane %v73, 2
  %v237 = vrot.slane %v69, 3
  %v238 = vor.u32 %v236, %v237
  %v239 = vsel %vm227, %v235, %v238
  %v240 = vrot.slane %v81, 2
  %v241 = vrot.slane %v77, 3
  %v242 = vor.u32 %v240, %v241
  %v243 = vsel %vm227, %v238, %v242
  %v244 = vrot.slane %v89, 2
  %v245 = vrot.slane %v85, 3
  %v246 = vor.u32 %v244, %v245
  %v247 = vsel %vm227, %v242, %v246
  %v249 = vshrl.u32 %v226, 16
  %v251 = vrot.slane %v249, 2
  %v252 = vshll.u32 %v226, 16
  %v254 = vrot.slane %v252, 3
  %v255 = vor.u32 %v251, %v254
  %v256 = vsel %vm227, %v246, %v255
  %v263 = vunpack.c.l.b16 %v215
  %v264 = vunpack.c.l.b16 %v216
  %v265 = vunpack.c.l.b16 %v217
  %v266 = vunpack.c.l.b16 %v218
  %v267 = vunpack.c.l.b16 %v219
  %v268 = vunpack.c.l.b16 %v220
  %v269 = vpack.c.b16 %v264, %v263
  %v270 = vpack.c.b16 %v266, %v265
  %v271 = vpack.c.b16 %v268, %v267
  %v276 = vsel %vm115, %v239, 0
  %v279 = vsel %vm115, %v243, 0
  %v282 = vsel %vm115, %v247, 0
  %v285 = vsel %vm115, %v256, 0
  %287 = vmatpush.bf16.msra.mxu0 0
  %288 = vmatpush.bf16.msra.mxu0 0
  %289 = vmatpush.bf16.msra.mxu0 0
  %290 = vmatpush.bf16.msra.mxu0 0
  %291 = vmatpush.bf16.msra.mxu0 0
  %292 = vmatpush.bf16.msra.mxu0 %v271
  %293 = vmatpush.bf16.msra.mxu0 %v270
  %294 = vmatpush.bf16.msra.mxu0 %v269
  %295 = vmatmul.bf16.gmra.mxu0 %v276
  %v296 = vpop.f32.mrf.mxu0
  %v297 = vadd.f32 0.0, %v296
  %v298 = vpop.f32.mrf.mxu0
  %v299 = vadd.f32 0.0, %v298
  %300 = vmatmul.bf16.gmra.mxu0 %v279
  %v301 = vpop.f32.mrf.mxu0
  %v302 = vadd.f32 0.0, %v301
  %v303 = vpop.f32.mrf.mxu0
  %v304 = vadd.f32 0.0, %v303
  %305 = vmatmul.bf16.gmra.mxu0 %v282
  %v306 = vpop.f32.mrf.mxu0
  %v307 = vadd.f32 0.0, %v306
  %v308 = vpop.f32.mrf.mxu0
  %v309 = vadd.f32 0.0, %v308
  %310 = vmatmul.bf16.gmra.mxu0 %v285
  %v311 = vpop.f32.mrf.mxu0
  %v312 = vadd.f32 0.0, %v311
  %v313 = vpop.f32.mrf.mxu0
  %v314 = vadd.f32 0.0, %v313
  %315 = vdwg.mxu0
  %v316 = vadd.f32 %v193, %v297
  %v317 = vadd.f32 %v195, %v299
  %v318 = vadd.f32 %v198, %v302
  %v319 = vadd.f32 %v200, %v304
  %v320 = vadd.f32 %v203, %v307
  %v321 = vadd.f32 %v205, %v309
  %v322 = vadd.f32 %v208, %v312
  %v323 = vadd.f32 %v210, %v314
  %v324 = vld [vmem:[%s0] sm:$0x8]
  %s325 = scalar_lea.vmem %s1, 72
  %v326 = vld [vmem:[%s325] sm:$0xf]
  %v327 = vld [vmem:[%s325 + $0x4] sm:$0xf]
  %v328 = vld [vmem:[%s325 + $0x8] sm:$0xf]
  %v329 = vld [vmem:[%s325 + $0xc] sm:$0xf]
  %v330 = vld [vmem:[%s325 + $0x10] sm:$0xf]
  %v331 = vld [vmem:[%s325 + $0x14] sm:$0xf]
  %v333 = vunpack.c.l.b16 %v324
  %v334 = vpack.c.b16 %v47, %v333
  %vm335 = vcmask 1044480
  %v336 = vrot.slane %v334, 3
  %v337 = vrot.slane %v56, 3
  %v338 = vsel %vm335, %v336, %v337
  %v339 = vrot.slane %v57, 3
  %v340 = vsel %vm335, %v337, %v339
  %v341 = vrot.slane %v58, 3
  %v342 = vsel %vm335, %v339, %v341
  %v343 = vrot.slane %v226, 3
  %v344 = vsel %vm335, %v341, %v343
  %v351 = vunpack.c.l.b16 %v326
  %v352 = vunpack.c.l.b16 %v327
  %v353 = vunpack.c.l.b16 %v328
  %v354 = vunpack.c.l.b16 %v329
  %v355 = vunpack.c.l.b16 %v330
  %v356 = vunpack.c.l.b16 %v331
  %v357 = vpack.c.b16 %v352, %v351
  %v358 = vpack.c.b16 %v354, %v353
  %v359 = vpack.c.b16 %v356, %v355
  %v364 = vsel %vm115, %v338, 0
  %v367 = vsel %vm115, %v340, 0
  %v370 = vsel %vm115, %v342, 0
  %v373 = vsel %vm115, %v344, 0
  %375 = vmatpush.bf16.msra.mxu0 0
  %376 = vmatpush.bf16.msra.mxu0 0
  %377 = vmatpush.bf16.msra.mxu0 0
  %378 = vmatpush.bf16.msra.mxu0 0
  %379 = vmatpush.bf16.msra.mxu0 0
  %380 = vmatpush.bf16.msra.mxu0 %v359
  %381 = vmatpush.bf16.msra.mxu0 %v358
  %382 = vmatpush.bf16.msra.mxu0 %v357
  %383 = vmatmul.bf16.gmra.mxu0 %v364
  %v384 = vpop.f32.mrf.mxu0
  %v385 = vadd.f32 0.0, %v384
  %v386 = vpop.f32.mrf.mxu0
  %v387 = vadd.f32 0.0, %v386
  %388 = vmatmul.bf16.gmra.mxu0 %v367
  %v389 = vpop.f32.mrf.mxu0
  %v390 = vadd.f32 0.0, %v389
  %v391 = vpop.f32.mrf.mxu0
  %v392 = vadd.f32 0.0, %v391
  %393 = vmatmul.bf16.gmra.mxu0 %v370
  %v394 = vpop.f32.mrf.mxu0
  %v395 = vadd.f32 0.0, %v394
  %v396 = vpop.f32.mrf.mxu0
  %v397 = vadd.f32 0.0, %v396
  %398 = vmatmul.bf16.gmra.mxu0 %v373
  %v399 = vpop.f32.mrf.mxu0
  %v400 = vadd.f32 0.0, %v399
  %v401 = vpop.f32.mrf.mxu0
  %v402 = vadd.f32 0.0, %v401
  %403 = vdwg.mxu0
  %v404 = vadd.f32 %v316, %v385
  %v405 = vadd.f32 %v317, %v387
  %v406 = vadd.f32 %v318, %v390
  %v407 = vadd.f32 %v319, %v392
  %v408 = vadd.f32 %v320, %v395
  %v409 = vadd.f32 %v321, %v397
  %v410 = vadd.f32 %v322, %v400
  %v411 = vadd.f32 %v323, %v402
  %v412 = vld [vmem:[%s2] sm:$0x1]
  %v414 = vperm.slane %v412, 0
  %v416 = vadd.f32 %v404, %v414
  %v417 = vadd.f32 %v405, %v414
  %v418 = vadd.f32 %v406, %v414
  %v419 = vadd.f32 %v407, %v414
  %v420 = vadd.f32 %v408, %v414
  %v421 = vadd.f32 %v409, %v414
  %v422 = vadd.f32 %v410, %v414
  %v423 = vadd.f32 %v411, %v414
  %v424 = vmax.f32 %v416, 0.0
  %v425 = vmax.f32 %v417, 0.0
  %v426 = vmax.f32 %v418, 0.0
  %v427 = vmax.f32 %v419, 0.0
  %v428 = vmax.f32 %v420, 0.0
  %v429 = vmax.f32 %v421, 0.0
  %v430 = vmax.f32 %v422, 0.0
  %v431 = vmax.f32 %v423, 0.0
  %v432 = vpack.c.bf16 %v424, %v424
  %v433 = vpack.c.bf16 %v425, %v425
  %v434 = vpack.c.bf16 %v426, %v426
  %v435 = vpack.c.bf16 %v427, %v427
  %v436 = vpack.c.bf16 %v428, %v428
  %v437 = vpack.c.bf16 %v429, %v429
  %v438 = vpack.c.bf16 %v430, %v430
  %v439 = vpack.c.bf16 %v431, %v431
  %440 = vst [vmem:[%s3] sm:$0xf] %v432
  %441 = vst [vmem:[%s3 + $0x4] sm:$0xf] %v433
  %442 = vst [vmem:[%s3 + $0x8] sm:$0xf] %v434
  %443 = vst [vmem:[%s3 + $0xc] sm:$0xf] %v435
  %444 = vst [vmem:[%s3 + $0x10] sm:$0xf] %v436
  %445 = vst [vmem:[%s3 + $0x14] sm:$0xf] %v437
  %446 = vst [vmem:[%s3 + $0x18] sm:$0xf] %v438
  %447 = vst [vmem:[%s3 + $0x1c] sm:$0xf] %v439
  // Predicated region
  $region14: #{autoencoder_forward.9} parent=0 // pred_check
    _
  $region15: #{autoencoder_forward.9} parent=0 // pred_check_branch
    %449 = sbr.rel (0) target = $region17
  $region16: #{autoencoder_forward.9} parent=0 // pred_region
    _
  $region17: #{autoencoder_forward.9} parent=0 // pred_fallthru
    _
  // Predicated region
  $region18: #{autoencoder_forward.9} parent=0 // pred_check
    _
  $region19: #{autoencoder_forward.9} parent=0 // pred_check_branch
    %451 = sbr.rel (0) target = $region21
  $region20: #{autoencoder_forward.9} parent=0 // pred_region
    _
  $region21: #{autoencoder_forward.9} parent=0 // pred_fallthru
    _

// kernel: autoencoder_forward.8
$region0: #{autoencoder_forward.8}
  #allocation0 [shape = 'u32[]', space=smem, size = 0x4, offset = 0x4, fixed_abs, tag = 'smem constant byte address 0x4 - core index']
  #allocation1 [shape = 'u32[72,128]{1,0:T(1,128)}', space=vmem, size = 0x9000, scoped, tag = 'internal scratch']
  %s0 = inlined_call_operand.vmem [shape: bf16[192,16], index: 0, kind: input, shape index: {}]
  %s1 = inlined_call_operand.vmem [shape: bf16[4,16,128], index: 1, kind: input, shape index: {}]
  %s2 = inlined_call_operand.vmem [shape: f32[1,128], index: 2, kind: input, shape index: {}]
  %s3 = inlined_call_operand.vmem [shape: bf16[176,128], index: 3, kind: output, shape index: {}]
  %s4 = sld [smem:[#allocation0]]
  $region22: #{autoencoder_forward.8} parent=0
    _
  %s6 = ssub.s32 1, %s4
  %s7 = scalar_select 0, %s6, %s4
  // Predicated region
  $region2: #{autoencoder_forward.8} parent=0 // pred_check
    _
  $region3: #{autoencoder_forward.8} parent=0 // pred_check_branch
    %9 = sbr.rel (0) target = $region5
  $region4: #{autoencoder_forward.8} parent=0 // pred_region
    _
  $region5: #{autoencoder_forward.8} parent=0 // pred_fallthru
    _
  // Predicated region
  $region6: #{autoencoder_forward.8} parent=0 // pred_check
    _
  $region7: #{autoencoder_forward.8} parent=0 // pred_check_branch
    %11 = sbr.rel (0) target = $region9
  $region8: #{autoencoder_forward.8} parent=0 // pred_region
    _
  $region9: #{autoencoder_forward.8} parent=0 // pred_fallthru
    _
  // Predicated region
  $region10: #{autoencoder_forward.8} parent=0 // pred_check
    _
  $region11: #{autoencoder_forward.8} parent=0 // pred_check_branch
    %13 = sbr.rel (0) target = $region13
  $region12: #{autoencoder_forward.8} parent=0 // pred_region
    _
  $region13: #{autoencoder_forward.8} parent=0 // pred_fallthru
    _
  %v15 = vld [vmem:[%s0] sm:$0xf]
  %v16 = vld [vmem:[%s0 + $0x4] sm:$0xf]
  %v17 = vld [vmem:[%s0 + $0x8] sm:$0xf]
  %v18 = vld [vmem:[%s0 + $0xc] sm:$0xf]
  %v19 = vld [vmem:[%s0 + $0x10] sm:$0xf]
  %v20 = vld [vmem:[%s0 + $0x14] sm:$0xf]
  %v21 = vld [vmem:[%s0 + $0x18] sm:$0xf]
  %v22 = vld [vmem:[%s0 + $0x1c] sm:$0xf]
  %v23 = vld [vmem:[%s0 + $0x20] sm:$0xf]
  %v24 = vld [vmem:[%s0 + $0x24] sm:$0xf]
  %v25 = vld [vmem:[%s0 + $0x28] sm:$0xf]
  %v26 = vld [vmem:[%s0 + $0x2c] sm:$0xf]
  %v27 = vld [vmem:[%s0 + $0x30] sm:$0xf]
  %v28 = vld [vmem:[%s0 + $0x34] sm:$0xf]
  %v29 = vld [vmem:[%s0 + $0x38] sm:$0xf]
  %v30 = vld [vmem:[%s0 + $0x3c] sm:$0xf]
  %v31 = vld [vmem:[%s0 + $0x40] sm:$0xf]
  %v32 = vld [vmem:[%s0 + $0x44] sm:$0xf]
  %v33 = vld [vmem:[%s0 + $0x48] sm:$0xf]
  %v34 = vld [vmem:[%s0 + $0x4c] sm:$0xf]
  %v35 = vld [vmem:[%s0 + $0x50] sm:$0xf]
  %v36 = vld [vmem:[%s0 + $0x54] sm:$0xf]
  %v37 = vld [vmem:[%s1] sm:$0xf]
  %v38 = vld [vmem:[%s1 + $0x4] sm:$0xf]
  %v39 = vld [vmem:[%s0 + $0x58] sm:$0x1]
  %s40 = scalar_lea.vmem %s1, 8
  %v41 = vld [vmem:[%s40] sm:$0xf]
  %v42 = vld [vmem:[%s40 + $0x4] sm:$0xf]
  %v66 = vunpack.c.l.b16 %v15
  %v67 = vunpack.c.l.b16 %v16
  %v68 = vunpack.c.l.b16 %v17
  %v69 = vunpack.c.l.b16 %v18
  %v70 = vunpack.c.l.b16 %v19
  %v71 = vunpack.c.l.b16 %v20
  %v72 = vunpack.c.l.b16 %v21
  %v73 = vunpack.c.l.b16 %v22
  %v74 = vunpack.c.l.b16 %v23
  %v75 = vunpack.c.l.b16 %v24
  %v76 = vunpack.c.l.b16 %v25
  %v77 = vunpack.c.l.b16 %v26
  %v78 = vunpack.c.l.b16 %v27
  %v79 = vunpack.c.l.b16 %v28
  %v80 = vunpack.c.l.b16 %v29
  %v81 = vunpack.c.l.b16 %v30
  %v82 = vunpack.c.l.b16 %v31
  %v83 = vunpack.c.l.b16 %v32
  %v84 = vunpack.c.l.b16 %v33
  %v85 = vunpack.c.l.b16 %v34
  %v86 = vunpack.c.l.b16 %v35
  %v87 = vunpack.c.l.b16 %v36
  %v88 = vunpack.c.l.b16 %v39
  %v89 = vpack.c.b16 %v67, %v66
  %v90 = vpack.c.b16 %v69, %v68
  %v91 = vpack.c.b16 %v71, %v70
  %v92 = vpack.c.b16 %v73, %v72
  %v93 = vpack.c.b16 %v75, %v74
  %v94 = vpack.c.b16 %v77, %v76
  %v95 = vpack.c.b16 %v79, %v78
  %v96 = vpack.c.b16 %v81, %v80
  %v97 = vpack.c.b16 %v83, %v82
  %v98 = vpack.c.b16 %v85, %v84
  %v99 = vpack.c.b16 %v87, %v86
  %v100 = vpack.c.b16 %v88, %v88
  %vm101 = vsmask.f32 7424
  %v103 = vshrl.u32 %v89, 16
  %v105 = vshll.u32 %v89, 16
  %v107 = vrot.slane %v105, 1
  %v108 = vor.u32 %v103, %v107
  %v110 = vshll.u32 %v90, 16
  %v112 = vrot.slane %v110, 1
  %v113 = vsel %vm101, %v108, %v112
  %v114 = vshrl.u32 %v90, 16
  %v116 = vor.u32 %v114, %v112
  %v118 = vshll.u32 %v91, 16
  %v120 = vrot.slane %v118, 1
  %v121 = vsel %vm101, %v116, %v120
  %v122 = vshrl.u32 %v91, 16
  %v124 = vor.u32 %v122, %v120
  %v126 = vshll.u32 %v92, 16
  %v128 = vrot.slane %v126, 1
  %v129 = vsel %vm101, %v124, %v128
  %v130 = vshrl.u32 %v92, 16
  %v132 = vor.u32 %v130, %v128
  %v134 = vshll.u32 %v93, 16
  %v136 = vrot.slane %v134, 1
  %v137 = vsel %vm101, %v132, %v136
  %v138 = vshrl.u32 %v93, 16
  %v140 = vor.u32 %v138, %v136
  %v142 = vshll.u32 %v94, 16
  %v144 = vrot.slane %v142, 1
  %v145 = vsel %vm101, %v140, %v144
  %v146 = vshrl.u32 %v94, 16
  %v148 = vor.u32 %v146, %v144
  %v150 = vshll.u32 %v95, 16
  %v152 = vrot.slane %v150, 1
  %v153 = vsel %vm101, %v148, %v152
  %v154 = vshrl.u32 %v95, 16
  %v156 = vor.u32 %v154, %v152
  %v158 = vshll.u32 %v96, 16
  %v160 = vrot.slane %v158, 1
  %v161 = vsel %vm101, %v156, %v160
  %v162 = vshrl.u32 %v96, 16
  %v164 = vor.u32 %v162, %v160
  %v166 = vshll.u32 %v97, 16
  %v168 = vrot.slane %v166, 1
  %v169 = vsel %vm101, %v164, %v168
  %v170 = vshrl.u32 %v97, 16
  %v172 = vor.u32 %v170, %v168
  %v174 = vshll.u32 %v98, 16
  %v176 = vrot.slane %v174, 1
  %v177 = vsel %vm101, %v172, %v176
  %v178 = vshrl.u32 %v98, 16
  %v180 = vor.u32 %v178, %v176
  %v182 = vshll.u32 %v99, 16
  %v184 = vrot.slane %v182, 1
  %v185 = vsel %vm101, %v180, %v184
  %v186 = vshrl.u32 %v99, 16
  %v188 = vor.u32 %v186, %v184
  %v190 = vshll.u32 %v100, 16
  %v192 = vrot.slane %v190, 1
  %v193 = vsel %vm101, %v188, %v192
  %v196 = vunpack.c.l.b16 %v41
  %v197 = vunpack.c.l.b16 %v42
  %v198 = vpack.c.b16 %v197, %v196
  %vm200 = vcmask 130048
  %v202 = vsel %vm200, %v113, 0
  %v205 = vsel %vm200, %v121, 0
  %v208 = vsel %vm200, %v129, 0
  %v211 = vsel %vm200, %v137, 0
  %v214 = vsel %vm200, %v145, 0
  %v217 = vsel %vm200, %v153, 0
  %v220 = vsel %vm200, %v161, 0
  %v223 = vsel %vm200, %v169, 0
  %v226 = vsel %vm200, %v177, 0
  %v229 = vsel %vm200, %v185, 0
  %v232 = vsel %vm200, %v193, 0
  %234 = vmatpush.bf16.msra.mxu0 0
  %235 = vmatpush.bf16.msra.mxu0 0
  %236 = vmatpush.bf16.msra.mxu0 0
  %237 = vmatpush.bf16.msra.mxu0 0
  %238 = vmatpush.bf16.msra.mxu0 0
  %239 = vmatpush.bf16.msra.mxu0 0
  %240 = vmatpush.bf16.msra.mxu0 0
  %241 = vmatpush.bf16.msra.mxu0 %v198
  %242 = vmatmul.bf16.gmra.mxu0 %v202
  %v243 = vpop.f32.mrf.mxu0
  %v244 = vadd.f32 0.0, %v243
  %v245 = vpop.f32.mrf.mxu0
  %v246 = vadd.f32 0.0, %v245
  %247 = vmatmul.bf16.gmra.mxu0 %v205
  %v248 = vpop.f32.mrf.mxu0
  %v249 = vadd.f32 0.0, %v248
  %v250 = vpop.f32.mrf.mxu0
  %v251 = vadd.f32 0.0, %v250
  %252 = vmatmul.bf16.gmra.mxu0 %v208
  %v253 = vpop.f32.mrf.mxu0
  %v254 = vadd.f32 0.0, %v253
  %v255 = vpop.f32.mrf.mxu0
  %v256 = vadd.f32 0.0, %v255
  %257 = vmatmul.bf16.gmra.mxu0 %v211
  %v258 = vpop.f32.mrf.mxu0
  %v259 = vadd.f32 0.0, %v258
  %v260 = vpop.f32.mrf.mxu0
  %v261 = vadd.f32 0.0, %v260
  %262 = vmatmul.bf16.gmra.mxu0 %v214
  %v263 = vpop.f32.mrf.mxu0
  %v264 = vadd.f32 0.0, %v263
  %v265 = vpop.f32.mrf.mxu0
  %v266 = vadd.f32 0.0, %v265
  %267 = vmatmul.bf16.gmra.mxu0 %v217
  %v268 = vpop.f32.mrf.mxu0
  %v269 = vadd.f32 0.0, %v268
  %v270 = vpop.f32.mrf.mxu0
  %v271 = vadd.f32 0.0, %v270
  %272 = vmatmul.bf16.gmra.mxu0 %v220
  %v273 = vpop.f32.mrf.mxu0
  %v274 = vadd.f32 0.0, %v273
  %v275 = vpop.f32.mrf.mxu0
  %v276 = vadd.f32 0.0, %v275
  %277 = vmatmul.bf16.gmra.mxu0 %v223
  %v278 = vpop.f32.mrf.mxu0
  %v279 = vadd.f32 0.0, %v278
  %v280 = vpop.f32.mrf.mxu0
  %v281 = vadd.f32 0.0, %v280
  %282 = vmatmul.bf16.gmra.mxu0 %v226
  %v283 = vpop.f32.mrf.mxu0
  %v284 = vadd.f32 0.0, %v283
  %v285 = vpop.f32.mrf.mxu0
  %v286 = vadd.f32 0.0, %v285
  %287 = vmatmul.bf16.gmra.mxu0 %v229
  %v288 = vpop.f32.mrf.mxu0
  %v289 = vadd.f32 0.0, %v288
  %v290 = vpop.f32.mrf.mxu0
  %v291 = vadd.f32 0.0, %v290
  %292 = vmatmul.bf16.gmra.mxu0 %v232
  %v293 = vpop.f32.mrf.mxu0
  %v294 = vadd.f32 0.0, %v293
  %v295 = vpop.f32.mrf.mxu0
  %v296 = vadd.f32 0.0, %v295
  %297 = vdwg.mxu0
  %v300 = vunpack.c.l.b16 %v37
  %v301 = vunpack.c.l.b16 %v38
  %v302 = vpack.c.b16 %v301, %v300
  %v304 = vsel %vm200, %v89, 0
  %v306 = vsel %vm200, %v90, 0
  %v308 = vsel %vm200, %v91, 0
  %v310 = vsel %vm200, %v92, 0
  %v312 = vsel %vm200, %v93, 0
  %v314 = vsel %vm200, %v94, 0
  %v316 = vsel %vm200, %v95, 0
  %v318 = vsel %vm200, %v96, 0
  %v320 = vsel %vm200, %v97, 0
  %v322 = vsel %vm200, %v98, 0
  %v324 = vsel %vm200, %v99, 0
  %326 = vmatpush.bf16.msra.mxu0 0
  %327 = vmatpush.bf16.msra.mxu0 0
  %328 = vmatpush.bf16.msra.mxu0 0
  %329 = vmatpush.bf16.msra.mxu0 0
  %330 = vmatpush.bf16.msra.mxu0 0
  %331 = vmatpush.bf16.msra.mxu0 0
  %332 = vmatpush.bf16.msra.mxu0 0
  %333 = vmatpush.bf16.msra.mxu0 %v302
  %334 = vmatmul.bf16.gmra.mxu0 %v304
  %v335 = vpop.f32.mrf.mxu0
  %v336 = vadd.f32 %v244, %v335
  %v337 = vpop.f32.mrf.mxu0
  %v338 = vadd.f32 %v246, %v337
  %339 = vmatmul.bf16.gmra.mxu0 %v306
  %v340 = vpop.f32.mrf.mxu0
  %v341 = vadd.f32 %v249, %v340
  %v342 = vpop.f32.mrf.mxu0
  %v343 = vadd.f32 %v251, %v342
  %344 = vmatmul.bf16.gmra.mxu0 %v308
  %v345 = vpop.f32.mrf.mxu0
  %v346 = vadd.f32 %v254, %v345
  %v347 = vpop.f32.mrf.mxu0
  %v348 = vadd.f32 %v256, %v347
  %349 = vmatmul.bf16.gmra.mxu0 %v310
  %v350 = vpop.f32.mrf.mxu0
  %v351 = vadd.f32 %v259, %v350
  %v352 = vpop.f32.mrf.mxu0
  %v353 = vadd.f32 %v261, %v352
  %354 = vmatmul.bf16.gmra.mxu0 %v312
  %v355 = vpop.f32.mrf.mxu0
  %v356 = vadd.f32 %v264, %v355
  %v357 = vpop.f32.mrf.mxu0
  %v358 = vadd.f32 %v266, %v357
  %359 = vmatmul.bf16.gmra.mxu0 %v314
  %v360 = vpop.f32.mrf.mxu0
  %v361 = vadd.f32 %v269, %v360
  %v362 = vpop.f32.mrf.mxu0
  %v363 = vadd.f32 %v271, %v362
  %364 = vmatmul.bf16.gmra.mxu0 %v316
  %v365 = vpop.f32.mrf.mxu0
  %v366 = vadd.f32 %v274, %v365
  %v367 = vpop.f32.mrf.mxu0
  %v368 = vadd.f32 %v276, %v367
  %369 = vmatmul.bf16.gmra.mxu0 %v318
  %v370 = vpop.f32.mrf.mxu0
  %v371 = vadd.f32 %v279, %v370
  %v372 = vpop.f32.mrf.mxu0
  %v373 = vadd.f32 %v281, %v372
  %374 = vmatmul.bf16.gmra.mxu0 %v320
  %v375 = vpop.f32.mrf.mxu0
  %v376 = vadd.f32 %v284, %v375
  %v377 = vpop.f32.mrf.mxu0
  %v378 = vadd.f32 %v286, %v377
  %379 = vmatmul.bf16.gmra.mxu0 %v322
  %v380 = vpop.f32.mrf.mxu0
  %v381 = vadd.f32 %v289, %v380
  %v382 = vpop.f32.mrf.mxu0
  %v383 = vadd.f32 %v291, %v382
  %384 = vmatmul.bf16.gmra.mxu0 %v324
  %v385 = vpop.f32.mrf.mxu0
  %v386 = vadd.f32 %v294, %v385
  %v387 = vpop.f32.mrf.mxu0
  %v388 = vadd.f32 %v296, %v387
  %389 = vdwg.mxu0
  %v390 = vld [vmem:[%s0 + $0x4] sm:$0xf]
  %v391 = vld [vmem:[%s0 + $0x8] sm:$0xf]
  %v392 = vld [vmem:[%s0 + $0xc] sm:$0xf]
  %v393 = vld [vmem:[%s0 + $0x10] sm:$0xf]
  %v394 = vld [vmem:[%s0 + $0x14] sm:$0xf]
  %v395 = vld [vmem:[%s0 + $0x18] sm:$0xf]
  %v396 = vld [vmem:[%s0 + $0x1c] sm:$0xf]
  %v397 = vld [vmem:[%s0 + $0x20] sm:$0xf]
  %v398 = vld [vmem:[%s0 + $0x24] sm:$0xf]
  %v399 = vld [vmem:[%s0 + $0x28] sm:$0xf]
  %v400 = vld [vmem:[%s0 + $0x2c] sm:$0xf]
  %v401 = vld [vmem:[%s0 + $0x30] sm:$0xf]
  %v402 = vld [vmem:[%s0 + $0x34] sm:$0xf]
  %v403 = vld [vmem:[%s0 + $0x38] sm:$0xf]
  %v404 = vld [vmem:[%s0 + $0x3c] sm:$0xf]
  %v405 = vld [vmem:[%s0 + $0x40] sm:$0xf]
  %v406 = vld [vmem:[%s0 + $0x44] sm:$0xf]
  %v407 = vld [vmem:[%s0 + $0x48] sm:$0xf]
  %v408 = vld [vmem:[%s0 + $0x4c] sm:$0xf]
  %v409 = vld [vmem:[%s0 + $0x50] sm:$0xf]
  %v410 = vld [vmem:[%s0 + $0x54] sm:$0xf]
  %v411 = vld [vmem:[%s0 + $0x58] sm:$0xf]
  %v412 = vld [vmem:[%s0 + $0x5c] sm:$0x1]
  %s413 = scalar_lea.vmem %s1, 16
  %v414 = vld [vmem:[%s413] sm:$0xf]
  %v415 = vld [vmem:[%s413 + $0x4] sm:$0xf]
  %v439 = vunpack.c.l.b16 %v390
  %v440 = vunpack.c.l.b16 %v391
  %v441 = vunpack.c.l.b16 %v392
  %v442 = vunpack.c.l.b16 %v393
  %v443 = vunpack.c.l.b16 %v394
  %v444 = vunpack.c.l.b16 %v395
  %v445 = vunpack.c.l.b16 %v396
  %v446 = vunpack.c.l.b16 %v397
  %v447 = vunpack.c.l.b16 %v398
  %v448 = vunpack.c.l.b16 %v399
  %v449 = vunpack.c.l.b16 %v400
  %v450 = vunpack.c.l.b16 %v401
  %v451 = vunpack.c.l.b16 %v402
  %v452 = vunpack.c.l.b16 %v403
  %v453 = vunpack.c.l.b16 %v404
  %v454 = vunpack.c.l.b16 %v405
  %v455 = vunpack.c.l.b16 %v406
  %v456 = vunpack.c.l.b16 %v407
  %v457 = vunpack.c.l.b16 %v408
  %v458 = vunpack.c.l.b16 %v409
  %v459 = vunpack.c.l.b16 %v410
  %v460 = vunpack.c.l.b16 %v411
  %v461 = vunpack.c.l.b16 %v412
  %v462 = vpack.c.b16 %v440, %v439
  %v463 = vpack.c.b16 %v442, %v441
  %v464 = vpack.c.b16 %v444, %v443
  %v465 = vpack.c.b16 %v446, %v445
  %v466 = vpack.c.b16 %v448, %v447
  %v467 = vpack.c.b16 %v450, %v449
  %v468 = vpack.c.b16 %v452, %v451
  %v469 = vpack.c.b16 %v454, %v453
  %v470 = vpack.c.b16 %v456, %v455
  %v471 = vpack.c.b16 %v458, %v457
  %v472 = vpack.c.b16 %v460, %v459
  %v473 = vpack.c.b16 %v461, %v461
  %v475 = vshrl.u32 %v462, 16
  %v477 = vshll.u32 %v462, 16
  %v479 = vrot.slane %v477, 1
  %v480 = vor.u32 %v475, %v479
  %v482 = vshll.u32 %v463, 16
  %v484 = vrot.slane %v482, 1
  %v485 = vsel %vm101, %v480, %v484
  %v486 = vshrl.u32 %v463, 16
  %v488 = vor.u32 %v486, %v484
  %v490 = vshll.u32 %v464, 16
  %v492 = vrot.slane %v490, 1
  %v493 = vsel %vm101, %v488, %v492
  %v494 = vshrl.u32 %v464, 16
  %v496 = vor.u32 %v494, %v492
  %v498 = vshll.u32 %v465, 16
  %v500 = vrot.slane %v498, 1
  %v501 = vsel %vm101, %v496, %v500
  %v502 = vshrl.u32 %v465, 16
  %v504 = vor.u32 %v502, %v500
  %v506 = vshll.u32 %v466, 16
  %v508 = vrot.slane %v506, 1
  %v509 = vsel %vm101, %v504, %v508
  %v510 = vshrl.u32 %v466, 16
  %v512 = vor.u32 %v510, %v508
  %v514 = vshll.u32 %v467, 16
  %v516 = vrot.slane %v514, 1
  %v517 = vsel %vm101, %v512, %v516
  %v518 = vshrl.u32 %v467, 16
  %v520 = vor.u32 %v518, %v516
  %v522 = vshll.u32 %v468, 16
  %v524 = vrot.slane %v522, 1
  %v525 = vsel %vm101, %v520, %v524
  %v526 = vshrl.u32 %v468, 16
  %v528 = vor.u32 %v526, %v524
  %v530 = vshll.u32 %v469, 16
  %v532 = vrot.slane %v530, 1
  %v533 = vsel %vm101, %v528, %v532
  %v534 = vshrl.u32 %v469, 16
  %v536 = vor.u32 %v534, %v532
  %v538 = vshll.u32 %v470, 16
  %v540 = vrot.slane %v538, 1
  %v541 = vsel %vm101, %v536, %v540
  %v542 = vshrl.u32 %v470, 16
  %v544 = vor.u32 %v542, %v540
  %v546 = vshll.u32 %v471, 16
  %v548 = vrot.slane %v546, 1
  %v549 = vsel %vm101, %v544, %v548
  %v550 = vshrl.u32 %v471, 16
  %v552 = vor.u32 %v550, %v548
  %v554 = vshll.u32 %v472, 16
  %v556 = vrot.slane %v554, 1
  %v557 = vsel %vm101, %v552, %v556
  %v558 = vshrl.u32 %v472, 16
  %v560 = vor.u32 %v558, %v556
  %v562 = vshll.u32 %v473, 16
  %v564 = vrot.slane %v562, 1
  %v565 = vsel %vm101, %v560, %v564
  %v568 = vunpack.c.l.b16 %v414
  %v569 = vunpack.c.l.b16 %v415
  %v570 = vpack.c.b16 %v569, %v568
  %v573 = vsel %vm200, %v485, 0
  %v576 = vsel %vm200, %v493, 0
  %v579 = vsel %vm200, %v501, 0
  %v582 = vsel %vm200, %v509, 0
  %v585 = vsel %vm200, %v517, 0
  %v588 = vsel %vm200, %v525, 0
  %v591 = vsel %vm200, %v533, 0
  %v594 = vsel %vm200, %v541, 0
  %v597 = vsel %vm200, %v549, 0
  %v600 = vsel %vm200, %v557, 0
  %v603 = vsel %vm200, %v565, 0
  %605 = vmatpush.bf16.msra.mxu0 0
  %606 = vmatpush.bf16.msra.mxu0 0
  %607 = vmatpush.bf16.msra.mxu0 0
  %608 = vmatpush.bf16.msra.mxu0 0
  %609 = vmatpush.bf16.msra.mxu0 0
  %610 = vmatpush.bf16.msra.mxu0 0
  %611 = vmatpush.bf16.msra.mxu0 0
  %612 = vmatpush.bf16.msra.mxu0 %v570
  %613 = vmatmul.bf16.gmra.mxu0 %v573
  %v614 = vpop.f32.mrf.mxu0
  %v615 = vadd.f32 0.0, %v614
  %v616 = vpop.f32.mrf.mxu0
  %v617 = vadd.f32 0.0, %v616
  %618 = vmatmul.bf16.gmra.mxu0 %v576
  %v619 = vpop.f32.mrf.mxu0
  %v620 = vadd.f32 0.0, %v619
  %v621 = vpop.f32.mrf.mxu0
  %v622 = vadd.f32 0.0, %v621
  %623 = vmatmul.bf16.gmra.mxu0 %v579
  %v624 = vpop.f32.mrf.mxu0
  %v625 = vadd.f32 0.0, %v624
  %v626 = vpop.f32.mrf.mxu0
  %v627 = vadd.f32 0.0, %v626
  %628 = vmatmul.bf16.gmra.mxu0 %v582
  %v629 = vpop.f32.mrf.mxu0
  %v630 = vadd.f32 0.0, %v629
  %v631 = vpop.f32.mrf.mxu0
  %v632 = vadd.f32 0.0, %v631
  %633 = vmatmul.bf16.gmra.mxu0 %v585
  %v634 = vpop.f32.mrf.mxu0
  %v635 = vadd.f32 0.0, %v634
  %v636 = vpop.f32.mrf.mxu0
  %v637 = vadd.f32 0.0, %v636
  %638 = vmatmul.bf16.gmra.mxu0 %v588
  %v639 = vpop.f32.mrf.mxu0
  %v640 = vadd.f32 0.0, %v639
  %v641 = vpop.f32.mrf.mxu0
  %v642 = vadd.f32 0.0, %v641
  %643 = vmatmul.bf16.gmra.mxu0 %v591
  %v644 = vpop.f32.mrf.mxu0
  %v645 = vadd.f32 0.0, %v644
  %v646 = vpop.f32.mrf.mxu0
  %v647 = vadd.f32 0.0, %v646
  %648 = vmatmul.bf16.gmra.mxu0 %v594
  %v649 = vpop.f32.mrf.mxu0
  %v650 = vadd.f32 0.0, %v649
  %v651 = vpop.f32.mrf.mxu0
  %v652 = vadd.f32 0.0, %v651
  %653 = vmatmul.bf16.gmra.mxu0 %v597
  %v654 = vpop.f32.mrf.mxu0
  %v655 = vadd.f32 0.0, %v654
  %v656 = vpop.f32.mrf.mxu0
  %v657 = vadd.f32 0.0, %v656
  %658 = vmatmul.bf16.gmra.mxu0 %v600
  %v659 = vpop.f32.mrf.mxu0
  %v660 = vadd.f32 0.0, %v659
  %v661 = vpop.f32.mrf.mxu0
  %v662 = vadd.f32 0.0, %v661
  %663 = vmatmul.bf16.gmra.mxu0 %v603
  %v664 = vpop.f32.mrf.mxu0
  %v665 = vadd.f32 0.0, %v664
  %v666 = vpop.f32.mrf.mxu0
  %v667 = vadd.f32 0.0, %v666
  %668 = vdwg.mxu0
  %v669 = vadd.f32 %v336, %v615
  %v670 = vadd.f32 %v338, %v617
  %v671 = vadd.f32 %v341, %v620
  %v672 = vadd.f32 %v343, %v622
  %v673 = vadd.f32 %v346, %v625
  %v674 = vadd.f32 %v348, %v627
  %v675 = vadd.f32 %v351, %v630
  %v676 = vadd.f32 %v353, %v632
  %v677 = vadd.f32 %v356, %v635
  %v678 = vadd.f32 %v358, %v637
  %v679 = vadd.f32 %v361, %v640
  %v680 = vadd.f32 %v363, %v642
  %v681 = vadd.f32 %v366, %v645
  %v682 = vadd.f32 %v368, %v647
  %v683 = vadd.f32 %v371, %v650
  %v684 = vadd.f32 %v373, %v652
  %v685 = vadd.f32 %v376, %v655
  %v686 = vadd.f32 %v378, %v657
  %v687 = vadd.f32 %v381, %v660
  %v688 = vadd.f32 %v383, %v662
  %v689 = vadd.f32 %v386, %v665
  %v690 = vadd.f32 %v388, %v667
  %v691 = vld [vmem:[%s0 + $0x4] sm:$0xe]
  %s692 = scalar_lea.vmem %s1, 24
  %v693 = vld [vmem:[%s692] sm:$0xf]
  %v694 = vld [vmem:[%s692 + $0x4] sm:$0xf]
  %v696 = vunpack.c.l.b16 %v691
  %v697 = vpack.c.b16 %v440, %v696
  %vm698 = vcmask 1046528
  %v699 = vrot.slane %v697, 1
  %v700 = vrot.slane %v463, 1
  %v701 = vsel %vm698, %v699, %v700
  %v702 = vrot.slane %v464, 1
  %v703 = vsel %vm698, %v700, %v702
  %v704 = vrot.slane %v465, 1
  %v705 = vsel %vm698, %v702, %v704
  %v706 = vrot.slane %v466, 1
  %v707 = vsel %vm698, %v704, %v706
  %v708 = vrot.slane %v467, 1
  %v709 = vsel %vm698, %v706, %v708
  %v710 = vrot.slane %v468, 1
  %v711 = vsel %vm698, %v708, %v710
  %v712 = vrot.slane %v469, 1
  %v713 = vsel %vm698, %v710, %v712
  %v714 = vrot.slane %v470, 1
  %v715 = vsel %vm698, %v712, %v714
  %v716 = vrot.slane %v471, 1
  %v717 = vsel %vm698, %v714, %v716
  %v718 = vrot.slane %v472, 1
  %v719 = vsel %vm698, %v716, %v718
  %v720 = vrot.slane %v473, 1
  %v721 = vsel %vm698, %v718, %v720
  %v724 = vunpack.c.l.b16 %v693
  %v725 = vunpack.c.l.b16 %v694
  %v726 = vpack.c.b16 %v725, %v724
  %v729 = vsel %vm200, %v701, 0
  %v732 = vsel %vm200, %v703, 0
  %v735 = vsel %vm200, %v705, 0
  %v738 = vsel %vm200, %v707, 0
  %v741 = vsel %vm200, %v709, 0
  %v744 = vsel %vm200, %v711, 0
  %v747 = vsel %vm200, %v713, 0
  %v750 = vsel %vm200, %v715, 0
  %v753 = vsel %vm200, %v717, 0
  %v756 = vsel %vm200, %v719, 0
  %v759 = vsel %vm200, %v721, 0
  %761 = vmatpush.bf16.msra.mxu0 0
  %762 = vmatpush.bf16.msra.mxu0 0
  %763 = vmatpush.bf16.msra.mxu0 0
  %764 = vmatpush.bf16.msra.mxu0 0
  %765 = vmatpush.bf16.msra.mxu0 0
  %766 = vmatpush.bf16.msra.mxu0 0
  %767 = vmatpush.bf16.msra.mxu0 0
  %768 = vmatpush.bf16.msra.mxu0 %v726
  %769 = vmatmul.bf16.gmra.mxu0 %v729
  %v770 = vpop.f32.mrf.mxu0
  %v771 = vadd.f32 0.0, %v770
  %v772 = vpop.f32.mrf.mxu0
  %v773 = vadd.f32 0.0, %v772
  %774 = vmatmul.bf16.gmra.mxu0 %v732
  %v775 = vpop.f32.mrf.mxu0
  %v776 = vadd.f32 0.0, %v775
  %v777 = vpop.f32.mrf.mxu0
  %v778 = vadd.f32 0.0, %v777
  %779 = vmatmul.bf16.gmra.mxu0 %v735
  %v780 = vpop.f32.mrf.mxu0
  %v781 = vadd.f32 0.0, %v780
  %v782 = vpop.f32.mrf.mxu0
  %v783 = vadd.f32 0.0, %v782
  %784 = vmatmul.bf16.gmra.mxu0 %v738
  %v785 = vpop.f32.mrf.mxu0
  %v786 = vadd.f32 0.0, %v785
  %v787 = vpop.f32.mrf.mxu0
  %v788 = vadd.f32 0.0, %v787
  %789 = vmatmul.bf16.gmra.mxu0 %v741
  %v790 = vpop.f32.mrf.mxu0
  %v791 = vadd.f32 0.0, %v790
  %v792 = vpop.f32.mrf.mxu0
  %v793 = vadd.f32 0.0, %v792
  %794 = vmatmul.bf16.gmra.mxu0 %v744
  %v795 = vpop.f32.mrf.mxu0
  %v796 = vadd.f32 0.0, %v795
  %v797 = vpop.f32.mrf.mxu0
  %v798 = vadd.f32 0.0, %v797
  %799 = vmatmul.bf16.gmra.mxu0 %v747
  %v800 = vpop.f32.mrf.mxu0
  %v801 = vadd.f32 0.0, %v800
  %v802 = vpop.f32.mrf.mxu0
  %v803 = vadd.f32 0.0, %v802
  %804 = vmatmul.bf16.gmra.mxu0 %v750
  %v805 = vpop.f32.mrf.mxu0
  %v806 = vadd.f32 0.0, %v805
  %v807 = vpop.f32.mrf.mxu0
  %v808 = vadd.f32 0.0, %v807
  %809 = vmatmul.bf16.gmra.mxu0 %v753
  %v810 = vpop.f32.mrf.mxu0
  %v811 = vadd.f32 0.0, %v810
  %v812 = vpop.f32.mrf.mxu0
  %v813 = vadd.f32 0.0, %v812
  %814 = vmatmul.bf16.gmra.mxu0 %v756
  %v815 = vpop.f32.mrf.mxu0
  %v816 = vadd.f32 0.0, %v815
  %v817 = vpop.f32.mrf.mxu0
  %v818 = vadd.f32 0.0, %v817
  %819 = vmatmul.bf16.gmra.mxu0 %v759
  %v820 = vpop.f32.mrf.mxu0
  %v821 = vadd.f32 0.0, %v820
  %v822 = vpop.f32.mrf.mxu0
  %v823 = vadd.f32 0.0, %v822
  %824 = vdwg.mxu0
  %v825 = vadd.f32 %v669, %v771
  %v826 = vadd.f32 %v670, %v773
  %v827 = vadd.f32 %v671, %v776
  %v828 = vadd.f32 %v672, %v778
  %v829 = vadd.f32 %v673, %v781
  %v830 = vadd.f32 %v674, %v783
  %v831 = vadd.f32 %v675, %v786
  %v832 = vadd.f32 %v676, %v788
  %v833 = vadd.f32 %v677, %v791
  %v834 = vadd.f32 %v678, %v793
  %v835 = vadd.f32 %v679, %v796
  %v836 = vadd.f32 %v680, %v798
  %v837 = vadd.f32 %v681, %v801
  %v838 = vadd.f32 %v682, %v803
  %v839 = vadd.f32 %v683, %v806
  %v840 = vadd.f32 %v684, %v808
  %v841 = vadd.f32 %v685, %v811
  %v842 = vadd.f32 %v686, %v813
  %v843 = vadd.f32 %v687, %v816
  %v844 = vadd.f32 %v688, %v818
  %v845 = vadd.f32 %v689, %v821
  %v846 = vadd.f32 %v690, %v823
  %v847 = vld [vmem:[%s2] sm:$0x1]
  %v849 = vperm.slane %v847, 0
  %v851 = vadd.f32 %v825, %v849
  %v852 = vadd.f32 %v826, %v849
  %v853 = vadd.f32 %v827, %v849
  %v854 = vadd.f32 %v828, %v849
  %v855 = vadd.f32 %v829, %v849
  %v856 = vadd.f32 %v830, %v849
  %v857 = vadd.f32 %v831, %v849
  %v858 = vadd.f32 %v832, %v849
  %v859 = vadd.f32 %v833, %v849
  %v860 = vadd.f32 %v834, %v849
  %v861 = vadd.f32 %v835, %v849
  %v862 = vadd.f32 %v836, %v849
  %v863 = vadd.f32 %v837, %v849
  %v864 = vadd.f32 %v838, %v849
  %v865 = vadd.f32 %v839, %v849
  %v866 = vadd.f32 %v840, %v849
  %v867 = vadd.f32 %v841, %v849
  %v868 = vadd.f32 %v842, %v849
  %v869 = vadd.f32 %v843, %v849
  %v870 = vadd.f32 %v844, %v849
  %v871 = vadd.f32 %v845, %v849
  %v872 = vadd.f32 %v846, %v849
  %v873 = vmax.f32 %v851, 0.0
  %v874 = vmax.f32 %v852, 0.0
  %v875 = vmax.f32 %v853, 0.0
  %v876 = vmax.f32 %v854, 0.0
  %v877 = vmax.f32 %v855, 0.0
  %v878 = vmax.f32 %v856, 0.0
  %v879 = vmax.f32 %v857, 0.0
  %v880 = vmax.f32 %v858, 0.0
  %v881 = vmax.f32 %v859, 0.0
  %v882 = vmax.f32 %v860, 0.0
  %v883 = vmax.f32 %v861, 0.0
  %v884 = vmax.f32 %v862, 0.0
  %v885 = vmax.f32 %v863, 0.0
  %v886 = vmax.f32 %v864, 0.0
  %v887 = vmax.f32 %v865, 0.0
  %v888 = vmax.f32 %v866, 0.0
  %v889 = vmax.f32 %v867, 0.0
  %v890 = vmax.f32 %v868, 0.0
  %v891 = vmax.f32 %v869, 0.0
  %v892 = vmax.f32 %v870, 0.0
  %v893 = vmax.f32 %v871, 0.0
  %v894 = vmax.f32 %v872, 0.0
  %v895 = vpack.c.bf16 %v873, %v873
  %v896 = vpack.c.bf16 %v874, %v874
  %v897 = vpack.c.bf16 %v875, %v875
  %v898 = vpack.c.bf16 %v876, %v876
  %v899 = vpack.c.bf16 %v877, %v877
  %v900 = vpack.c.bf16 %v878, %v878
  %v901 = vpack.c.bf16 %v879, %v879
  %v902 = vpack.c.bf16 %v880, %v880
  %v903 = vpack.c.bf16 %v881, %v881
  %v904 = vpack.c.bf16 %v882, %v882
  %v905 = vpack.c.bf16 %v883, %v883
  %v906 = vpack.c.bf16 %v884, %v884
  %v907 = vpack.c.bf16 %v885, %v885
  %v908 = vpack.c.bf16 %v886, %v886
  %v909 = vpack.c.bf16 %v887, %v887
  %v910 = vpack.c.bf16 %v888, %v888
  %v911 = vpack.c.bf16 %v889, %v889
  %v912 = vpack.c.bf16 %v890, %v890
  %v913 = vpack.c.bf16 %v891, %v891
  %v914 = vpack.c.bf16 %v892, %v892
  %v915 = vpack.c.bf16 %v893, %v893
  %v916 = vpack.c.bf16 %v894, %v894
  %917 = vst [vmem:[%s3] sm:$0xf] %v895
  %918 = vst [vmem:[%s3 + $0x4] sm:$0xf] %v896
  %919 = vst [vmem:[%s3 + $0x8] sm:$0xf] %v897
  %920 = vst [vmem:[%s3 + $0xc] sm:$0xf] %v898
  %921 = vst [vmem:[%s3 + $0x10] sm:$0xf] %v899
  %922 = vst [vmem:[%s3 + $0x14] sm:$0xf] %v900
  %923 = vst [vmem:[%s3 + $0x18] sm:$0xf] %v901
  %924 = vst [vmem:[%s3 + $0x1c] sm:$0xf] %v902
  %925 = vst [vmem:[%s3 + $0x20] sm:$0xf] %v903
  %926 = vst [vmem:[%s3 + $0x24] sm:$0xf] %v904
  %927 = vst [vmem:[%s3 + $0x28] sm:$0xf] %v905
  %928 = vst [vmem:[%s3 + $0x2c] sm:$0xf] %v906
  %929 = vst [vmem:[%s3 + $0x30] sm:$0xf] %v907
  %930 = vst [vmem:[%s3 + $0x34] sm:$0xf] %v908
  %931 = vst [vmem:[%s3 + $0x38] sm:$0xf] %v909
  %932 = vst [vmem:[%s3 + $0x3c] sm:$0xf] %v910
  %933 = vst [vmem:[%s3 + $0x40] sm:$0xf] %v911
  %934 = vst [vmem:[%s3 + $0x44] sm:$0xf] %v912
  %935 = vst [vmem:[%s3 + $0x48] sm:$0xf] %v913
  %936 = vst [vmem:[%s3 + $0x4c] sm:$0xf] %v914
  %937 = vst [vmem:[%s3 + $0x50] sm:$0xf] %v915
  %938 = vst [vmem:[%s3 + $0x54] sm:$0xf] %v916
  // Predicated region
  $region14: #{autoencoder_forward.8} parent=0 // pred_check
    _
  $region15: #{autoencoder_forward.8} parent=0 // pred_check_branch
    %940 = sbr.rel (0) target = $region17
  $region16: #{autoencoder_forward.8} parent=0 // pred_region
    _
  $region17: #{autoencoder_forward.8} parent=0 // pred_fallthru
    _
  // Predicated region
  $region18: #{autoencoder_forward.8} parent=0 // pred_check
    _
  $region19: #{autoencoder_forward.8} parent=0 // pred_check_branch
    %942 = sbr.rel (0) target = $region21
  $region20: #{autoencoder_forward.8} parent=0 // pred_region
    _
  $region21: #{autoencoder_forward.8} parent=0 // pred_fallthru
    _

// kernel: autoencoder_forward.11
$region0: #{autoencoder_forward.11}
  #allocation0 [shape = 'u32[]', space=smem, size = 0x4, offset = 0x4, fixed_abs, tag = 'smem constant byte address 0x4 - core index']
  #allocation1 [shape = 'u32[72,128]{1,0:T(1,128)}', space=vmem, size = 0x9000, scoped, tag = 'internal scratch']
  %s0 = inlined_call_operand.vmem [shape: bf16[24,192], index: 0, kind: input, shape index: {}]
  %s1 = inlined_call_operand.vmem [shape: bf16[4,192,128], index: 1, kind: input, shape index: {}]
  %s2 = inlined_call_operand.vmem [shape: f32[1,128], index: 2, kind: input, shape index: {}]
  %s3 = inlined_call_operand.vmem [shape: bf16[16,128], index: 3, kind: output, shape index: {}]
  %s4 = sld [smem:[#allocation0]]
  $region22: #{autoencoder_forward.11} parent=0
    _
  %s6 = ssub.s32 1, %s4
  %s7 = scalar_select 0, %s6, %s4
  // Predicated region
  $region2: #{autoencoder_forward.11} parent=0 // pred_check
    _
  $region3: #{autoencoder_forward.11} parent=0 // pred_check_branch
    %9 = sbr.rel (0) target = $region5
  $region4: #{autoencoder_forward.11} parent=0 // pred_region
    _
  $region5: #{autoencoder_forward.11} parent=0 // pred_fallthru
    _
  // Predicated region
  $region6: #{autoencoder_forward.11} parent=0 // pred_check
    _
  $region7: #{autoencoder_forward.11} parent=0 // pred_check_branch
    %11 = sbr.rel (0) target = $region9
  $region8: #{autoencoder_forward.11} parent=0 // pred_region
    _
  $region9: #{autoencoder_forward.11} parent=0 // pred_fallthru
    _
  // Predicated region
  $region10: #{autoencoder_forward.11} parent=0 // pred_check
    _
  $region11: #{autoencoder_forward.11} parent=0 // pred_check_branch
    %13 = sbr.rel (0) target = $region13
  $region12: #{autoencoder_forward.11} parent=0 // pred_region
    _
  $region13: #{autoencoder_forward.11} parent=0 // pred_fallthru
    _
  %v15 = vld [vmem:[%s0] sm:$0xff]
  %v16 = vld [vmem:[%s0 + $0x8] sm:$0xff]
  %v17 = vld [vmem:[%s1] sm:$0xf]
  %v18 = vld [vmem:[%s1 + $0x4] sm:$0xf]
  %v19 = vld [vmem:[%s1 + $0x8] sm:$0xf]
  %v20 = vld [vmem:[%s1 + $0xc] sm:$0xf]
  %v21 = vld [vmem:[%s1 + $0x10] sm:$0xf]
  %v22 = vld [vmem:[%s1 + $0x14] sm:$0xf]
  %v23 = vld [vmem:[%s1 + $0x18] sm:$0xf]
  %v24 = vld [vmem:[%s1 + $0x1c] sm:$0xf]
  %v25 = vld [vmem:[%s1 + $0x20] sm:$0xf]
  %v26 = vld [vmem:[%s1 + $0x24] sm:$0xf]
  %v27 = vld [vmem:[%s1 + $0x28] sm:$0xf]
  %v28 = vld [vmem:[%s1 + $0x2c] sm:$0xf]
  %v29 = vld [vmem:[%s1 + $0x30] sm:$0xf]
  %v30 = vld [vmem:[%s1 + $0x34] sm:$0xf]
  %v31 = vld [vmem:[%s1 + $0x38] sm:$0xf]
  %v32 = vld [vmem:[%s1 + $0x3c] sm:$0xf]
  %v33 = vld [vmem:[%s1 + $0x40] sm:$0xf]
  %v34 = vld [vmem:[%s1 + $0x44] sm:$0xf]
  %v35 = vld [vmem:[%s1 + $0x48] sm:$0xf]
  %v36 = vld [vmem:[%s1 + $0x4c] sm:$0xf]
  %v37 = vld [vmem:[%s1 + $0x50] sm:$0xf]
  %v38 = vld [vmem:[%s1 + $0x54] sm:$0xf]
  %v39 = vld [vmem:[%s1 + $0x58] sm:$0xf]
  %v40 = vld [vmem:[%s1 + $0x5c] sm:$0xf]
  %v41 = vld [vmem:[%s0 + $0x10] sm:$0x11]
  %s42 = scalar_lea.vmem %s1, 96
  %v43 = vld [vmem:[%s42] sm:$0xf]
  %v44 = vld [vmem:[%s42 + $0x4] sm:$0xf]
  %v45 = vld [vmem:[%s42 + $0x8] sm:$0xf]
  %v46 = vld [vmem:[%s42 + $0xc] sm:$0xf]
  %v47 = vld [vmem:[%s42 + $0x10] sm:$0xf]
  %v48 = vld [vmem:[%s42 + $0x14] sm:$0xf]
  %v49 = vld [vmem:[%s42 + $0x18] sm:$0xf]
  %v50 = vld [vmem:[%s42 + $0x1c] sm:$0xf]
  %v51 = vld [vmem:[%s42 + $0x20] sm:$0xf]
  %v52 = vld [vmem:[%s42 + $0x24] sm:$0xf]
  %v53 = vld [vmem:[%s42 + $0x28] sm:$0xf]
  %v54 = vld [vmem:[%s42 + $0x2c] sm:$0xf]
  %v55 = vld [vmem:[%s42 + $0x30] sm:$0xf]
  %v56 = vld [vmem:[%s42 + $0x34] sm:$0xf]
  %v57 = vld [vmem:[%s42 + $0x38] sm:$0xf]
  %v58 = vld [vmem:[%s42 + $0x3c] sm:$0xf]
  %v59 = vld [vmem:[%s42 + $0x40] sm:$0xf]
  %v60 = vld [vmem:[%s42 + $0x44] sm:$0xf]
  %v61 = vld [vmem:[%s42 + $0x48] sm:$0xf]
  %v62 = vld [vmem:[%s42 + $0x4c] sm:$0xf]
  %v63 = vld [vmem:[%s42 + $0x50] sm:$0xf]
  %v64 = vld [vmem:[%s42 + $0x54] sm:$0xf]
  %v65 = vld [vmem:[%s42 + $0x58] sm:$0xf]
  %v66 = vld [vmem:[%s42 + $0x5c] sm:$0xf]
  %v70 = vunpack.c.l.b16 %v15
  %v71 = vunpack.c.h.b16 %v15
  %v72 = vunpack.c.l.b16 %v16
  %v73 = vunpack.c.h.b16 %v16
  %v74 = vunpack.c.l.b16 %v41
  %v75 = vunpack.c.h.b16 %v41
  %v76 = vpack.c.b16 %v72, %v70
  %v77 = vpack.c.b16 %v73, %v71
  %v78 = vpack.c.b16 %v74, %v74
  %v79 = vpack.c.b16 %v75, %v75
  %vm80 = vsmask.f32 7424
  %v82 = vshrl.u32 %v76, 16
  %v84 = vshll.u32 %v76, 16
  %v86 = vrot.slane %v84, 1
  %v87 = vor.u32 %v82, %v86
  %v89 = vshll.u32 %v78, 16
  %v91 = vrot.slane %v89, 1
  %v92 = vsel %vm80, %v87, %v91
  %v94 = vshrl.u32 %v77, 16
  %v96 = vshll.u32 %v77, 16
  %v98 = vrot.slane %v96, 1
  %v99 = vor.u32 %v94, %v98
  %v101 = vshll.u32 %v79, 16
  %v103 = vrot.slane %v101, 1
  %v104 = vsel %vm80, %v99, %v103
  %v130 = vunpack.c.l.b16 %v43
  %v131 = vunpack.c.l.b16 %v44
  %v132 = vunpack.c.l.b16 %v45
  %v133 = vunpack.c.l.b16 %v46
  %v134 = vunpack.c.l.b16 %v47
  %v135 = vunpack.c.l.b16 %v48
  %v136 = vunpack.c.l.b16 %v49
  %v137 = vunpack.c.l.b16 %v50
  %v138 = vunpack.c.l.b16 %v51
  %v139 = vunpack.c.l.b16 %v52
  %v140 = vunpack.c.l.b16 %v53
  %v141 = vunpack.c.l.b16 %v54
  %v142 = vunpack.c.l.b16 %v55
  %v143 = vunpack.c.l.b16 %v56
  %v144 = vunpack.c.l.b16 %v57
  %v145 = vunpack.c.l.b16 %v58
  %v146 = vunpack.c.l.b16 %v59
  %v147 = vunpack.c.l.b16 %v60
  %v148 = vunpack.c.l.b16 %v61
  %v149 = vunpack.c.l.b16 %v62
  %v150 = vunpack.c.l.b16 %v63
  %v151 = vunpack.c.l.b16 %v64
  %v152 = vunpack.c.l.b16 %v65
  %v153 = vunpack.c.l.b16 %v66
  %v154 = vpack.c.b16 %v131, %v130
  %v155 = vpack.c.b16 %v133, %v132
  %v156 = vpack.c.b16 %v135, %v134
  %v157 = vpack.c.b16 %v137, %v136
  %v158 = vpack.c.b16 %v139, %v138
  %v159 = vpack.c.b16 %v141, %v140
  %v160 = vpack.c.b16 %v143, %v142
  %v161 = vpack.c.b16 %v145, %v144
  %v162 = vpack.c.b16 %v147, %v146
  %v163 = vpack.c.b16 %v149, %v148
  %v164 = vpack.c.b16 %v151, %v150
  %v165 = vpack.c.b16 %v153, %v152
  %vm178 = vcmask 523264
  %v180 = vsel %vm178, %v104, 0
  %182 = vmatpush.bf16.msra.mxu0 %v161
  %183 = vmatpush.bf16.msra.mxu0 %v160
  %184 = vmatpush.bf16.msra.mxu0 %v159
  %185 = vmatpush.bf16.msra.mxu0 %v158
  %186 = vmatpush.bf16.msra.mxu0 %v157
  %187 = vmatpush.bf16.msra.mxu0 %v156
  %188 = vmatpush.bf16.msra.mxu0 %v155
  %189 = vmatpush.bf16.msra.mxu0 %v154
  %190 = vmatmul.bf16.gmra.mxu0 %v92
  %v191 = vpop.f32.mrf.mxu0
  %v192 = vadd.f32 0.0, %v191
  %v193 = vpop.f32.mrf.mxu0
  %v194 = vadd.f32 0.0, %v193
  %195 = vdwg.mxu0
  %196 = vmatpush.bf16.msra.mxu0 0
  %197 = vmatpush.bf16.msra.mxu0 0
  %198 = vmatpush.bf16.msra.mxu0 0
  %199 = vmatpush.bf16.msra.mxu0 0
  %200 = vmatpush.bf16.msra.mxu0 %v165
  %201 = vmatpush.bf16.msra.mxu0 %v164
  %202 = vmatpush.bf16.msra.mxu0 %v163
  %203 = vmatpush.bf16.msra.mxu0 %v162
  %204 = vmatmul.bf16.gmra.mxu0 %v180
  %v205 = vpop.f32.mrf.mxu0
  %v206 = vadd.f32 %v192, %v205
  %v207 = vpop.f32.mrf.mxu0
  %v208 = vadd.f32 %v194, %v207
  %209 = vdwg.mxu0
  %v235 = vunpack.c.l.b16 %v17
  %v236 = vunpack.c.l.b16 %v18
  %v237 = vunpack.c.l.b16 %v19
  %v238 = vunpack.c.l.b16 %v20
  %v239 = vunpack.c.l.b16 %v21
  %v240 = vunpack.c.l.b16 %v22
  %v241 = vunpack.c.l.b16 %v23
  %v242 = vunpack.c.l.b16 %v24
  %v243 = vunpack.c.l.b16 %v25
  %v244 = vunpack.c.l.b16 %v26
  %v245 = vunpack.c.l.b16 %v27
  %v246 = vunpack.c.l.b16 %v28
  %v247 = vunpack.c.l.b16 %v29
  %v248 = vunpack.c.l.b16 %v30
  %v249 = vunpack.c.l.b16 %v31
  %v250 = vunpack.c.l.b16 %v32
  %v251 = vunpack.c.l.b16 %v33
  %v252 = vunpack.c.l.b16 %v34
  %v253 = vunpack.c.l.b16 %v35
  %v254 = vunpack.c.l.b16 %v36
  %v255 = vunpack.c.l.b16 %v37
  %v256 = vunpack.c.l.b16 %v38
  %v257 = vunpack.c.l.b16 %v39
  %v258 = vunpack.c.l.b16 %v40
  %v259 = vpack.c.b16 %v236, %v235
  %v260 = vpack.c.b16 %v238, %v237
  %v261 = vpack.c.b16 %v240, %v239
  %v262 = vpack.c.b16 %v242, %v241
  %v263 = vpack.c.b16 %v244, %v243
  %v264 = vpack.c.b16 %v246, %v245
  %v265 = vpack.c.b16 %v248, %v247
  %v266 = vpack.c.b16 %v250, %v249
  %v267 = vpack.c.b16 %v252, %v251
  %v268 = vpack.c.b16 %v254, %v253
  %v269 = vpack.c.b16 %v256, %v255
  %v270 = vpack.c.b16 %v258, %v257
  %v283 = vsel %vm178, %v77, 0
  %285 = vmatpush.bf16.msra.mxu0 %v266
  %286 = vmatpush.bf16.msra.mxu0 %v265
  %287 = vmatpush.bf16.msra.mxu0 %v264
  %288 = vmatpush.bf16.msra.mxu0 %v263
  %289 = vmatpush.bf16.msra.mxu0 %v262
  %290 = vmatpush.bf16.msra.mxu0 %v261
  %291 = vmatpush.bf16.msra.mxu0 %v260
  %292 = vmatpush.bf16.msra.mxu0 %v259
  %293 = vmatmul.bf16.gmra.mxu0 %v76
  %v294 = vpop.f32.mrf.mxu0
  %v295 = vadd.f32 %v206, %v294
  %v296 = vpop.f32.mrf.mxu0
  %v297 = vadd.f32 %v208, %v296
  %298 = vdwg.mxu0
  %299 = vmatpush.bf16.msra.mxu0 0
  %300 = vmatpush.bf16.msra.mxu0 0
  %301 = vmatpush.bf16.msra.mxu0 0
  %302 = vmatpush.bf16.msra.mxu0 0
  %303 = vmatpush.bf16.msra.mxu0 %v270
  %304 = vmatpush.bf16.msra.mxu0 %v269
  %305 = vmatpush.bf16.msra.mxu0 %v268
  %306 = vmatpush.bf16.msra.mxu0 %v267
  %307 = vmatmul.bf16.gmra.mxu0 %v283
  %v308 = vpop.f32.mrf.mxu0
  %v309 = vadd.f32 %v295, %v308
  %v310 = vpop.f32.mrf.mxu0
  %v311 = vadd.f32 %v297, %v310
  %312 = vdwg.mxu0
  %v313 = vld [vmem:[%s0] sm:$0xee]
  %s314 = scalar_lea.vmem %s1, 192
  %v315 = vld [vmem:[%s314] sm:$0xf]
  %v316 = vld [vmem:[%s314 + $0x4] sm:$0xf]
  %v317 = vld [vmem:[%s314 + $0x8] sm:$0xf]
  %v318 = vld [vmem:[%s314 + $0xc] sm:$0xf]
  %v319 = vld [vmem:[%s314 + $0x10] sm:$0xf]
  %v320 = vld [vmem:[%s314 + $0x14] sm:$0xf]
  %v321 = vld [vmem:[%s314 + $0x18] sm:$0xf]
  %v322 = vld [vmem:[%s314 + $0x1c] sm:$0xf]
  %v323 = vld [vmem:[%s314 + $0x20] sm:$0xf]
  %v324 = vld [vmem:[%s314 + $0x24] sm:$0xf]
  %v325 = vld [vmem:[%s314 + $0x28] sm:$0xf]
  %v326 = vld [vmem:[%s314 + $0x2c] sm:$0xf]
  %v327 = vld [vmem:[%s314 + $0x30] sm:$0xf]
  %v328 = vld [vmem:[%s314 + $0x34] sm:$0xf]
  %v329 = vld [vmem:[%s314 + $0x38] sm:$0xf]
  %v330 = vld [vmem:[%s314 + $0x3c] sm:$0xf]
  %v331 = vld [vmem:[%s314 + $0x40] sm:$0xf]
  %v332 = vld [vmem:[%s314 + $0x44] sm:$0xf]
  %v333 = vld [vmem:[%s314 + $0x48] sm:$0xf]
  %v334 = vld [vmem:[%s314 + $0x4c] sm:$0xf]
  %v335 = vld [vmem:[%s314 + $0x50] sm:$0xf]
  %v336 = vld [vmem:[%s314 + $0x54] sm:$0xf]
  %v337 = vld [vmem:[%s314 + $0x58] sm:$0xf]
  %v338 = vld [vmem:[%s314 + $0x5c] sm:$0xf]
  %v340 = vunpack.c.l.b16 %v313
  %v341 = vunpack.c.h.b16 %v313
  %v342 = vpack.c.b16 %v72, %v340
  %v343 = vpack.c.b16 %v73, %v341
  %vm344 = vcmask 1046528
  %v345 = vrot.slane %v342, 1
  %v346 = vrot.slane %v78, 1
  %v347 = vsel %vm344, %v345, %v346
  %v348 = vrot.slane %v343, 1
  %v349 = vrot.slane %v79, 1
  %v350 = vsel %vm344, %v348, %v349
  %v376 = vunpack.c.l.b16 %v315
  %v377 = vunpack.c.l.b16 %v316
  %v378 = vunpack.c.l.b16 %v317
  %v379 = vunpack.c.l.b16 %v318
  %v380 = vunpack.c.l.b16 %v319
  %v381 = vunpack.c.l.b16 %v320
  %v382 = vunpack.c.l.b16 %v321
  %v383 = vunpack.c.l.b16 %v322
  %v384 = vunpack.c.l.b16 %v323
  %v385 = vunpack.c.l.b16 %v324
  %v386 = vunpack.c.l.b16 %v325
  %v387 = vunpack.c.l.b16 %v326
  %v388 = vunpack.c.l.b16 %v327
  %v389 = vunpack.c.l.b16 %v328
  %v390 = vunpack.c.l.b16 %v329
  %v391 = vunpack.c.l.b16 %v330
  %v392 = vunpack.c.l.b16 %v331
  %v393 = vunpack.c.l.b16 %v332
  %v394 = vunpack.c.l.b16 %v333
  %v395 = vunpack.c.l.b16 %v334
  %v396 = vunpack.c.l.b16 %v335
  %v397 = vunpack.c.l.b16 %v336
  %v398 = vunpack.c.l.b16 %v337
  %v399 = vunpack.c.l.b16 %v338
  %v400 = vpack.c.b16 %v377, %v376
  %v401 = vpack.c.b16 %v379, %v378
  %v402 = vpack.c.b16 %v381, %v380
  %v403 = vpack.c.b16 %v383, %v382
  %v404 = vpack.c.b16 %v385, %v384
  %v405 = vpack.c.b16 %v387, %v386
  %v406 = vpack.c.b16 %v389, %v388
  %v407 = vpack.c.b16 %v391, %v390
  %v408 = vpack.c.b16 %v393, %v392
  %v409 = vpack.c.b16 %v395, %v394
  %v410 = vpack.c.b16 %v397, %v396
  %v411 = vpack.c.b16 %v399, %v398
  %v425 = vsel %vm178, %v350, 0
  %427 = vmatpush.bf16.msra.mxu0 %v407
  %428 = vmatpush.bf16.msra.mxu0 %v406
  %429 = vmatpush.bf16.msra.mxu0 %v405
  %430 = vmatpush.bf16.msra.mxu0 %v404
  %431 = vmatpush.bf16.msra.mxu0 %v403
  %432 = vmatpush.bf16.msra.mxu0 %v402
  %433 = vmatpush.bf16.msra.mxu0 %v401
  %434 = vmatpush.bf16.msra.mxu0 %v400
  %435 = vmatmul.bf16.gmra.mxu0 %v347
  %v436 = vpop.f32.mrf.mxu0
  %v437 = vadd.f32 0.0, %v436
  %v438 = vpop.f32.mrf.mxu0
  %v439 = vadd.f32 0.0, %v438
  %440 = vdwg.mxu0
  %441 = vmatpush.bf16.msra.mxu0 0
  %442 = vmatpush.bf16.msra.mxu0 0
  %443 = vmatpush.bf16.msra.mxu0 0
  %444 = vmatpush.bf16.msra.mxu0 0
  %445 = vmatpush.bf16.msra.mxu0 %v411
  %446 = vmatpush.bf16.msra.mxu0 %v410
  %447 = vmatpush.bf16.msra.mxu0 %v409
  %448 = vmatpush.bf16.msra.mxu0 %v408
  %449 = vmatmul.bf16.gmra.mxu0 %v425
  %v450 = vpop.f32.mrf.mxu0
  %v451 = vadd.f32 %v437, %v450
  %v452 = vpop.f32.mrf.mxu0
  %v453 = vadd.f32 %v439, %v452
  %454 = vdwg.mxu0
  %v455 = vadd.f32 %v309, %v451
  %v456 = vadd.f32 %v311, %v453
  %v457 = vld [vmem:[%s0 + $0x10] sm:$0x33]
  %s458 = scalar_lea.vmem %s1, 288
  %v459 = vld [vmem:[%s458] sm:$0xf]
  %v460 = vld [vmem:[%s458 + $0x4] sm:$0xf]
  %v461 = vld [vmem:[%s458 + $0x8] sm:$0xf]
  %v462 = vld [vmem:[%s458 + $0xc] sm:$0xf]
  %v463 = vld [vmem:[%s458 + $0x10] sm:$0xf]
  %v464 = vld [vmem:[%s458 + $0x14] sm:$0xf]
  %v465 = vld [vmem:[%s458 + $0x18] sm:$0xf]
  %v466 = vld [vmem:[%s458 + $0x1c] sm:$0xf]
  %v467 = vld [vmem:[%s458 + $0x20] sm:$0xf]
  %v468 = vld [vmem:[%s458 + $0x24] sm:$0xf]
  %v469 = vld [vmem:[%s458 + $0x28] sm:$0xf]
  %v470 = vld [vmem:[%s458 + $0x2c] sm:$0xf]
  %v471 = vld [vmem:[%s458 + $0x30] sm:$0xf]
  %v472 = vld [vmem:[%s458 + $0x34] sm:$0xf]
  %v473 = vld [vmem:[%s458 + $0x38] sm:$0xf]
  %v474 = vld [vmem:[%s458 + $0x3c] sm:$0xf]
  %v475 = vld [vmem:[%s458 + $0x40] sm:$0xf]
  %v476 = vld [vmem:[%s458 + $0x44] sm:$0xf]
  %v477 = vld [vmem:[%s458 + $0x48] sm:$0xf]
  %v478 = vld [vmem:[%s458 + $0x4c] sm:$0xf]
  %v479 = vld [vmem:[%s458 + $0x50] sm:$0xf]
  %v480 = vld [vmem:[%s458 + $0x54] sm:$0xf]
  %v481 = vld [vmem:[%s458 + $0x58] sm:$0xf]
  %v482 = vld [vmem:[%s458 + $0x5c] sm:$0xf]
  %v484 = vunpack.c.l.b16 %v457
  %v485 = vunpack.c.h.b16 %v457
  %v486 = vpack.c.b16 %v484, %v484
  %v487 = vpack.c.b16 %v485, %v485
  %vm488 = vsmask.f32 6400
  %v490 = vshrl.u32 %v342, 16
  %v492 = vrot.slane %v490, 1
  %v493 = vshll.u32 %v342, 16
  %v495 = vrot.slane %v493, 2
  %v496 = vor.u32 %v492, %v495
  %v498 = vshrl.u32 %v486, 16
  %v500 = vrot.slane %v498, 1
  %v501 = vshll.u32 %v486, 16
  %v503 = vrot.slane %v501, 2
  %v504 = vor.u32 %v500, %v503
  %v505 = vsel %vm488, %v496, %v504
  %v507 = vshrl.u32 %v343, 16
  %v509 = vrot.slane %v507, 1
  %v510 = vshll.u32 %v343, 16
  %v512 = vrot.slane %v510, 2
  %v513 = vor.u32 %v509, %v512
  %v515 = vshrl.u32 %v487, 16
  %v517 = vrot.slane %v515, 1
  %v518 = vshll.u32 %v487, 16
  %v520 = vrot.slane %v518, 2
  %v521 = vor.u32 %v517, %v520
  %v522 = vsel %vm488, %v513, %v521
  %v548 = vunpack.c.l.b16 %v459
  %v549 = vunpack.c.l.b16 %v460
  %v550 = vunpack.c.l.b16 %v461
  %v551 = vunpack.c.l.b16 %v462
  %v552 = vunpack.c.l.b16 %v463
  %v553 = vunpack.c.l.b16 %v464
  %v554 = vunpack.c.l.b16 %v465
  %v555 = vunpack.c.l.b16 %v466
  %v556 = vunpack.c.l.b16 %v467
  %v557 = vunpack.c.l.b16 %v468
  %v558 = vunpack.c.l.b16 %v469
  %v559 = vunpack.c.l.b16 %v470
  %v560 = vunpack.c.l.b16 %v471
  %v561 = vunpack.c.l.b16 %v472
  %v562 = vunpack.c.l.b16 %v473
  %v563 = vunpack.c.l.b16 %v474
  %v564 = vunpack.c.l.b16 %v475
  %v565 = vunpack.c.l.b16 %v476
  %v566 = vunpack.c.l.b16 %v477
  %v567 = vunpack.c.l.b16 %v478
  %v568 = vunpack.c.l.b16 %v479
  %v569 = vunpack.c.l.b16 %v480
  %v570 = vunpack.c.l.b16 %v481
  %v571 = vunpack.c.l.b16 %v482
  %v572 = vpack.c.b16 %v549, %v548
  %v573 = vpack.c.b16 %v551, %v550
  %v574 = vpack.c.b16 %v553, %v552
  %v575 = vpack.c.b16 %v555, %v554
  %v576 = vpack.c.b16 %v557, %v556
  %v577 = vpack.c.b16 %v559, %v558
  %v578 = vpack.c.b16 %v561, %v560
  %v579 = vpack.c.b16 %v563, %v562
  %v580 = vpack.c.b16 %v565, %v564
  %v581 = vpack.c.b16 %v567, %v566
  %v582 = vpack.c.b16 %v569, %v568
  %v583 = vpack.c.b16 %v571, %v570
  %v597 = vsel %vm178, %v522, 0
  %599 = vmatpush.bf16.msra.mxu0 %v579
  %600 = vmatpush.bf16.msra.mxu0 %v578
  %601 = vmatpush.bf16.msra.mxu0 %v577
  %602 = vmatpush.bf16.msra.mxu0 %v576
  %603 = vmatpush.bf16.msra.mxu0 %v575
  %604 = vmatpush.bf16.msra.mxu0 %v574
  %605 = vmatpush.bf16.msra.mxu0 %v573
  %606 = vmatpush.bf16.msra.mxu0 %v572
  %607 = vmatmul.bf16.gmra.mxu0 %v505
  %v608 = vpop.f32.mrf.mxu0
  %v609 = vadd.f32 0.0, %v608
  %v610 = vpop.f32.mrf.mxu0
  %v611 = vadd.f32 0.0, %v610
  %612 = vdwg.mxu0
  %613 = vmatpush.bf16.msra.mxu0 0
  %614 = vmatpush.bf16.msra.mxu0 0
  %615 = vmatpush.bf16.msra.mxu0 0
  %616 = vmatpush.bf16.msra.mxu0 0
  %617 = vmatpush.bf16.msra.mxu0 %v583
  %618 = vmatpush.bf16.msra.mxu0 %v582
  %619 = vmatpush.bf16.msra.mxu0 %v581
  %620 = vmatpush.bf16.msra.mxu0 %v580
  %621 = vmatmul.bf16.gmra.mxu0 %v597
  %v622 = vpop.f32.mrf.mxu0
  %v623 = vadd.f32 %v609, %v622
  %v624 = vpop.f32.mrf.mxu0
  %v625 = vadd.f32 %v611, %v624
  %626 = vdwg.mxu0
  %v627 = vadd.f32 %v455, %v623
  %v628 = vadd.f32 %v456, %v625
  %v629 = vld [vmem:[%s2] sm:$0x1]
  %v631 = vperm.slane %v629, 0
  %v633 = vadd.f32 %v627, %v631
  %v634 = vadd.f32 %v628, %v631
  %v635 = vmax.f32 %v633, 0.0
  %v636 = vmax.f32 %v634, 0.0
  %v637 = vpack.c.bf16 %v635, %v635
  %v638 = vpack.c.bf16 %v636, %v636
  %639 = vst [vmem:[%s3] sm:$0xf] %v637
  %640 = vst [vmem:[%s3 + $0x4] sm:$0xf] %v638
  // Predicated region
  $region14: #{autoencoder_forward.11} parent=0 // pred_check
    _
  $region15: #{autoencoder_forward.11} parent=0 // pred_check_branch
    %642 = sbr.rel (0) target = $region17
  $region16: #{autoencoder_forward.11} parent=0 // pred_region
    _
  $region17: #{autoencoder_forward.11} parent=0 // pred_fallthru
    _
  // Predicated region
  $region18: #{autoencoder_forward.11} parent=0 // pred_check
    _
  $region19: #{autoencoder_forward.11} parent=0 // pred_check_branch
    %644 = sbr.rel (0) target = $region21
  $region20: #{autoencoder_forward.11} parent=0 // pred_region
    _
  $region21: #{autoencoder_forward.11} parent=0 // pred_fallthru
    _

// kernel: autoencoder_forward.13
$region0: #{autoencoder_forward.13}
  #allocation0 [shape = 'u32[]', space=smem, size = 0x4, offset = 0x4, fixed_abs, tag = 'smem constant byte address 0x4 - core index']
  #allocation1 [shape = 'u32[72,128]{1,0:T(1,128)}', space=vmem, size = 0x9000, scoped, tag = 'internal scratch']
  %s0 = inlined_call_operand.vmem [shape: bf16[40,48], index: 0, kind: input, shape index: {}]
  %s1 = inlined_call_operand.vmem [shape: bf16[4,48,128], index: 1, kind: input, shape index: {}]
  %s2 = inlined_call_operand.vmem [shape: f32[1,128], index: 2, kind: input, shape index: {}]
  %s3 = inlined_call_operand.vmem [shape: bf16[32,128], index: 3, kind: output, shape index: {}]
  %s4 = sld [smem:[#allocation0]]
  $region22: #{autoencoder_forward.13} parent=0
    _
  %s6 = ssub.s32 1, %s4
  %s7 = scalar_select 0, %s6, %s4
  // Predicated region
  $region2: #{autoencoder_forward.13} parent=0 // pred_check
    _
  $region3: #{autoencoder_forward.13} parent=0 // pred_check_branch
    %9 = sbr.rel (0) target = $region5
  $region4: #{autoencoder_forward.13} parent=0 // pred_region
    _
  $region5: #{autoencoder_forward.13} parent=0 // pred_fallthru
    _
  // Predicated region
  $region6: #{autoencoder_forward.13} parent=0 // pred_check
    _
  $region7: #{autoencoder_forward.13} parent=0 // pred_check_branch
    %11 = sbr.rel (0) target = $region9
  $region8: #{autoencoder_forward.13} parent=0 // pred_region
    _
  $region9: #{autoencoder_forward.13} parent=0 // pred_fallthru
    _
  // Predicated region
  $region10: #{autoencoder_forward.13} parent=0 // pred_check
    _
  $region11: #{autoencoder_forward.13} parent=0 // pred_check_branch
    %13 = sbr.rel (0) target = $region13
  $region12: #{autoencoder_forward.13} parent=0 // pred_region
    _
  $region13: #{autoencoder_forward.13} parent=0 // pred_fallthru
    _
  %v15 = vld [vmem:[%s0] sm:$0xf]
  %v16 = vld [vmem:[%s0 + $0x4] sm:$0xf]
  %v17 = vld [vmem:[%s0 + $0x8] sm:$0xf]
  %v18 = vld [vmem:[%s0 + $0xc] sm:$0xf]
  %v19 = vld [vmem:[%s1] sm:$0xf]
  %v20 = vld [vmem:[%s1 + $0x4] sm:$0xf]
  %v21 = vld [vmem:[%s1 + $0x8] sm:$0xf]
  %v22 = vld [vmem:[%s1 + $0xc] sm:$0xf]
  %v23 = vld [vmem:[%s1 + $0x10] sm:$0xf]
  %v24 = vld [vmem:[%s1 + $0x14] sm:$0xf]
  %v25 = vld [vmem:[%s0 + $0x10] sm:$0x1]
  %s26 = scalar_lea.vmem %s1, 24
  %v27 = vld [vmem:[%s26] sm:$0xf]
  %v28 = vld [vmem:[%s26 + $0x4] sm:$0xf]
  %v29 = vld [vmem:[%s26 + $0x8] sm:$0xf]
  %v30 = vld [vmem:[%s26 + $0xc] sm:$0xf]
  %v31 = vld [vmem:[%s26 + $0x10] sm:$0xf]
  %v32 = vld [vmem:[%s26 + $0x14] sm:$0xf]
  %v38 = vunpack.c.l.b16 %v15
  %v39 = vunpack.c.l.b16 %v16
  %v40 = vunpack.c.l.b16 %v17
  %v41 = vunpack.c.l.b16 %v18
  %v42 = vunpack.c.l.b16 %v25
  %v43 = vpack.c.b16 %v39, %v38
  %v44 = vpack.c.b16 %v41, %v40
  %v45 = vpack.c.b16 %v42, %v42
  %vm46 = vsmask.f32 7424
  %v48 = vshrl.u32 %v43, 16
  %v50 = vshll.u32 %v43, 16
  %v52 = vrot.slane %v50, 1
  %v53 = vor.u32 %v48, %v52
  %v55 = vshll.u32 %v44, 16
  %v57 = vrot.slane %v55, 1
  %v58 = vsel %vm46, %v53, %v57
  %v59 = vshrl.u32 %v44, 16
  %v61 = vor.u32 %v59, %v57
  %v63 = vshll.u32 %v45, 16
  %v65 = vrot.slane %v63, 1
  %v66 = vsel %vm46, %v61, %v65
  %v73 = vunpack.c.l.b16 %v27
  %v74 = vunpack.c.l.b16 %v28
  %v75 = vunpack.c.l.b16 %v29
  %v76 = vunpack.c.l.b16 %v30
  %v77 = vunpack.c.l.b16 %v31
  %v78 = vunpack.c.l.b16 %v32
  %v79 = vpack.c.b16 %v74, %v73
  %v80 = vpack.c.b16 %v76, %v75
  %v81 = vpack.c.b16 %v78, %v77
  %vm85 = vcmask 392192
  %v87 = vsel %vm85, %v58, 0
  %v90 = vsel %vm85, %v66, 0
  %92 = vmatpush.bf16.msra.mxu0 0
  %93 = vmatpush.bf16.msra.mxu0 0
  %94 = vmatpush.bf16.msra.mxu0 0
  %95 = vmatpush.bf16.msra.mxu0 0
  %96 = vmatpush.bf16.msra.mxu0 0
  %97 = vmatpush.bf16.msra.mxu0 %v81
  %98 = vmatpush.bf16.msra.mxu0 %v80
  %99 = vmatpush.bf16.msra.mxu0 %v79
  %100 = vmatmul.bf16.gmra.mxu0 %v87
  %v101 = vpop.f32.mrf.mxu0
  %v102 = vadd.f32 0.0, %v101
  %v103 = vpop.f32.mrf.mxu0
  %v104 = vadd.f32 0.0, %v103
  %105 = vmatmul.bf16.gmra.mxu0 %v90
  %v106 = vpop.f32.mrf.mxu0
  %v107 = vadd.f32 0.0, %v106
  %v108 = vpop.f32.mrf.mxu0
  %v109 = vadd.f32 0.0, %v108
  %110 = vdwg.mxu0
  %v117 = vunpack.c.l.b16 %v19
  %v118 = vunpack.c.l.b16 %v20
  %v119 = vunpack.c.l.b16 %v21
  %v120 = vunpack.c.l.b16 %v22
  %v121 = vunpack.c.l.b16 %v23
  %v122 = vunpack.c.l.b16 %v24
  %v123 = vpack.c.b16 %v118, %v117
  %v124 = vpack.c.b16 %v120, %v119
  %v125 = vpack.c.b16 %v122, %v121
  %v129 = vsel %vm85, %v43, 0
  %v131 = vsel %vm85, %v44, 0
  %133 = vmatpush.bf16.msra.mxu0 0
  %134 = vmatpush.bf16.msra.mxu0 0
  %135 = vmatpush.bf16.msra.mxu0 0
  %136 = vmatpush.bf16.msra.mxu0 0
  %137 = vmatpush.bf16.msra.mxu0 0
  %138 = vmatpush.bf16.msra.mxu0 %v125
  %139 = vmatpush.bf16.msra.mxu0 %v124
  %140 = vmatpush.bf16.msra.mxu0 %v123
  %141 = vmatmul.bf16.gmra.mxu0 %v129
  %v142 = vpop.f32.mrf.mxu0
  %v143 = vadd.f32 %v102, %v142
  %v144 = vpop.f32.mrf.mxu0
  %v145 = vadd.f32 %v104, %v144
  %146 = vmatmul.bf16.gmra.mxu0 %v131
  %v147 = vpop.f32.mrf.mxu0
  %v148 = vadd.f32 %v107, %v147
  %v149 = vpop.f32.mrf.mxu0
  %v150 = vadd.f32 %v109, %v149
  %151 = vdwg.mxu0
  %v152 = vld [vmem:[%s0] sm:$0xc]
  %v153 = vld [vmem:[%s0 + $0x10] sm:$0x3]
  %s154 = scalar_lea.vmem %s1, 48
  %v155 = vld [vmem:[%s154] sm:$0xf]
  %v156 = vld [vmem:[%s154 + $0x4] sm:$0xf]
  %v157 = vld [vmem:[%s154 + $0x8] sm:$0xf]
  %v158 = vld [vmem:[%s154 + $0xc] sm:$0xf]
  %v159 = vld [vmem:[%s154 + $0x10] sm:$0xf]
  %v160 = vld [vmem:[%s154 + $0x14] sm:$0xf]
  %v163 = vunpack.c.l.b16 %v152
  %v164 = vunpack.c.l.b16 %v153
  %v165 = vpack.c.b16 %v39, %v163
  %v166 = vpack.c.b16 %v164, %v164
  %vm167 = vcmask 1045504
  %v168 = vrot.slane %v165, 2
  %v169 = vrot.slane %v44, 2
  %v170 = vsel %vm167, %v168, %v169
  %v171 = vrot.slane %v166, 2
  %v172 = vsel %vm167, %v169, %v171
  %v179 = vunpack.c.l.b16 %v155
  %v180 = vunpack.c.l.b16 %v156
  %v181 = vunpack.c.l.b16 %v157
  %v182 = vunpack.c.l.b16 %v158
  %v183 = vunpack.c.l.b16 %v159
  %v184 = vunpack.c.l.b16 %v160
  %v185 = vpack.c.b16 %v180, %v179
  %v186 = vpack.c.b16 %v182, %v181
  %v187 = vpack.c.b16 %v184, %v183
  %v192 = vsel %vm85, %v170, 0
  %v195 = vsel %vm85, %v172, 0
  %197 = vmatpush.bf16.msra.mxu0 0
  %198 = vmatpush.bf16.msra.mxu0 0
  %199 = vmatpush.bf16.msra.mxu0 0
  %200 = vmatpush.bf16.msra.mxu0 0
  %201 = vmatpush.bf16.msra.mxu0 0
  %202 = vmatpush.bf16.msra.mxu0 %v187
  %203 = vmatpush.bf16.msra.mxu0 %v186
  %204 = vmatpush.bf16.msra.mxu0 %v185
  %205 = vmatmul.bf16.gmra.mxu0 %v192
  %v206 = vpop.f32.mrf.mxu0
  %v207 = vadd.f32 0.0, %v206
  %v208 = vpop.f32.mrf.mxu0
  %v209 = vadd.f32 0.0, %v208
  %210 = vmatmul.bf16.gmra.mxu0 %v195
  %v211 = vpop.f32.mrf.mxu0
  %v212 = vadd.f32 0.0, %v211
  %v213 = vpop.f32.mrf.mxu0
  %v214 = vadd.f32 0.0, %v213
  %215 = vdwg.mxu0
  %v216 = vadd.f32 %v143, %v207
  %v217 = vadd.f32 %v145, %v209
  %v218 = vadd.f32 %v148, %v212
  %v219 = vadd.f32 %v150, %v214
  %v220 = vld [vmem:[%s0 + $0x10] sm:$0x7]
  %s221 = scalar_lea.vmem %s1, 72
  %v222 = vld [vmem:[%s221] sm:$0xf]
  %v223 = vld [vmem:[%s221 + $0x4] sm:$0xf]
  %v224 = vld [vmem:[%s221 + $0x8] sm:$0xf]
  %v225 = vld [vmem:[%s221 + $0xc] sm:$0xf]
  %v226 = vld [vmem:[%s221 + $0x10] sm:$0xf]
  %v227 = vld [vmem:[%s221 + $0x14] sm:$0xf]
  %v229 = vunpack.c.l.b16 %v220
  %v230 = vpack.c.b16 %v229, %v229
  %vm231 = vsmask.f32 5376
  %v233 = vshrl.u32 %v165, 16
  %v235 = vrot.slane %v233, 2
  %v236 = vshll.u32 %v165, 16
  %v238 = vrot.slane %v236, 3
  %v239 = vor.u32 %v235, %v238
  %v240 = vrot.slane %v59, 2
  %v241 = vrot.slane %v55, 3
  %v242 = vor.u32 %v240, %v241
  %v243 = vsel %vm231, %v239, %v242
  %v245 = vshrl.u32 %v230, 16
  %v247 = vrot.slane %v245, 2
  %v248 = vshll.u32 %v230, 16
  %v250 = vrot.slane %v248, 3
  %v251 = vor.u32 %v247, %v250
  %v252 = vsel %vm231, %v242, %v251
  %v259 = vunpack.c.l.b16 %v222
  %v260 = vunpack.c.l.b16 %v223
  %v261 = vunpack.c.l.b16 %v224
  %v262 = vunpack.c.l.b16 %v225
  %v263 = vunpack.c.l.b16 %v226
  %v264 = vunpack.c.l.b16 %v227
  %v265 = vpack.c.b16 %v260, %v259
  %v266 = vpack.c.b16 %v262, %v261
  %v267 = vpack.c.b16 %v264, %v263
  %v272 = vsel %vm85, %v243, 0
  %v275 = vsel %vm85, %v252, 0
  %277 = vmatpush.bf16.msra.mxu0 0
  %278 = vmatpush.bf16.msra.mxu0 0
  %279 = vmatpush.bf16.msra.mxu0 0
  %280 = vmatpush.bf16.msra.mxu0 0
  %281 = vmatpush.bf16.msra.mxu0 0
  %282 = vmatpush.bf16.msra.mxu0 %v267
  %283 = vmatpush.bf16.msra.mxu0 %v266
  %284 = vmatpush.bf16.msra.mxu0 %v265
  %285 = vmatmul.bf16.gmra.mxu0 %v272
  %v286 = vpop.f32.mrf.mxu0
  %v287 = vadd.f32 0.0, %v286
  %v288 = vpop.f32.mrf.mxu0
  %v289 = vadd.f32 0.0, %v288
  %290 = vmatmul.bf16.gmra.mxu0 %v275
  %v291 = vpop.f32.mrf.mxu0
  %v292 = vadd.f32 0.0, %v291
  %v293 = vpop.f32.mrf.mxu0
  %v294 = vadd.f32 0.0, %v293
  %295 = vdwg.mxu0
  %v296 = vadd.f32 %v216, %v287
  %v297 = vadd.f32 %v217, %v289
  %v298 = vadd.f32 %v218, %v292
  %v299 = vadd.f32 %v219, %v294
  %v300 = vld [vmem:[%s2] sm:$0x1]
  %v302 = vperm.slane %v300, 0
  %v304 = vadd.f32 %v296, %v302
  %v305 = vadd.f32 %v297, %v302
  %v306 = vadd.f32 %v298, %v302
  %v307 = vadd.f32 %v299, %v302
  %v308 = vmax.f32 %v304, 0.0
  %v309 = vmax.f32 %v305, 0.0
  %v310 = vmax.f32 %v306, 0.0
  %v311 = vmax.f32 %v307, 0.0
  %v312 = vpack.c.bf16 %v308, %v308
  %v313 = vpack.c.bf16 %v309, %v309
  %v314 = vpack.c.bf16 %v310, %v310
  %v315 = vpack.c.bf16 %v311, %v311
  %316 = vst [vmem:[%s3] sm:$0xf] %v312
  %317 = vst [vmem:[%s3 + $0x4] sm:$0xf] %v313
  %318 = vst [vmem:[%s3 + $0x8] sm:$0xf] %v314
  %319 = vst [vmem:[%s3 + $0xc] sm:$0xf] %v315
  // Predicated region
  $region14: #{autoencoder_forward.13} parent=0 // pred_check
    _
  $region15: #{autoencoder_forward.13} parent=0 // pred_check_branch
    %321 = sbr.rel (0) target = $region17
  $region16: #{autoencoder_forward.13} parent=0 // pred_region
    _
  $region17: #{autoencoder_forward.13} parent=0 // pred_fallthru
    _
  // Predicated region
  $region18: #{autoencoder_forward.13} parent=0 // pred_check
    _
  $region19: #{autoencoder_forward.13} parent=0 // pred_check_branch
    %323 = sbr.rel (0) target = $region21
  $region20: #{autoencoder_forward.13} parent=0 // pred_region
    _
  $region21: #{autoencoder_forward.13} parent=0 // pred_fallthru
    _

// kernel: autoencoder_forward.12
$region0: #{autoencoder_forward.12}
  #allocation0 [shape = 'u32[]', space=smem, size = 0x4, offset = 0x4, fixed_abs, tag = 'smem constant byte address 0x4 - core index']
  #allocation1 [shape = 'u32[72,128]{1,0:T(1,128)}', space=vmem, size = 0x9000, scoped, tag = 'internal scratch']
  %s0 = inlined_call_operand.vmem [shape: bf16[40,96], index: 0, kind: input, shape index: {}]
  %s1 = inlined_call_operand.vmem [shape: bf16[4,96,256], index: 1, kind: input, shape index: {}]
  %s2 = inlined_call_operand.vmem [shape: f32[1,256], index: 2, kind: input, shape index: {}]
  %s3 = inlined_call_operand.vmem [shape: bf16[32,256], index: 3, kind: output, shape index: {}]
  %s4 = sld [smem:[#allocation0]]
  $region22: #{autoencoder_forward.12} parent=0
    _
  %s6 = ssub.s32 1, %s4
  %s7 = scalar_select 0, %s6, %s4
  // Predicated region
  $region2: #{autoencoder_forward.12} parent=0 // pred_check
    _
  $region3: #{autoencoder_forward.12} parent=0 // pred_check_branch
    %9 = sbr.rel (0) target = $region5
  $region4: #{autoencoder_forward.12} parent=0 // pred_region
    _
  $region5: #{autoencoder_forward.12} parent=0 // pred_fallthru
    _
  // Predicated region
  $region6: #{autoencoder_forward.12} parent=0 // pred_check
    _
  $region7: #{autoencoder_forward.12} parent=0 // pred_check_branch
    %11 = sbr.rel (0) target = $region9
  $region8: #{autoencoder_forward.12} parent=0 // pred_region
    _
  $region9: #{autoencoder_forward.12} parent=0 // pred_fallthru
    _
  // Predicated region
  $region10: #{autoencoder_forward.12} parent=0 // pred_check
    _
  $region11: #{autoencoder_forward.12} parent=0 // pred_check_branch
    %13 = sbr.rel (0) target = $region13
  $region12: #{autoencoder_forward.12} parent=0 // pred_region
    _
  $region13: #{autoencoder_forward.12} parent=0 // pred_fallthru
    _
  %v15 = vld [vmem:[%s0] sm:$0xf]
  %v16 = vld [vmem:[%s0 + $0x4] sm:$0xf]
  %v17 = vld [vmem:[%s0 + $0x8] sm:$0xf]
  %v18 = vld [vmem:[%s0 + $0xc] sm:$0xf]
  %v19 = vld [vmem:[%s1] sm:$0xff]
  %v20 = vld [vmem:[%s1 + $0x8] sm:$0xff]
  %v21 = vld [vmem:[%s1 + $0x10] sm:$0xff]
  %v22 = vld [vmem:[%s1 + $0x18] sm:$0xff]
  %v23 = vld [vmem:[%s1 + $0x20] sm:$0xff]
  %v24 = vld [vmem:[%s1 + $0x28] sm:$0xff]
  %v25 = vld [vmem:[%s1 + $0x30] sm:$0xff]
  %v26 = vld [vmem:[%s1 + $0x38] sm:$0xff]
  %v27 = vld [vmem:[%s1 + $0x40] sm:$0xff]
  %v28 = vld [vmem:[%s1 + $0x48] sm:$0xff]
  %v29 = vld [vmem:[%s1 + $0x50] sm:$0xff]
  %v30 = vld [vmem:[%s1 + $0x58] sm:$0xff]
  %v31 = vld [vmem:[%s0 + $0x10] sm:$0x1]
  %s32 = scalar_lea.vmem %s1, 96
  %v33 = vld [vmem:[%s32] sm:$0xff]
  %v34 = vld [vmem:[%s32 + $0x8] sm:$0xff]
  %v35 = vld [vmem:[%s32 + $0x10] sm:$0xff]
  %v36 = vld [vmem:[%s32 + $0x18] sm:$0xff]
  %v37 = vld [vmem:[%s32 + $0x20] sm:$0xff]
  %v38 = vld [vmem:[%s32 + $0x28] sm:$0xff]
  %v39 = vld [vmem:[%s32 + $0x30] sm:$0xff]
  %v40 = vld [vmem:[%s32 + $0x38] sm:$0xff]
  %v41 = vld [vmem:[%s32 + $0x40] sm:$0xff]
  %v42 = vld [vmem:[%s32 + $0x48] sm:$0xff]
  %v43 = vld [vmem:[%s32 + $0x50] sm:$0xff]
  %v44 = vld [vmem:[%s32 + $0x58] sm:$0xff]
  %v50 = vunpack.c.l.b16 %v15
  %v51 = vunpack.c.l.b16 %v16
  %v52 = vunpack.c.l.b16 %v17
  %v53 = vunpack.c.l.b16 %v18
  %v54 = vunpack.c.l.b16 %v31
  %v55 = vpack.c.b16 %v51, %v50
  %v56 = vpack.c.b16 %v53, %v52
  %v57 = vpack.c.b16 %v54, %v54
  %vm58 = vsmask.f32 7424
  %v60 = vshrl.u32 %v55, 16
  %v62 = vshll.u32 %v55, 16
  %v64 = vrot.slane %v62, 1
  %v65 = vor.u32 %v60, %v64
  %v67 = vshll.u32 %v56, 16
  %v69 = vrot.slane %v67, 1
  %v70 = vsel %vm58, %v65, %v69
  %v71 = vshrl.u32 %v56, 16
  %v73 = vor.u32 %v71, %v69
  %v75 = vshll.u32 %v57, 16
  %v77 = vrot.slane %v75, 1
  %v78 = vsel %vm58, %v73, %v77
  %v91 = vunpack.c.l.b16 %v33
  %v92 = vunpack.c.h.b16 %v33
  %v93 = vunpack.c.l.b16 %v34
  %v94 = vunpack.c.h.b16 %v34
  %v95 = vunpack.c.l.b16 %v35
  %v96 = vunpack.c.h.b16 %v35
  %v97 = vunpack.c.l.b16 %v36
  %v98 = vunpack.c.h.b16 %v36
  %v99 = vunpack.c.l.b16 %v37
  %v100 = vunpack.c.h.b16 %v37
  %v101 = vunpack.c.l.b16 %v38
  %v102 = vunpack.c.h.b16 %v38
  %v103 = vunpack.c.l.b16 %v39
  %v104 = vunpack.c.h.b16 %v39
  %v105 = vunpack.c.l.b16 %v40
  %v106 = vunpack.c.h.b16 %v40
  %v107 = vunpack.c.l.b16 %v41
  %v108 = vunpack.c.h.b16 %v41
  %v109 = vunpack.c.l.b16 %v42
  %v110 = vunpack.c.h.b16 %v42
  %v111 = vunpack.c.l.b16 %v43
  %v112 = vunpack.c.h.b16 %v43
  %v113 = vunpack.c.l.b16 %v44
  %v114 = vunpack.c.h.b16 %v44
  %v115 = vpack.c.b16 %v93, %v91
  %v116 = vpack.c.b16 %v94, %v92
  %v117 = vpack.c.b16 %v97, %v95
  %v118 = vpack.c.b16 %v98, %v96
  %v119 = vpack.c.b16 %v101, %v99
  %v120 = vpack.c.b16 %v102, %v100
  %v121 = vpack.c.b16 %v105, %v103
  %v122 = vpack.c.b16 %v106, %v104
  %v123 = vpack.c.b16 %v109, %v107
  %v124 = vpack.c.b16 %v110, %v108
  %v125 = vpack.c.b16 %v113, %v111
  %v126 = vpack.c.b16 %v114, %v112
  %vm139 = vcmask 785408
  %v141 = vsel %vm139, %v70, 0
  %v144 = vsel %vm139, %v78, 0
  %146 = vmatpush.bf16.msra.mxu0 0
  %147 = vmatpush.bf16.msra.mxu0 0
  %148 = vmatpush.bf16.msra.mxu0 %v125
  %149 = vmatpush.bf16.msra.mxu0 %v123
  %150 = vmatpush.bf16.msra.mxu0 %v121
  %151 = vmatpush.bf16.msra.mxu0 %v119
  %152 = vmatpush.bf16.msra.mxu0 %v117
  %153 = vmatpush.bf16.msra.mxu0 %v115
  %154 = vmatmul.bf16.gmra.mxu0 %v141
  %v155 = vpop.f32.mrf.mxu0
  %v156 = vadd.f32 0.0, %v155
  %v157 = vpop.f32.mrf.mxu0
  %v158 = vadd.f32 0.0, %v157
  %159 = vmatmul.bf16.gmra.mxu0 %v144
  %v160 = vpop.f32.mrf.mxu0
  %v161 = vadd.f32 0.0, %v160
  %v162 = vpop.f32.mrf.mxu0
  %v163 = vadd.f32 0.0, %v162
  %164 = vdwg.mxu0
  %165 = vmatpush.bf16.msra.mxu0 0
  %166 = vmatpush.bf16.msra.mxu0 0
  %167 = vmatpush.bf16.msra.mxu0 %v126
  %168 = vmatpush.bf16.msra.mxu0 %v124
  %169 = vmatpush.bf16.msra.mxu0 %v122
  %170 = vmatpush.bf16.msra.mxu0 %v120
  %171 = vmatpush.bf16.msra.mxu0 %v118
  %172 = vmatpush.bf16.msra.mxu0 %v116
  %173 = vmatmul.bf16.gmra.mxu0 %v141
  %v174 = vpop.f32.mrf.mxu0
  %v175 = vadd.f32 0.0, %v174
  %v176 = vpop.f32.mrf.mxu0
  %v177 = vadd.f32 0.0, %v176
  %178 = vmatmul.bf16.gmra.mxu0 %v144
  %v179 = vpop.f32.mrf.mxu0
  %v180 = vadd.f32 0.0, %v179
  %v181 = vpop.f32.mrf.mxu0
  %v182 = vadd.f32 0.0, %v181
  %183 = vdwg.mxu0
  %v196 = vunpack.c.l.b16 %v19
  %v197 = vunpack.c.h.b16 %v19
  %v198 = vunpack.c.l.b16 %v20
  %v199 = vunpack.c.h.b16 %v20
  %v200 = vunpack.c.l.b16 %v21
  %v201 = vunpack.c.h.b16 %v21
  %v202 = vunpack.c.l.b16 %v22
  %v203 = vunpack.c.h.b16 %v22
  %v204 = vunpack.c.l.b16 %v23
  %v205 = vunpack.c.h.b16 %v23
  %v206 = vunpack.c.l.b16 %v24
  %v207 = vunpack.c.h.b16 %v24
  %v208 = vunpack.c.l.b16 %v25
  %v209 = vunpack.c.h.b16 %v25
  %v210 = vunpack.c.l.b16 %v26
  %v211 = vunpack.c.h.b16 %v26
  %v212 = vunpack.c.l.b16 %v27
  %v213 = vunpack.c.h.b16 %v27
  %v214 = vunpack.c.l.b16 %v28
  %v215 = vunpack.c.h.b16 %v28
  %v216 = vunpack.c.l.b16 %v29
  %v217 = vunpack.c.h.b16 %v29
  %v218 = vunpack.c.l.b16 %v30
  %v219 = vunpack.c.h.b16 %v30
  %v220 = vpack.c.b16 %v198, %v196
  %v221 = vpack.c.b16 %v199, %v197
  %v222 = vpack.c.b16 %v202, %v200
  %v223 = vpack.c.b16 %v203, %v201
  %v224 = vpack.c.b16 %v206, %v204
  %v225 = vpack.c.b16 %v207, %v205
  %v226 = vpack.c.b16 %v210, %v208
  %v227 = vpack.c.b16 %v211, %v209
  %v228 = vpack.c.b16 %v214, %v212
  %v229 = vpack.c.b16 %v215, %v213
  %v230 = vpack.c.b16 %v218, %v216
  %v231 = vpack.c.b16 %v219, %v217
  %v244 = vsel %vm139, %v55, 0
  %v246 = vsel %vm139, %v56, 0
  %248 = vmatpush.bf16.msra.mxu0 0
  %249 = vmatpush.bf16.msra.mxu0 0
  %250 = vmatpush.bf16.msra.mxu0 %v230
  %251 = vmatpush.bf16.msra.mxu0 %v228
  %252 = vmatpush.bf16.msra.mxu0 %v226
  %253 = vmatpush.bf16.msra.mxu0 %v224
  %254 = vmatpush.bf16.msra.mxu0 %v222
  %255 = vmatpush.bf16.msra.mxu0 %v220
  %256 = vmatmul.bf16.gmra.mxu0 %v244
  %v257 = vpop.f32.mrf.mxu0
  %v258 = vadd.f32 %v156, %v257
  %v259 = vpop.f32.mrf.mxu0
  %v260 = vadd.f32 %v158, %v259
  %261 = vmatmul.bf16.gmra.mxu0 %v246
  %v262 = vpop.f32.mrf.mxu0
  %v263 = vadd.f32 %v161, %v262
  %v264 = vpop.f32.mrf.mxu0
  %v265 = vadd.f32 %v163, %v264
  %266 = vdwg.mxu0
  %267 = vmatpush.bf16.msra.mxu0 0
  %268 = vmatpush.bf16.msra.mxu0 0
  %269 = vmatpush.bf16.msra.mxu0 %v231
  %270 = vmatpush.bf16.msra.mxu0 %v229
  %271 = vmatpush.bf16.msra.mxu0 %v227
  %272 = vmatpush.bf16.msra.mxu0 %v225
  %273 = vmatpush.bf16.msra.mxu0 %v223
  %274 = vmatpush.bf16.msra.mxu0 %v221
  %275 = vmatmul.bf16.gmra.mxu0 %v244
  %v276 = vpop.f32.mrf.mxu0
  %v277 = vadd.f32 %v175, %v276
  %v278 = vpop.f32.mrf.mxu0
  %v279 = vadd.f32 %v177, %v278
  %280 = vmatmul.bf16.gmra.mxu0 %v246
  %v281 = vpop.f32.mrf.mxu0
  %v282 = vadd.f32 %v180, %v281
  %v283 = vpop.f32.mrf.mxu0
  %v284 = vadd.f32 %v182, %v283
  %285 = vdwg.mxu0
  %v286 = vld [vmem:[%s0] sm:$0xe]
  %v287 = vld [vmem:[%s0 + $0x10] sm:$0x3]
  %s288 = scalar_lea.vmem %s1, 192
  %v289 = vld [vmem:[%s288] sm:$0xff]
  %v290 = vld [vmem:[%s288 + $0x8] sm:$0xff]
  %v291 = vld [vmem:[%s288 + $0x10] sm:$0xff]
  %v292 = vld [vmem:[%s288 + $0x18] sm:$0xff]
  %v293 = vld [vmem:[%s288 + $0x20] sm:$0xff]
  %v294 = vld [vmem:[%s288 + $0x28] sm:$0xff]
  %v295 = vld [vmem:[%s288 + $0x30] sm:$0xff]
  %v296 = vld [vmem:[%s288 + $0x38] sm:$0xff]
  %v297 = vld [vmem:[%s288 + $0x40] sm:$0xff]
  %v298 = vld [vmem:[%s288 + $0x48] sm:$0xff]
  %v299 = vld [vmem:[%s288 + $0x50] sm:$0xff]
  %v300 = vld [vmem:[%s288 + $0x58] sm:$0xff]
  %v303 = vunpack.c.l.b16 %v286
  %v304 = vunpack.c.l.b16 %v287
  %v305 = vpack.c.b16 %v51, %v303
  %v306 = vpack.c.b16 %v304, %v304
  %vm307 = vsmask.f32 6400
  %v309 = vshrl.u32 %v305, 16
  %v311 = vrot.slane %v309, 1
  %v312 = vshll.u32 %v305, 16
  %v314 = vrot.slane %v312, 2
  %v315 = vor.u32 %v311, %v314
  %v316 = vrot.slane %v71, 1
  %v317 = vrot.slane %v67, 2
  %v318 = vor.u32 %v316, %v317
  %v319 = vsel %vm307, %v315, %v318
  %v321 = vshrl.u32 %v306, 16
  %v323 = vrot.slane %v321, 1
  %v324 = vshll.u32 %v306, 16
  %v326 = vrot.slane %v324, 2
  %v327 = vor.u32 %v323, %v326
  %v328 = vsel %vm307, %v318, %v327
  %v341 = vunpack.c.l.b16 %v289
  %v342 = vunpack.c.h.b16 %v289
  %v343 = vunpack.c.l.b16 %v290
  %v344 = vunpack.c.h.b16 %v290
  %v345 = vunpack.c.l.b16 %v291
  %v346 = vunpack.c.h.b16 %v291
  %v347 = vunpack.c.l.b16 %v292
  %v348 = vunpack.c.h.b16 %v292
  %v349 = vunpack.c.l.b16 %v293
  %v350 = vunpack.c.h.b16 %v293
  %v351 = vunpack.c.l.b16 %v294
  %v352 = vunpack.c.h.b16 %v294
  %v353 = vunpack.c.l.b16 %v295
  %v354 = vunpack.c.h.b16 %v295
  %v355 = vunpack.c.l.b16 %v296
  %v356 = vunpack.c.h.b16 %v296
  %v357 = vunpack.c.l.b16 %v297
  %v358 = vunpack.c.h.b16 %v297
  %v359 = vunpack.c.l.b16 %v298
  %v360 = vunpack.c.h.b16 %v298
  %v361 = vunpack.c.l.b16 %v299
  %v362 = vunpack.c.h.b16 %v299
  %v363 = vunpack.c.l.b16 %v300
  %v364 = vunpack.c.h.b16 %v300
  %v365 = vpack.c.b16 %v343, %v341
  %v366 = vpack.c.b16 %v344, %v342
  %v367 = vpack.c.b16 %v347, %v345
  %v368 = vpack.c.b16 %v348, %v346
  %v369 = vpack.c.b16 %v351, %v349
  %v370 = vpack.c.b16 %v352, %v350
  %v371 = vpack.c.b16 %v355, %v353
  %v372 = vpack.c.b16 %v356, %v354
  %v373 = vpack.c.b16 %v359, %v357
  %v374 = vpack.c.b16 %v360, %v358
  %v375 = vpack.c.b16 %v363, %v361
  %v376 = vpack.c.b16 %v364, %v362
  %v390 = vsel %vm139, %v319, 0
  %v393 = vsel %vm139, %v328, 0
  %395 = vmatpush.bf16.msra.mxu0 0
  %396 = vmatpush.bf16.msra.mxu0 0
  %397 = vmatpush.bf16.msra.mxu0 %v375
  %398 = vmatpush.bf16.msra.mxu0 %v373
  %399 = vmatpush.bf16.msra.mxu0 %v371
  %400 = vmatpush.bf16.msra.mxu0 %v369
  %401 = vmatpush.bf16.msra.mxu0 %v367
  %402 = vmatpush.bf16.msra.mxu0 %v365
  %403 = vmatmul.bf16.gmra.mxu0 %v390
  %v404 = vpop.f32.mrf.mxu0
  %v405 = vadd.f32 0.0, %v404
  %v406 = vpop.f32.mrf.mxu0
  %v407 = vadd.f32 0.0, %v406
  %408 = vmatmul.bf16.gmra.mxu0 %v393
  %v409 = vpop.f32.mrf.mxu0
  %v410 = vadd.f32 0.0, %v409
  %v411 = vpop.f32.mrf.mxu0
  %v412 = vadd.f32 0.0, %v411
  %413 = vdwg.mxu0
  %414 = vmatpush.bf16.msra.mxu0 0
  %415 = vmatpush.bf16.msra.mxu0 0
  %416 = vmatpush.bf16.msra.mxu0 %v376
  %417 = vmatpush.bf16.msra.mxu0 %v374
  %418 = vmatpush.bf16.msra.mxu0 %v372
  %419 = vmatpush.bf16.msra.mxu0 %v370
  %420 = vmatpush.bf16.msra.mxu0 %v368
  %421 = vmatpush.bf16.msra.mxu0 %v366
  %422 = vmatmul.bf16.gmra.mxu0 %v390
  %v423 = vpop.f32.mrf.mxu0
  %v424 = vadd.f32 0.0, %v423
  %v425 = vpop.f32.mrf.mxu0
  %v426 = vadd.f32 0.0, %v425
  %427 = vmatmul.bf16.gmra.mxu0 %v393
  %v428 = vpop.f32.mrf.mxu0
  %v429 = vadd.f32 0.0, %v428
  %v430 = vpop.f32.mrf.mxu0
  %v431 = vadd.f32 0.0, %v430
  %432 = vdwg.mxu0
  %v433 = vadd.f32 %v258, %v405
  %v434 = vadd.f32 %v277, %v424
  %v435 = vadd.f32 %v260, %v407
  %v436 = vadd.f32 %v279, %v426
  %v437 = vadd.f32 %v263, %v410
  %v438 = vadd.f32 %v282, %v429
  %v439 = vadd.f32 %v265, %v412
  %v440 = vadd.f32 %v284, %v431
  %v441 = vld [vmem:[%s0] sm:$0xc]
  %s442 = scalar_lea.vmem %s1, 288
  %v443 = vld [vmem:[%s442] sm:$0xff]
  %v444 = vld [vmem:[%s442 + $0x8] sm:$0xff]
  %v445 = vld [vmem:[%s442 + $0x10] sm:$0xff]
  %v446 = vld [vmem:[%s442 + $0x18] sm:$0xff]
  %v447 = vld [vmem:[%s442 + $0x20] sm:$0xff]
  %v448 = vld [vmem:[%s442 + $0x28] sm:$0xff]
  %v449 = vld [vmem:[%s442 + $0x30] sm:$0xff]
  %v450 = vld [vmem:[%s442 + $0x38] sm:$0xff]
  %v451 = vld [vmem:[%s442 + $0x40] sm:$0xff]
  %v452 = vld [vmem:[%s442 + $0x48] sm:$0xff]
  %v453 = vld [vmem:[%s442 + $0x50] sm:$0xff]
  %v454 = vld [vmem:[%s442 + $0x58] sm:$0xff]
  %v456 = vunpack.c.l.b16 %v441
  %v457 = vpack.c.b16 %v51, %v456
  %vm458 = vcmask 1045504
  %v459 = vrot.slane %v457, 2
  %v460 = vrot.slane %v56, 2
  %v461 = vsel %vm458, %v459, %v460
  %v462 = vrot.slane %v306, 2
  %v463 = vsel %vm458, %v460, %v462
  %v476 = vunpack.c.l.b16 %v443
  %v477 = vunpack.c.h.b16 %v443
  %v478 = vunpack.c.l.b16 %v444
  %v479 = vunpack.c.h.b16 %v444
  %v480 = vunpack.c.l.b16 %v445
  %v481 = vunpack.c.h.b16 %v445
  %v482 = vunpack.c.l.b16 %v446
  %v483 = vunpack.c.h.b16 %v446
  %v484 = vunpack.c.l.b16 %v447
  %v485 = vunpack.c.h.b16 %v447
  %v486 = vunpack.c.l.b16 %v448
  %v487 = vunpack.c.h.b16 %v448
  %v488 = vunpack.c.l.b16 %v449
  %v489 = vunpack.c.h.b16 %v449
  %v490 = vunpack.c.l.b16 %v450
  %v491 = vunpack.c.h.b16 %v450
  %v492 = vunpack.c.l.b16 %v451
  %v493 = vunpack.c.h.b16 %v451
  %v494 = vunpack.c.l.b16 %v452
  %v495 = vunpack.c.h.b16 %v452
  %v496 = vunpack.c.l.b16 %v453
  %v497 = vunpack.c.h.b16 %v453
  %v498 = vunpack.c.l.b16 %v454
  %v499 = vunpack.c.h.b16 %v454
  %v500 = vpack.c.b16 %v478, %v476
  %v501 = vpack.c.b16 %v479, %v477
  %v502 = vpack.c.b16 %v482, %v480
  %v503 = vpack.c.b16 %v483, %v481
  %v504 = vpack.c.b16 %v486, %v484
  %v505 = vpack.c.b16 %v487, %v485
  %v506 = vpack.c.b16 %v490, %v488
  %v507 = vpack.c.b16 %v491, %v489
  %v508 = vpack.c.b16 %v494, %v492
  %v509 = vpack.c.b16 %v495, %v493
  %v510 = vpack.c.b16 %v498, %v496
  %v511 = vpack.c.b16 %v499, %v497
  %v525 = vsel %vm139, %v461, 0
  %v528 = vsel %vm139, %v463, 0
  %530 = vmatpush.bf16.msra.mxu0 0
  %531 = vmatpush.bf16.msra.mxu0 0
  %532 = vmatpush.bf16.msra.mxu0 %v510
  %533 = vmatpush.bf16.msra.mxu0 %v508
  %534 = vmatpush.bf16.msra.mxu0 %v506
  %535 = vmatpush.bf16.msra.mxu0 %v504
  %536 = vmatpush.bf16.msra.mxu0 %v502
  %537 = vmatpush.bf16.msra.mxu0 %v500
  %538 = vmatmul.bf16.gmra.mxu0 %v525
  %v539 = vpop.f32.mrf.mxu0
  %v540 = vadd.f32 0.0, %v539
  %v541 = vpop.f32.mrf.mxu0
  %v542 = vadd.f32 0.0, %v541
  %543 = vmatmul.bf16.gmra.mxu0 %v528
  %v544 = vpop.f32.mrf.mxu0
  %v545 = vadd.f32 0.0, %v544
  %v546 = vpop.f32.mrf.mxu0
  %v547 = vadd.f32 0.0, %v546
  %548 = vdwg.mxu0
  %549 = vmatpush.bf16.msra.mxu0 0
  %550 = vmatpush.bf16.msra.mxu0 0
  %551 = vmatpush.bf16.msra.mxu0 %v511
  %552 = vmatpush.bf16.msra.mxu0 %v509
  %553 = vmatpush.bf16.msra.mxu0 %v507
  %554 = vmatpush.bf16.msra.mxu0 %v505
  %555 = vmatpush.bf16.msra.mxu0 %v503
  %556 = vmatpush.bf16.msra.mxu0 %v501
  %557 = vmatmul.bf16.gmra.mxu0 %v525
  %v558 = vpop.f32.mrf.mxu0
  %v559 = vadd.f32 0.0, %v558
  %v560 = vpop.f32.mrf.mxu0
  %v561 = vadd.f32 0.0, %v560
  %562 = vmatmul.bf16.gmra.mxu0 %v528
  %v563 = vpop.f32.mrf.mxu0
  %v564 = vadd.f32 0.0, %v563
  %v565 = vpop.f32.mrf.mxu0
  %v566 = vadd.f32 0.0, %v565
  %567 = vdwg.mxu0
  %v568 = vadd.f32 %v433, %v540
  %v569 = vadd.f32 %v434, %v559
  %v570 = vadd.f32 %v435, %v542
  %v571 = vadd.f32 %v436, %v561
  %v572 = vadd.f32 %v437, %v545
  %v573 = vadd.f32 %v438, %v564
  %v574 = vadd.f32 %v439, %v547
  %v575 = vadd.f32 %v440, %v566
  %v576 = vld [vmem:[%s2] sm:$0x3]
  %v578 = vperm.slane %v576, 0
  %v579 = vperm.slane %v576, 1
  %v582 = vadd.f32 %v568, %v578
  %v583 = vadd.f32 %v569, %v579
  %v584 = vadd.f32 %v570, %v578
  %v585 = vadd.f32 %v571, %v579
  %v586 = vadd.f32 %v572, %v578
  %v587 = vadd.f32 %v573, %v579
  %v588 = vadd.f32 %v574, %v578
  %v589 = vadd.f32 %v575, %v579
  %v590 = vmax.f32 %v582, 0.0
  %v591 = vmax.f32 %v583, 0.0
  %v592 = vmax.f32 %v584, 0.0
  %v593 = vmax.f32 %v585, 0.0
  %v594 = vmax.f32 %v586, 0.0
  %v595 = vmax.f32 %v587, 0.0
  %v596 = vmax.f32 %v588, 0.0
  %v597 = vmax.f32 %v589, 0.0
  %v598 = vpack.c.bf16 %v591, %v590
  %v599 = vpack.c.bf16 %v593, %v592
  %v600 = vpack.c.bf16 %v595, %v594
  %v601 = vpack.c.bf16 %v597, %v596
  %602 = vst [vmem:[%s3] sm:$0xff] %v598
  %603 = vst [vmem:[%s3 + $0x8] sm:$0xff] %v599
  %604 = vst [vmem:[%s3 + $0x10] sm:$0xff] %v600
  %605 = vst [vmem:[%s3 + $0x18] sm:$0xff] %v601
  // Predicated region
  $region14: #{autoencoder_forward.12} parent=0 // pred_check
    _
  $region15: #{autoencoder_forward.12} parent=0 // pred_check_branch
    %607 = sbr.rel (0) target = $region17
  $region16: #{autoencoder_forward.12} parent=0 // pred_region
    _
  $region17: #{autoencoder_forward.12} parent=0 // pred_fallthru
    _
  // Predicated region
  $region18: #{autoencoder_forward.12} parent=0 // pred_check
    _
  $region19: #{autoencoder_forward.12} parent=0 // pred_check_branch
    %609 = sbr.rel (0) target = $region21
  $region20: #{autoencoder_forward.12} parent=0 // pred_region
    _
  $region21: #{autoencoder_forward.12} parent=0 // pred_fallthru
    _

// kernel: autoencoder_forward.14
$region0: #{autoencoder_forward.14}
  #allocation0 [shape = 'u32[]', space=smem, size = 0x4, offset = 0x4, fixed_abs, tag = 'smem constant byte address 0x4 - core index']
  #allocation1 [shape = 'u32[72,128]{1,0:T(1,128)}', space=vmem, size = 0x9000, scoped, tag = 'internal scratch']
  %s0 = inlined_call_operand.vmem [shape: bf16[88,32], index: 0, kind: input, shape index: {}]
  %s1 = inlined_call_operand.vmem [shape: bf16[4,32,128], index: 1, kind: input, shape index: {}]
  %s2 = inlined_call_operand.vmem [shape: f32[1,128], index: 2, kind: input, shape index: {}]
  %s3 = inlined_call_operand.vmem [shape: bf16[80,128], index: 3, kind: output, shape index: {}]
  %s4 = sld [smem:[#allocation0]]
  $region22: #{autoencoder_forward.14} parent=0
    _
  %s6 = ssub.s32 1, %s4
  %s7 = scalar_select 0, %s6, %s4
  // Predicated region
  $region2: #{autoencoder_forward.14} parent=0 // pred_check
    _
  $region3: #{autoencoder_forward.14} parent=0 // pred_check_branch
    %9 = sbr.rel (0) target = $region5
  $region4: #{autoencoder_forward.14} parent=0 // pred_region
    _
  $region5: #{autoencoder_forward.14} parent=0 // pred_fallthru
    _
  // Predicated region
  $region6: #{autoencoder_forward.14} parent=0 // pred_check
    _
  $region7: #{autoencoder_forward.14} parent=0 // pred_check_branch
    %11 = sbr.rel (0) target = $region9
  $region8: #{autoencoder_forward.14} parent=0 // pred_region
    _
  $region9: #{autoencoder_forward.14} parent=0 // pred_fallthru
    _
  // Predicated region
  $region10: #{autoencoder_forward.14} parent=0 // pred_check
    _
  $region11: #{autoencoder_forward.14} parent=0 // pred_check_branch
    %13 = sbr.rel (0) target = $region13
  $region12: #{autoencoder_forward.14} parent=0 // pred_region
    _
  $region13: #{autoencoder_forward.14} parent=0 // pred_fallthru
    _
  %v15 = vld [vmem:[%s0] sm:$0xf]
  %v16 = vld [vmem:[%s0 + $0x4] sm:$0xf]
  %v17 = vld [vmem:[%s0 + $0x8] sm:$0xf]
  %v18 = vld [vmem:[%s0 + $0xc] sm:$0xf]
  %v19 = vld [vmem:[%s0 + $0x10] sm:$0xf]
  %v20 = vld [vmem:[%s0 + $0x14] sm:$0xf]
  %v21 = vld [vmem:[%s0 + $0x18] sm:$0xf]
  %v22 = vld [vmem:[%s0 + $0x1c] sm:$0xf]
  %v23 = vld [vmem:[%s0 + $0x20] sm:$0xf]
  %v24 = vld [vmem:[%s0 + $0x24] sm:$0xf]
  %v25 = vld [vmem:[%s1] sm:$0xf]
  %v26 = vld [vmem:[%s1 + $0x4] sm:$0xf]
  %v27 = vld [vmem:[%s1 + $0x8] sm:$0xf]
  %v28 = vld [vmem:[%s1 + $0xc] sm:$0xf]
  %v29 = vld [vmem:[%s0 + $0x28] sm:$0x1]
  %s30 = scalar_lea.vmem %s1, 16
  %v31 = vld [vmem:[%s30] sm:$0xf]
  %v32 = vld [vmem:[%s30 + $0x4] sm:$0xf]
  %v33 = vld [vmem:[%s30 + $0x8] sm:$0xf]
  %v34 = vld [vmem:[%s30 + $0xc] sm:$0xf]
  %v46 = vunpack.c.l.b16 %v15
  %v47 = vunpack.c.l.b16 %v16
  %v48 = vunpack.c.l.b16 %v17
  %v49 = vunpack.c.l.b16 %v18
  %v50 = vunpack.c.l.b16 %v19
  %v51 = vunpack.c.l.b16 %v20
  %v52 = vunpack.c.l.b16 %v21
  %v53 = vunpack.c.l.b16 %v22
  %v54 = vunpack.c.l.b16 %v23
  %v55 = vunpack.c.l.b16 %v24
  %v56 = vunpack.c.l.b16 %v29
  %v57 = vpack.c.b16 %v47, %v46
  %v58 = vpack.c.b16 %v49, %v48
  %v59 = vpack.c.b16 %v51, %v50
  %v60 = vpack.c.b16 %v53, %v52
  %v61 = vpack.c.b16 %v55, %v54
  %v62 = vpack.c.b16 %v56, %v56
  %vm63 = vsmask.f32 7424
  %v65 = vshrl.u32 %v57, 16
  %v67 = vshll.u32 %v57, 16
  %v69 = vrot.slane %v67, 1
  %v70 = vor.u32 %v65, %v69
  %v72 = vshll.u32 %v58, 16
  %v74 = vrot.slane %v72, 1
  %v75 = vsel %vm63, %v70, %v74
  %v76 = vshrl.u32 %v58, 16
  %v78 = vor.u32 %v76, %v74
  %v80 = vshll.u32 %v59, 16
  %v82 = vrot.slane %v80, 1
  %v83 = vsel %vm63, %v78, %v82
  %v84 = vshrl.u32 %v59, 16
  %v86 = vor.u32 %v84, %v82
  %v88 = vshll.u32 %v60, 16
  %v90 = vrot.slane %v88, 1
  %v91 = vsel %vm63, %v86, %v90
  %v92 = vshrl.u32 %v60, 16
  %v94 = vor.u32 %v92, %v90
  %v96 = vshll.u32 %v61, 16
  %v98 = vrot.slane %v96, 1
  %v99 = vsel %vm63, %v94, %v98
  %v100 = vshrl.u32 %v61, 16
  %v102 = vor.u32 %v100, %v98
  %v104 = vshll.u32 %v62, 16
  %v106 = vrot.slane %v104, 1
  %v107 = vsel %vm63, %v102, %v106
  %v112 = vunpack.c.l.b16 %v31
  %v113 = vunpack.c.l.b16 %v32
  %v114 = vunpack.c.l.b16 %v33
  %v115 = vunpack.c.l.b16 %v34
  %v116 = vpack.c.b16 %v113, %v112
  %v117 = vpack.c.b16 %v115, %v114
  %vm120 = vcmask 261120
  %v122 = vsel %vm120, %v75, 0
  %v125 = vsel %vm120, %v83, 0
  %v128 = vsel %vm120, %v91, 0
  %v131 = vsel %vm120, %v99, 0
  %v134 = vsel %vm120, %v107, 0
  %136 = vmatpush.bf16.msra.mxu0 0
  %137 = vmatpush.bf16.msra.mxu0 0
  %138 = vmatpush.bf16.msra.mxu0 0
  %139 = vmatpush.bf16.msra.mxu0 0
  %140 = vmatpush.bf16.msra.mxu0 0
  %141 = vmatpush.bf16.msra.mxu0 0
  %142 = vmatpush.bf16.msra.mxu0 %v117
  %143 = vmatpush.bf16.msra.mxu0 %v116
  %144 = vmatmul.bf16.gmra.mxu0 %v122
  %v145 = vpop.f32.mrf.mxu0
  %v146 = vadd.f32 0.0, %v145
  %v147 = vpop.f32.mrf.mxu0
  %v148 = vadd.f32 0.0, %v147
  %149 = vmatmul.bf16.gmra.mxu0 %v125
  %v150 = vpop.f32.mrf.mxu0
  %v151 = vadd.f32 0.0, %v150
  %v152 = vpop.f32.mrf.mxu0
  %v153 = vadd.f32 0.0, %v152
  %154 = vmatmul.bf16.gmra.mxu0 %v128
  %v155 = vpop.f32.mrf.mxu0
  %v156 = vadd.f32 0.0, %v155
  %v157 = vpop.f32.mrf.mxu0
  %v158 = vadd.f32 0.0, %v157
  %159 = vmatmul.bf16.gmra.mxu0 %v131
  %v160 = vpop.f32.mrf.mxu0
  %v161 = vadd.f32 0.0, %v160
  %v162 = vpop.f32.mrf.mxu0
  %v163 = vadd.f32 0.0, %v162
  %164 = vmatmul.bf16.gmra.mxu0 %v134
  %v165 = vpop.f32.mrf.mxu0
  %v166 = vadd.f32 0.0, %v165
  %v167 = vpop.f32.mrf.mxu0
  %v168 = vadd.f32 0.0, %v167
  %169 = vdwg.mxu0
  %v174 = vunpack.c.l.b16 %v25
  %v175 = vunpack.c.l.b16 %v26
  %v176 = vunpack.c.l.b16 %v27
  %v177 = vunpack.c.l.b16 %v28
  %v178 = vpack.c.b16 %v175, %v174
  %v179 = vpack.c.b16 %v177, %v176
  %v182 = vsel %vm120, %v57, 0
  %v184 = vsel %vm120, %v58, 0
  %v186 = vsel %vm120, %v59, 0
  %v188 = vsel %vm120, %v60, 0
  %v190 = vsel %vm120, %v61, 0
  %192 = vmatpush.bf16.msra.mxu0 0
  %193 = vmatpush.bf16.msra.mxu0 0
  %194 = vmatpush.bf16.msra.mxu0 0
  %195 = vmatpush.bf16.msra.mxu0 0
  %196 = vmatpush.bf16.msra.mxu0 0
  %197 = vmatpush.bf16.msra.mxu0 0
  %198 = vmatpush.bf16.msra.mxu0 %v179
  %199 = vmatpush.bf16.msra.mxu0 %v178
  %200 = vmatmul.bf16.gmra.mxu0 %v182
  %v201 = vpop.f32.mrf.mxu0
  %v202 = vadd.f32 %v146, %v201
  %v203 = vpop.f32.mrf.mxu0
  %v204 = vadd.f32 %v148, %v203
  %205 = vmatmul.bf16.gmra.mxu0 %v184
  %v206 = vpop.f32.mrf.mxu0
  %v207 = vadd.f32 %v151, %v206
  %v208 = vpop.f32.mrf.mxu0
  %v209 = vadd.f32 %v153, %v208
  %210 = vmatmul.bf16.gmra.mxu0 %v186
  %v211 = vpop.f32.mrf.mxu0
  %v212 = vadd.f32 %v156, %v211
  %v213 = vpop.f32.mrf.mxu0
  %v214 = vadd.f32 %v158, %v213
  %215 = vmatmul.bf16.gmra.mxu0 %v188
  %v216 = vpop.f32.mrf.mxu0
  %v217 = vadd.f32 %v161, %v216
  %v218 = vpop.f32.mrf.mxu0
  %v219 = vadd.f32 %v163, %v218
  %220 = vmatmul.bf16.gmra.mxu0 %v190
  %v221 = vpop.f32.mrf.mxu0
  %v222 = vadd.f32 %v166, %v221
  %v223 = vpop.f32.mrf.mxu0
  %v224 = vadd.f32 %v168, %v223
  %225 = vdwg.mxu0
  %v226 = vld [vmem:[%s0] sm:$0x8]
  %v227 = vld [vmem:[%s0 + $0x28] sm:$0x7]
  %s228 = scalar_lea.vmem %s1, 32
  %v229 = vld [vmem:[%s228] sm:$0xf]
  %v230 = vld [vmem:[%s228 + $0x4] sm:$0xf]
  %v231 = vld [vmem:[%s228 + $0x8] sm:$0xf]
  %v232 = vld [vmem:[%s228 + $0xc] sm:$0xf]
  %v235 = vunpack.c.l.b16 %v226
  %v236 = vunpack.c.l.b16 %v227
  %v237 = vpack.c.b16 %v47, %v235
  %v238 = vpack.c.b16 %v236, %v236
  %vm239 = vcmask 1044480
  %v240 = vrot.slane %v237, 3
  %v241 = vrot.slane %v58, 3
  %v242 = vsel %vm239, %v240, %v241
  %v243 = vrot.slane %v59, 3
  %v244 = vsel %vm239, %v241, %v243
  %v245 = vrot.slane %v60, 3
  %v246 = vsel %vm239, %v243, %v245
  %v247 = vrot.slane %v61, 3
  %v248 = vsel %vm239, %v245, %v247
  %v249 = vrot.slane %v238, 3
  %v250 = vsel %vm239, %v247, %v249
  %v255 = vunpack.c.l.b16 %v229
  %v256 = vunpack.c.l.b16 %v230
  %v257 = vunpack.c.l.b16 %v231
  %v258 = vunpack.c.l.b16 %v232
  %v259 = vpack.c.b16 %v256, %v255
  %v260 = vpack.c.b16 %v258, %v257
  %v264 = vsel %vm120, %v242, 0
  %v267 = vsel %vm120, %v244, 0
  %v270 = vsel %vm120, %v246, 0
  %v273 = vsel %vm120, %v248, 0
  %v276 = vsel %vm120, %v250, 0
  %278 = vmatpush.bf16.msra.mxu0 0
  %279 = vmatpush.bf16.msra.mxu0 0
  %280 = vmatpush.bf16.msra.mxu0 0
  %281 = vmatpush.bf16.msra.mxu0 0
  %282 = vmatpush.bf16.msra.mxu0 0
  %283 = vmatpush.bf16.msra.mxu0 0
  %284 = vmatpush.bf16.msra.mxu0 %v260
  %285 = vmatpush.bf16.msra.mxu0 %v259
  %286 = vmatmul.bf16.gmra.mxu0 %v264
  %v287 = vpop.f32.mrf.mxu0
  %v288 = vadd.f32 0.0, %v287
  %v289 = vpop.f32.mrf.mxu0
  %v290 = vadd.f32 0.0, %v289
  %291 = vmatmul.bf16.gmra.mxu0 %v267
  %v292 = vpop.f32.mrf.mxu0
  %v293 = vadd.f32 0.0, %v292
  %v294 = vpop.f32.mrf.mxu0
  %v295 = vadd.f32 0.0, %v294
  %296 = vmatmul.bf16.gmra.mxu0 %v270
  %v297 = vpop.f32.mrf.mxu0
  %v298 = vadd.f32 0.0, %v297
  %v299 = vpop.f32.mrf.mxu0
  %v300 = vadd.f32 0.0, %v299
  %301 = vmatmul.bf16.gmra.mxu0 %v273
  %v302 = vpop.f32.mrf.mxu0
  %v303 = vadd.f32 0.0, %v302
  %v304 = vpop.f32.mrf.mxu0
  %v305 = vadd.f32 0.0, %v304
  %306 = vmatmul.bf16.gmra.mxu0 %v276
  %v307 = vpop.f32.mrf.mxu0
  %v308 = vadd.f32 0.0, %v307
  %v309 = vpop.f32.mrf.mxu0
  %v310 = vadd.f32 0.0, %v309
  %311 = vdwg.mxu0
  %v312 = vadd.f32 %v202, %v288
  %v313 = vadd.f32 %v204, %v290
  %v314 = vadd.f32 %v207, %v293
  %v315 = vadd.f32 %v209, %v295
  %v316 = vadd.f32 %v212, %v298
  %v317 = vadd.f32 %v214, %v300
  %v318 = vadd.f32 %v217, %v303
  %v319 = vadd.f32 %v219, %v305
  %v320 = vadd.f32 %v222, %v308
  %v321 = vadd.f32 %v224, %v310
  %v322 = vld [vmem:[%s0 + $0x28] sm:$0xf]
  %s323 = scalar_lea.vmem %s1, 48
  %v324 = vld [vmem:[%s323] sm:$0xf]
  %v325 = vld [vmem:[%s323 + $0x4] sm:$0xf]
  %v326 = vld [vmem:[%s323 + $0x8] sm:$0xf]
  %v327 = vld [vmem:[%s323 + $0xc] sm:$0xf]
  %v329 = vunpack.c.l.b16 %v322
  %v330 = vpack.c.b16 %v329, %v329
  %vm331 = vsmask.f32 4352
  %v333 = vshrl.u32 %v237, 16
  %v335 = vrot.slane %v333, 3
  %v336 = vshll.u32 %v237, 16
  %v338 = vrot.slane %v336, 4
  %v339 = vor.u32 %v335, %v338
  %v340 = vrot.slane %v76, 3
  %v341 = vrot.slane %v72, 4
  %v342 = vor.u32 %v340, %v341
  %v343 = vsel %vm331, %v339, %v342
  %v344 = vrot.slane %v84, 3
  %v345 = vrot.slane %v80, 4
  %v346 = vor.u32 %v344, %v345
  %v347 = vsel %vm331, %v342, %v346
  %v348 = vrot.slane %v92, 3
  %v349 = vrot.slane %v88, 4
  %v350 = vor.u32 %v348, %v349
  %v351 = vsel %vm331, %v346, %v350
  %v352 = vrot.slane %v100, 3
  %v353 = vrot.slane %v96, 4
  %v354 = vor.u32 %v352, %v353
  %v355 = vsel %vm331, %v350, %v354
  %v357 = vshrl.u32 %v330, 16
  %v359 = vrot.slane %v357, 3
  %v360 = vshll.u32 %v330, 16
  %v362 = vrot.slane %v360, 4
  %v363 = vor.u32 %v359, %v362
  %v364 = vsel %vm331, %v354, %v363
  %v369 = vunpack.c.l.b16 %v324
  %v370 = vunpack.c.l.b16 %v325
  %v371 = vunpack.c.l.b16 %v326
  %v372 = vunpack.c.l.b16 %v327
  %v373 = vpack.c.b16 %v370, %v369
  %v374 = vpack.c.b16 %v372, %v371
  %v378 = vsel %vm120, %v343, 0
  %v381 = vsel %vm120, %v347, 0
  %v384 = vsel %vm120, %v351, 0
  %v387 = vsel %vm120, %v355, 0
  %v390 = vsel %vm120, %v364, 0
  %392 = vmatpush.bf16.msra.mxu0 0
  %393 = vmatpush.bf16.msra.mxu0 0
  %394 = vmatpush.bf16.msra.mxu0 0
  %395 = vmatpush.bf16.msra.mxu0 0
  %396 = vmatpush.bf16.msra.mxu0 0
  %397 = vmatpush.bf16.msra.mxu0 0
  %398 = vmatpush.bf16.msra.mxu0 %v374
  %399 = vmatpush.bf16.msra.mxu0 %v373
  %400 = vmatmul.bf16.gmra.mxu0 %v378
  %v401 = vpop.f32.mrf.mxu0
  %v402 = vadd.f32 0.0, %v401
  %v403 = vpop.f32.mrf.mxu0
  %v404 = vadd.f32 0.0, %v403
  %405 = vmatmul.bf16.gmra.mxu0 %v381
  %v406 = vpop.f32.mrf.mxu0
  %v407 = vadd.f32 0.0, %v406
  %v408 = vpop.f32.mrf.mxu0
  %v409 = vadd.f32 0.0, %v408
  %410 = vmatmul.bf16.gmra.mxu0 %v384
  %v411 = vpop.f32.mrf.mxu0
  %v412 = vadd.f32 0.0, %v411
  %v413 = vpop.f32.mrf.mxu0
  %v414 = vadd.f32 0.0, %v413
  %415 = vmatmul.bf16.gmra.mxu0 %v387
  %v416 = vpop.f32.mrf.mxu0
  %v417 = vadd.f32 0.0, %v416
  %v418 = vpop.f32.mrf.mxu0
  %v419 = vadd.f32 0.0, %v418
  %420 = vmatmul.bf16.gmra.mxu0 %v390
  %v421 = vpop.f32.mrf.mxu0
  %v422 = vadd.f32 0.0, %v421
  %v423 = vpop.f32.mrf.mxu0
  %v424 = vadd.f32 0.0, %v423
  %425 = vdwg.mxu0
  %v426 = vadd.f32 %v312, %v402
  %v427 = vadd.f32 %v313, %v404
  %v428 = vadd.f32 %v314, %v407
  %v429 = vadd.f32 %v315, %v409
  %v430 = vadd.f32 %v316, %v412
  %v431 = vadd.f32 %v317, %v414
  %v432 = vadd.f32 %v318, %v417
  %v433 = vadd.f32 %v319, %v419
  %v434 = vadd.f32 %v320, %v422
  %v435 = vadd.f32 %v321, %v424
  %v436 = vld [vmem:[%s2] sm:$0x1]
  %v438 = vperm.slane %v436, 0
  %v440 = vadd.f32 %v426, %v438
  %v441 = vadd.f32 %v427, %v438
  %v442 = vadd.f32 %v428, %v438
  %v443 = vadd.f32 %v429, %v438
  %v444 = vadd.f32 %v430, %v438
  %v445 = vadd.f32 %v431, %v438
  %v446 = vadd.f32 %v432, %v438
  %v447 = vadd.f32 %v433, %v438
  %v448 = vadd.f32 %v434, %v438
  %v449 = vadd.f32 %v435, %v438
  %v450 = vmax.f32 %v440, 0.0
  %v451 = vmax.f32 %v441, 0.0
  %v452 = vmax.f32 %v442, 0.0
  %v453 = vmax.f32 %v443, 0.0
  %v454 = vmax.f32 %v444, 0.0
  %v455 = vmax.f32 %v445, 0.0
  %v456 = vmax.f32 %v446, 0.0
  %v457 = vmax.f32 %v447, 0.0
  %v458 = vmax.f32 %v448, 0.0
  %v459 = vmax.f32 %v449, 0.0
  %v460 = vpack.c.bf16 %v450, %v450
  %v461 = vpack.c.bf16 %v451, %v451
  %v462 = vpack.c.bf16 %v452, %v452
  %v463 = vpack.c.bf16 %v453, %v453
  %v464 = vpack.c.bf16 %v454, %v454
  %v465 = vpack.c.bf16 %v455, %v455
  %v466 = vpack.c.bf16 %v456, %v456
  %v467 = vpack.c.bf16 %v457, %v457
  %v468 = vpack.c.bf16 %v458, %v458
  %v469 = vpack.c.bf16 %v459, %v459
  %470 = vst [vmem:[%s3] sm:$0xf] %v460
  %471 = vst [vmem:[%s3 + $0x4] sm:$0xf] %v461
  %472 = vst [vmem:[%s3 + $0x8] sm:$0xf] %v462
  %473 = vst [vmem:[%s3 + $0xc] sm:$0xf] %v463
  %474 = vst [vmem:[%s3 + $0x10] sm:$0xf] %v464
  %475 = vst [vmem:[%s3 + $0x14] sm:$0xf] %v465
  %476 = vst [vmem:[%s3 + $0x18] sm:$0xf] %v466
  %477 = vst [vmem:[%s3 + $0x1c] sm:$0xf] %v467
  %478 = vst [vmem:[%s3 + $0x20] sm:$0xf] %v468
  %479 = vst [vmem:[%s3 + $0x24] sm:$0xf] %v469
  // Predicated region
  $region14: #{autoencoder_forward.14} parent=0 // pred_check
    _
  $region15: #{autoencoder_forward.14} parent=0 // pred_check_branch
    %481 = sbr.rel (0) target = $region17
  $region16: #{autoencoder_forward.14} parent=0 // pred_region
    _
  $region17: #{autoencoder_forward.14} parent=0 // pred_fallthru
    _
  // Predicated region
  $region18: #{autoencoder_forward.14} parent=0 // pred_check
    _
  $region19: #{autoencoder_forward.14} parent=0 // pred_check_branch
    %483 = sbr.rel (0) target = $region21
  $region20: #{autoencoder_forward.14} parent=0 // pred_region
    _
  $region21: #{autoencoder_forward.14} parent=0 // pred_fallthru
    _

// kernel: autoencoder_forward.15
$region0: #{autoencoder_forward.15}
  #allocation0 [shape = 'u32[]', space=smem, size = 0x4, offset = 0x4, fixed_abs, tag = 'smem constant byte address 0x4 - core index']
  #allocation1 [shape = 'u32[72,128]{1,0:T(1,128)}', space=vmem, size = 0x9000, scoped, tag = 'internal scratch']
  %s0 = inlined_call_operand.vmem [shape: bf16[224,16], index: 0, kind: input, shape index: {}]
  %s1 = inlined_call_operand.vmem [shape: bf16[4,16,128], index: 1, kind: input, shape index: {}]
  %s2 = inlined_call_operand.vmem [shape: f32[1,128], index: 2, kind: input, shape index: {}]
  %s3 = inlined_call_operand.vmem [shape: bf16[208,128], index: 3, kind: output, shape index: {}]
  %s4 = sld [smem:[#allocation0]]
  $region22: #{autoencoder_forward.15} parent=0
    _
  %s6 = ssub.s32 1, %s4
  %s7 = scalar_select 0, %s6, %s4
  // Predicated region
  $region2: #{autoencoder_forward.15} parent=0 // pred_check
    _
  $region3: #{autoencoder_forward.15} parent=0 // pred_check_branch
    %9 = sbr.rel (0) target = $region5
  $region4: #{autoencoder_forward.15} parent=0 // pred_region
    _
  $region5: #{autoencoder_forward.15} parent=0 // pred_fallthru
    _
  // Predicated region
  $region6: #{autoencoder_forward.15} parent=0 // pred_check
    _
  $region7: #{autoencoder_forward.15} parent=0 // pred_check_branch
    %11 = sbr.rel (0) target = $region9
  $region8: #{autoencoder_forward.15} parent=0 // pred_region
    _
  $region9: #{autoencoder_forward.15} parent=0 // pred_fallthru
    _
  // Predicated region
  $region10: #{autoencoder_forward.15} parent=0 // pred_check
    _
  $region11: #{autoencoder_forward.15} parent=0 // pred_check_branch
    %13 = sbr.rel (0) target = $region13
  $region12: #{autoencoder_forward.15} parent=0 // pred_region
    _
  $region13: #{autoencoder_forward.15} parent=0 // pred_fallthru
    _
  %v15 = vld [vmem:[%s0] sm:$0xf]
  %v16 = vld [vmem:[%s0 + $0x4] sm:$0xf]
  %v17 = vld [vmem:[%s0 + $0x8] sm:$0xf]
  %v18 = vld [vmem:[%s0 + $0xc] sm:$0xf]
  %v19 = vld [vmem:[%s0 + $0x10] sm:$0xf]
  %v20 = vld [vmem:[%s0 + $0x14] sm:$0xf]
  %v21 = vld [vmem:[%s0 + $0x18] sm:$0xf]
  %v22 = vld [vmem:[%s0 + $0x1c] sm:$0xf]
  %v23 = vld [vmem:[%s0 + $0x20] sm:$0xf]
  %v24 = vld [vmem:[%s0 + $0x24] sm:$0xf]
  %v25 = vld [vmem:[%s0 + $0x28] sm:$0xf]
  %v26 = vld [vmem:[%s0 + $0x2c] sm:$0xf]
  %v27 = vld [vmem:[%s0 + $0x30] sm:$0xf]
  %v28 = vld [vmem:[%s0 + $0x34] sm:$0xf]
  %v29 = vld [vmem:[%s0 + $0x38] sm:$0xf]
  %v30 = vld [vmem:[%s0 + $0x3c] sm:$0xf]
  %v31 = vld [vmem:[%s0 + $0x40] sm:$0xf]
  %v32 = vld [vmem:[%s0 + $0x44] sm:$0xf]
  %v33 = vld [vmem:[%s0 + $0x48] sm:$0xf]
  %v34 = vld [vmem:[%s0 + $0x4c] sm:$0xf]
  %v35 = vld [vmem:[%s0 + $0x50] sm:$0xf]
  %v36 = vld [vmem:[%s0 + $0x54] sm:$0xf]
  %v37 = vld [vmem:[%s0 + $0x58] sm:$0xf]
  %v38 = vld [vmem:[%s0 + $0x5c] sm:$0xf]
  %v39 = vld [vmem:[%s0 + $0x60] sm:$0xf]
  %v40 = vld [vmem:[%s0 + $0x64] sm:$0xf]
  %v41 = vld [vmem:[%s1] sm:$0xf]
  %v42 = vld [vmem:[%s1 + $0x4] sm:$0xf]
  %v43 = vld [vmem:[%s0 + $0x68] sm:$0x1]
  %s44 = scalar_lea.vmem %s1, 8
  %v45 = vld [vmem:[%s44] sm:$0xf]
  %v46 = vld [vmem:[%s44 + $0x4] sm:$0xf]
  %v74 = vunpack.c.l.b16 %v15
  %v75 = vunpack.c.l.b16 %v16
  %v76 = vunpack.c.l.b16 %v17
  %v77 = vunpack.c.l.b16 %v18
  %v78 = vunpack.c.l.b16 %v19
  %v79 = vunpack.c.l.b16 %v20
  %v80 = vunpack.c.l.b16 %v21
  %v81 = vunpack.c.l.b16 %v22
  %v82 = vunpack.c.l.b16 %v23
  %v83 = vunpack.c.l.b16 %v24
  %v84 = vunpack.c.l.b16 %v25
  %v85 = vunpack.c.l.b16 %v26
  %v86 = vunpack.c.l.b16 %v27
  %v87 = vunpack.c.l.b16 %v28
  %v88 = vunpack.c.l.b16 %v29
  %v89 = vunpack.c.l.b16 %v30
  %v90 = vunpack.c.l.b16 %v31
  %v91 = vunpack.c.l.b16 %v32
  %v92 = vunpack.c.l.b16 %v33
  %v93 = vunpack.c.l.b16 %v34
  %v94 = vunpack.c.l.b16 %v35
  %v95 = vunpack.c.l.b16 %v36
  %v96 = vunpack.c.l.b16 %v37
  %v97 = vunpack.c.l.b16 %v38
  %v98 = vunpack.c.l.b16 %v39
  %v99 = vunpack.c.l.b16 %v40
  %v100 = vunpack.c.l.b16 %v43
  %v101 = vpack.c.b16 %v75, %v74
  %v102 = vpack.c.b16 %v77, %v76
  %v103 = vpack.c.b16 %v79, %v78
  %v104 = vpack.c.b16 %v81, %v80
  %v105 = vpack.c.b16 %v83, %v82
  %v106 = vpack.c.b16 %v85, %v84
  %v107 = vpack.c.b16 %v87, %v86
  %v108 = vpack.c.b16 %v89, %v88
  %v109 = vpack.c.b16 %v91, %v90
  %v110 = vpack.c.b16 %v93, %v92
  %v111 = vpack.c.b16 %v95, %v94
  %v112 = vpack.c.b16 %v97, %v96
  %v113 = vpack.c.b16 %v99, %v98
  %v114 = vpack.c.b16 %v100, %v100
  %vm115 = vsmask.f32 7424
  %v117 = vshrl.u32 %v101, 16
  %v119 = vshll.u32 %v101, 16
  %v121 = vrot.slane %v119, 1
  %v122 = vor.u32 %v117, %v121
  %v124 = vshll.u32 %v102, 16
  %v126 = vrot.slane %v124, 1
  %v127 = vsel %vm115, %v122, %v126
  %v128 = vshrl.u32 %v102, 16
  %v130 = vor.u32 %v128, %v126
  %v132 = vshll.u32 %v103, 16
  %v134 = vrot.slane %v132, 1
  %v135 = vsel %vm115, %v130, %v134
  %v136 = vshrl.u32 %v103, 16
  %v138 = vor.u32 %v136, %v134
  %v140 = vshll.u32 %v104, 16
  %v142 = vrot.slane %v140, 1
  %v143 = vsel %vm115, %v138, %v142
  %v144 = vshrl.u32 %v104, 16
  %v146 = vor.u32 %v144, %v142
  %v148 = vshll.u32 %v105, 16
  %v150 = vrot.slane %v148, 1
  %v151 = vsel %vm115, %v146, %v150
  %v152 = vshrl.u32 %v105, 16
  %v154 = vor.u32 %v152, %v150
  %v156 = vshll.u32 %v106, 16
  %v158 = vrot.slane %v156, 1
  %v159 = vsel %vm115, %v154, %v158
  %v160 = vshrl.u32 %v106, 16
  %v162 = vor.u32 %v160, %v158
  %v164 = vshll.u32 %v107, 16
  %v166 = vrot.slane %v164, 1
  %v167 = vsel %vm115, %v162, %v166
  %v168 = vshrl.u32 %v107, 16
  %v170 = vor.u32 %v168, %v166
  %v172 = vshll.u32 %v108, 16
  %v174 = vrot.slane %v172, 1
  %v175 = vsel %vm115, %v170, %v174
  %v176 = vshrl.u32 %v108, 16
  %v178 = vor.u32 %v176, %v174
  %v180 = vshll.u32 %v109, 16
  %v182 = vrot.slane %v180, 1
  %v183 = vsel %vm115, %v178, %v182
  %v184 = vshrl.u32 %v109, 16
  %v186 = vor.u32 %v184, %v182
  %v188 = vshll.u32 %v110, 16
  %v190 = vrot.slane %v188, 1
  %v191 = vsel %vm115, %v186, %v190
  %v192 = vshrl.u32 %v110, 16
  %v194 = vor.u32 %v192, %v190
  %v196 = vshll.u32 %v111, 16
  %v198 = vrot.slane %v196, 1
  %v199 = vsel %vm115, %v194, %v198
  %v200 = vshrl.u32 %v111, 16
  %v202 = vor.u32 %v200, %v198
  %v204 = vshll.u32 %v112, 16
  %v206 = vrot.slane %v204, 1
  %v207 = vsel %vm115, %v202, %v206
  %v208 = vshrl.u32 %v112, 16
  %v210 = vor.u32 %v208, %v206
  %v212 = vshll.u32 %v113, 16
  %v214 = vrot.slane %v212, 1
  %v215 = vsel %vm115, %v210, %v214
  %v216 = vshrl.u32 %v113, 16
  %v218 = vor.u32 %v216, %v214
  %v220 = vshll.u32 %v114, 16
  %v222 = vrot.slane %v220, 1
  %v223 = vsel %vm115, %v218, %v222
  %v226 = vunpack.c.l.b16 %v45
  %v227 = vunpack.c.l.b16 %v46
  %v228 = vpack.c.b16 %v227, %v226
  %vm230 = vcmask 130048
  %v232 = vsel %vm230, %v127, 0
  %v235 = vsel %vm230, %v135, 0
  %v238 = vsel %vm230, %v143, 0
  %v241 = vsel %vm230, %v151, 0
  %v244 = vsel %vm230, %v159, 0
  %v247 = vsel %vm230, %v167, 0
  %v250 = vsel %vm230, %v175, 0
  %v253 = vsel %vm230, %v183, 0
  %v256 = vsel %vm230, %v191, 0
  %v259 = vsel %vm230, %v199, 0
  %v262 = vsel %vm230, %v207, 0
  %v265 = vsel %vm230, %v215, 0
  %v268 = vsel %vm230, %v223, 0
  %270 = vmatpush.bf16.msra.mxu0 0
  %271 = vmatpush.bf16.msra.mxu0 0
  %272 = vmatpush.bf16.msra.mxu0 0
  %273 = vmatpush.bf16.msra.mxu0 0
  %274 = vmatpush.bf16.msra.mxu0 0
  %275 = vmatpush.bf16.msra.mxu0 0
  %276 = vmatpush.bf16.msra.mxu0 0
  %277 = vmatpush.bf16.msra.mxu0 %v228
  %278 = vmatmul.bf16.gmra.mxu0 %v232
  %v279 = vpop.f32.mrf.mxu0
  %v280 = vadd.f32 0.0, %v279
  %v281 = vpop.f32.mrf.mxu0
  %v282 = vadd.f32 0.0, %v281
  %283 = vmatmul.bf16.gmra.mxu0 %v235
  %v284 = vpop.f32.mrf.mxu0
  %v285 = vadd.f32 0.0, %v284
  %v286 = vpop.f32.mrf.mxu0
  %v287 = vadd.f32 0.0, %v286
  %288 = vmatmul.bf16.gmra.mxu0 %v238
  %v289 = vpop.f32.mrf.mxu0
  %v290 = vadd.f32 0.0, %v289
  %v291 = vpop.f32.mrf.mxu0
  %v292 = vadd.f32 0.0, %v291
  %293 = vmatmul.bf16.gmra.mxu0 %v241
  %v294 = vpop.f32.mrf.mxu0
  %v295 = vadd.f32 0.0, %v294
  %v296 = vpop.f32.mrf.mxu0
  %v297 = vadd.f32 0.0, %v296
  %298 = vmatmul.bf16.gmra.mxu0 %v244
  %v299 = vpop.f32.mrf.mxu0
  %v300 = vadd.f32 0.0, %v299
  %v301 = vpop.f32.mrf.mxu0
  %v302 = vadd.f32 0.0, %v301
  %303 = vmatmul.bf16.gmra.mxu0 %v247
  %v304 = vpop.f32.mrf.mxu0
  %v305 = vadd.f32 0.0, %v304
  %v306 = vpop.f32.mrf.mxu0
  %v307 = vadd.f32 0.0, %v306
  %308 = vmatmul.bf16.gmra.mxu0 %v250
  %v309 = vpop.f32.mrf.mxu0
  %v310 = vadd.f32 0.0, %v309
  %v311 = vpop.f32.mrf.mxu0
  %v312 = vadd.f32 0.0, %v311
  %313 = vmatmul.bf16.gmra.mxu0 %v253
  %v314 = vpop.f32.mrf.mxu0
  %v315 = vadd.f32 0.0, %v314
  %v316 = vpop.f32.mrf.mxu0
  %v317 = vadd.f32 0.0, %v316
  %318 = vmatmul.bf16.gmra.mxu0 %v256
  %v319 = vpop.f32.mrf.mxu0
  %v320 = vadd.f32 0.0, %v319
  %v321 = vpop.f32.mrf.mxu0
  %v322 = vadd.f32 0.0, %v321
  %323 = vmatmul.bf16.gmra.mxu0 %v259
  %v324 = vpop.f32.mrf.mxu0
  %v325 = vadd.f32 0.0, %v324
  %v326 = vpop.f32.mrf.mxu0
  %v327 = vadd.f32 0.0, %v326
  %328 = vmatmul.bf16.gmra.mxu0 %v262
  %v329 = vpop.f32.mrf.mxu0
  %v330 = vadd.f32 0.0, %v329
  %v331 = vpop.f32.mrf.mxu0
  %v332 = vadd.f32 0.0, %v331
  %333 = vmatmul.bf16.gmra.mxu0 %v265
  %v334 = vpop.f32.mrf.mxu0
  %v335 = vadd.f32 0.0, %v334
  %v336 = vpop.f32.mrf.mxu0
  %v337 = vadd.f32 0.0, %v336
  %338 = vmatmul.bf16.gmra.mxu0 %v268
  %v339 = vpop.f32.mrf.mxu0
  %v340 = vadd.f32 0.0, %v339
  %v341 = vpop.f32.mrf.mxu0
  %v342 = vadd.f32 0.0, %v341
  %343 = vdwg.mxu0
  %v346 = vunpack.c.l.b16 %v41
  %v347 = vunpack.c.l.b16 %v42
  %v348 = vpack.c.b16 %v347, %v346
  %v350 = vsel %vm230, %v101, 0
  %v352 = vsel %vm230, %v102, 0
  %v354 = vsel %vm230, %v103, 0
  %v356 = vsel %vm230, %v104, 0
  %v358 = vsel %vm230, %v105, 0
  %v360 = vsel %vm230, %v106, 0
  %v362 = vsel %vm230, %v107, 0
  %v364 = vsel %vm230, %v108, 0
  %v366 = vsel %vm230, %v109, 0
  %v368 = vsel %vm230, %v110, 0
  %v370 = vsel %vm230, %v111, 0
  %v372 = vsel %vm230, %v112, 0
  %v374 = vsel %vm230, %v113, 0
  %376 = vmatpush.bf16.msra.mxu0 0
  %377 = vmatpush.bf16.msra.mxu0 0
  %378 = vmatpush.bf16.msra.mxu0 0
  %379 = vmatpush.bf16.msra.mxu0 0
  %380 = vmatpush.bf16.msra.mxu0 0
  %381 = vmatpush.bf16.msra.mxu0 0
  %382 = vmatpush.bf16.msra.mxu0 0
  %383 = vmatpush.bf16.msra.mxu0 %v348
  %384 = vmatmul.bf16.gmra.mxu0 %v350
  %v385 = vpop.f32.mrf.mxu0
  %v386 = vadd.f32 %v280, %v385
  %v387 = vpop.f32.mrf.mxu0
  %v388 = vadd.f32 %v282, %v387
  %389 = vmatmul.bf16.gmra.mxu0 %v352
  %v390 = vpop.f32.mrf.mxu0
  %v391 = vadd.f32 %v285, %v390
  %v392 = vpop.f32.mrf.mxu0
  %v393 = vadd.f32 %v287, %v392
  %394 = vmatmul.bf16.gmra.mxu0 %v354
  %v395 = vpop.f32.mrf.mxu0
  %v396 = vadd.f32 %v290, %v395
  %v397 = vpop.f32.mrf.mxu0
  %v398 = vadd.f32 %v292, %v397
  %399 = vmatmul.bf16.gmra.mxu0 %v356
  %v400 = vpop.f32.mrf.mxu0
  %v401 = vadd.f32 %v295, %v400
  %v402 = vpop.f32.mrf.mxu0
  %v403 = vadd.f32 %v297, %v402
  %404 = vmatmul.bf16.gmra.mxu0 %v358
  %v405 = vpop.f32.mrf.mxu0
  %v406 = vadd.f32 %v300, %v405
  %v407 = vpop.f32.mrf.mxu0
  %v408 = vadd.f32 %v302, %v407
  %409 = vmatmul.bf16.gmra.mxu0 %v360
  %v410 = vpop.f32.mrf.mxu0
  %v411 = vadd.f32 %v305, %v410
  %v412 = vpop.f32.mrf.mxu0
  %v413 = vadd.f32 %v307, %v412
  %414 = vmatmul.bf16.gmra.mxu0 %v362
  %v415 = vpop.f32.mrf.mxu0
  %v416 = vadd.f32 %v310, %v415
  %v417 = vpop.f32.mrf.mxu0
  %v418 = vadd.f32 %v312, %v417
  %419 = vmatmul.bf16.gmra.mxu0 %v364
  %v420 = vpop.f32.mrf.mxu0
  %v421 = vadd.f32 %v315, %v420
  %v422 = vpop.f32.mrf.mxu0
  %v423 = vadd.f32 %v317, %v422
  %424 = vmatmul.bf16.gmra.mxu0 %v366
  %v425 = vpop.f32.mrf.mxu0
  %v426 = vadd.f32 %v320, %v425
  %v427 = vpop.f32.mrf.mxu0
  %v428 = vadd.f32 %v322, %v427
  %429 = vmatmul.bf16.gmra.mxu0 %v368
  %v430 = vpop.f32.mrf.mxu0
  %v431 = vadd.f32 %v325, %v430
  %v432 = vpop.f32.mrf.mxu0
  %v433 = vadd.f32 %v327, %v432
  %434 = vmatmul.bf16.gmra.mxu0 %v370
  %v435 = vpop.f32.mrf.mxu0
  %v436 = vadd.f32 %v330, %v435
  %v437 = vpop.f32.mrf.mxu0
  %v438 = vadd.f32 %v332, %v437
  %439 = vmatmul.bf16.gmra.mxu0 %v372
  %v440 = vpop.f32.mrf.mxu0
  %v441 = vadd.f32 %v335, %v440
  %v442 = vpop.f32.mrf.mxu0
  %v443 = vadd.f32 %v337, %v442
  %444 = vmatmul.bf16.gmra.mxu0 %v374
  %v445 = vpop.f32.mrf.mxu0
  %v446 = vadd.f32 %v340, %v445
  %v447 = vpop.f32.mrf.mxu0
  %v448 = vadd.f32 %v342, %v447
  %449 = vdwg.mxu0
  %v450 = vld [vmem:[%s0 + $0x4] sm:$0xe]
  %v451 = vld [vmem:[%s0 + $0x8] sm:$0xf]
  %v452 = vld [vmem:[%s0 + $0xc] sm:$0xf]
  %v453 = vld [vmem:[%s0 + $0x10] sm:$0xf]
  %v454 = vld [vmem:[%s0 + $0x14] sm:$0xf]
  %v455 = vld [vmem:[%s0 + $0x18] sm:$0xf]
  %v456 = vld [vmem:[%s0 + $0x1c] sm:$0xf]
  %v457 = vld [vmem:[%s0 + $0x20] sm:$0xf]
  %v458 = vld [vmem:[%s0 + $0x24] sm:$0xf]
  %v459 = vld [vmem:[%s0 + $0x28] sm:$0xf]
  %v460 = vld [vmem:[%s0 + $0x2c] sm:$0xf]
  %v461 = vld [vmem:[%s0 + $0x30] sm:$0xf]
  %v462 = vld [vmem:[%s0 + $0x34] sm:$0xf]
  %v463 = vld [vmem:[%s0 + $0x38] sm:$0xf]
  %v464 = vld [vmem:[%s0 + $0x3c] sm:$0xf]
  %v465 = vld [vmem:[%s0 + $0x40] sm:$0xf]
  %v466 = vld [vmem:[%s0 + $0x44] sm:$0xf]
  %v467 = vld [vmem:[%s0 + $0x48] sm:$0xf]
  %v468 = vld [vmem:[%s0 + $0x4c] sm:$0xf]
  %v469 = vld [vmem:[%s0 + $0x50] sm:$0xf]
  %v470 = vld [vmem:[%s0 + $0x54] sm:$0xf]
  %v471 = vld [vmem:[%s0 + $0x58] sm:$0xf]
  %v472 = vld [vmem:[%s0 + $0x5c] sm:$0xf]
  %v473 = vld [vmem:[%s0 + $0x60] sm:$0xf]
  %v474 = vld [vmem:[%s0 + $0x64] sm:$0xf]
  %v475 = vld [vmem:[%s0 + $0x68] sm:$0xf]
  %v476 = vld [vmem:[%s0 + $0x6c] sm:$0x1]
  %s477 = scalar_lea.vmem %s1, 16
  %v478 = vld [vmem:[%s477] sm:$0xf]
  %v479 = vld [vmem:[%s477 + $0x4] sm:$0xf]
  %v507 = vunpack.c.l.b16 %v450
  %v508 = vunpack.c.l.b16 %v451
  %v509 = vunpack.c.l.b16 %v452
  %v510 = vunpack.c.l.b16 %v453
  %v511 = vunpack.c.l.b16 %v454
  %v512 = vunpack.c.l.b16 %v455
  %v513 = vunpack.c.l.b16 %v456
  %v514 = vunpack.c.l.b16 %v457
  %v515 = vunpack.c.l.b16 %v458
  %v516 = vunpack.c.l.b16 %v459
  %v517 = vunpack.c.l.b16 %v460
  %v518 = vunpack.c.l.b16 %v461
  %v519 = vunpack.c.l.b16 %v462
  %v520 = vunpack.c.l.b16 %v463
  %v521 = vunpack.c.l.b16 %v464
  %v522 = vunpack.c.l.b16 %v465
  %v523 = vunpack.c.l.b16 %v466
  %v524 = vunpack.c.l.b16 %v467
  %v525 = vunpack.c.l.b16 %v468
  %v526 = vunpack.c.l.b16 %v469
  %v527 = vunpack.c.l.b16 %v470
  %v528 = vunpack.c.l.b16 %v471
  %v529 = vunpack.c.l.b16 %v472
  %v530 = vunpack.c.l.b16 %v473
  %v531 = vunpack.c.l.b16 %v474
  %v532 = vunpack.c.l.b16 %v475
  %v533 = vunpack.c.l.b16 %v476
  %v534 = vpack.c.b16 %v508, %v507
  %v535 = vpack.c.b16 %v510, %v509
  %v536 = vpack.c.b16 %v512, %v511
  %v537 = vpack.c.b16 %v514, %v513
  %v538 = vpack.c.b16 %v516, %v515
  %v539 = vpack.c.b16 %v518, %v517
  %v540 = vpack.c.b16 %v520, %v519
  %v541 = vpack.c.b16 %v522, %v521
  %v542 = vpack.c.b16 %v524, %v523
  %v543 = vpack.c.b16 %v526, %v525
  %v544 = vpack.c.b16 %v528, %v527
  %v545 = vpack.c.b16 %v530, %v529
  %v546 = vpack.c.b16 %v532, %v531
  %v547 = vpack.c.b16 %v533, %v533
  %vm548 = vcmask 1046528
  %v549 = vrot.slane %v534, 1
  %v550 = vrot.slane %v535, 1
  %v551 = vsel %vm548, %v549, %v550
  %v552 = vrot.slane %v536, 1
  %v553 = vsel %vm548, %v550, %v552
  %v554 = vrot.slane %v537, 1
  %v555 = vsel %vm548, %v552, %v554
  %v556 = vrot.slane %v538, 1
  %v557 = vsel %vm548, %v554, %v556
  %v558 = vrot.slane %v539, 1
  %v559 = vsel %vm548, %v556, %v558
  %v560 = vrot.slane %v540, 1
  %v561 = vsel %vm548, %v558, %v560
  %v562 = vrot.slane %v541, 1
  %v563 = vsel %vm548, %v560, %v562
  %v564 = vrot.slane %v542, 1
  %v565 = vsel %vm548, %v562, %v564
  %v566 = vrot.slane %v543, 1
  %v567 = vsel %vm548, %v564, %v566
  %v568 = vrot.slane %v544, 1
  %v569 = vsel %vm548, %v566, %v568
  %v570 = vrot.slane %v545, 1
  %v571 = vsel %vm548, %v568, %v570
  %v572 = vrot.slane %v546, 1
  %v573 = vsel %vm548, %v570, %v572
  %v574 = vrot.slane %v547, 1
  %v575 = vsel %vm548, %v572, %v574
  %v578 = vunpack.c.l.b16 %v478
  %v579 = vunpack.c.l.b16 %v479
  %v580 = vpack.c.b16 %v579, %v578
  %v583 = vsel %vm230, %v551, 0
  %v586 = vsel %vm230, %v553, 0
  %v589 = vsel %vm230, %v555, 0
  %v592 = vsel %vm230, %v557, 0
  %v595 = vsel %vm230, %v559, 0
  %v598 = vsel %vm230, %v561, 0
  %v601 = vsel %vm230, %v563, 0
  %v604 = vsel %vm230, %v565, 0
  %v607 = vsel %vm230, %v567, 0
  %v610 = vsel %vm230, %v569, 0
  %v613 = vsel %vm230, %v571, 0
  %v616 = vsel %vm230, %v573, 0
  %v619 = vsel %vm230, %v575, 0
  %621 = vmatpush.bf16.msra.mxu0 0
  %622 = vmatpush.bf16.msra.mxu0 0
  %623 = vmatpush.bf16.msra.mxu0 0
  %624 = vmatpush.bf16.msra.mxu0 0
  %625 = vmatpush.bf16.msra.mxu0 0
  %626 = vmatpush.bf16.msra.mxu0 0
  %627 = vmatpush.bf16.msra.mxu0 0
  %628 = vmatpush.bf16.msra.mxu0 %v580
  %629 = vmatmul.bf16.gmra.mxu0 %v583
  %v630 = vpop.f32.mrf.mxu0
  %v631 = vadd.f32 0.0, %v630
  %v632 = vpop.f32.mrf.mxu0
  %v633 = vadd.f32 0.0, %v632
  %634 = vmatmul.bf16.gmra.mxu0 %v586
  %v635 = vpop.f32.mrf.mxu0
  %v636 = vadd.f32 0.0, %v635
  %v637 = vpop.f32.mrf.mxu0
  %v638 = vadd.f32 0.0, %v637
  %639 = vmatmul.bf16.gmra.mxu0 %v589
  %v640 = vpop.f32.mrf.mxu0
  %v641 = vadd.f32 0.0, %v640
  %v642 = vpop.f32.mrf.mxu0
  %v643 = vadd.f32 0.0, %v642
  %644 = vmatmul.bf16.gmra.mxu0 %v592
  %v645 = vpop.f32.mrf.mxu0
  %v646 = vadd.f32 0.0, %v645
  %v647 = vpop.f32.mrf.mxu0
  %v648 = vadd.f32 0.0, %v647
  %649 = vmatmul.bf16.gmra.mxu0 %v595
  %v650 = vpop.f32.mrf.mxu0
  %v651 = vadd.f32 0.0, %v650
  %v652 = vpop.f32.mrf.mxu0
  %v653 = vadd.f32 0.0, %v652
  %654 = vmatmul.bf16.gmra.mxu0 %v598
  %v655 = vpop.f32.mrf.mxu0
  %v656 = vadd.f32 0.0, %v655
  %v657 = vpop.f32.mrf.mxu0
  %v658 = vadd.f32 0.0, %v657
  %659 = vmatmul.bf16.gmra.mxu0 %v601
  %v660 = vpop.f32.mrf.mxu0
  %v661 = vadd.f32 0.0, %v660
  %v662 = vpop.f32.mrf.mxu0
  %v663 = vadd.f32 0.0, %v662
  %664 = vmatmul.bf16.gmra.mxu0 %v604
  %v665 = vpop.f32.mrf.mxu0
  %v666 = vadd.f32 0.0, %v665
  %v667 = vpop.f32.mrf.mxu0
  %v668 = vadd.f32 0.0, %v667
  %669 = vmatmul.bf16.gmra.mxu0 %v607
  %v670 = vpop.f32.mrf.mxu0
  %v671 = vadd.f32 0.0, %v670
  %v672 = vpop.f32.mrf.mxu0
  %v673 = vadd.f32 0.0, %v672
  %674 = vmatmul.bf16.gmra.mxu0 %v610
  %v675 = vpop.f32.mrf.mxu0
  %v676 = vadd.f32 0.0, %v675
  %v677 = vpop.f32.mrf.mxu0
  %v678 = vadd.f32 0.0, %v677
  %679 = vmatmul.bf16.gmra.mxu0 %v613
  %v680 = vpop.f32.mrf.mxu0
  %v681 = vadd.f32 0.0, %v680
  %v682 = vpop.f32.mrf.mxu0
  %v683 = vadd.f32 0.0, %v682
  %684 = vmatmul.bf16.gmra.mxu0 %v616
  %v685 = vpop.f32.mrf.mxu0
  %v686 = vadd.f32 0.0, %v685
  %v687 = vpop.f32.mrf.mxu0
  %v688 = vadd.f32 0.0, %v687
  %689 = vmatmul.bf16.gmra.mxu0 %v619
  %v690 = vpop.f32.mrf.mxu0
  %v691 = vadd.f32 0.0, %v690
  %v692 = vpop.f32.mrf.mxu0
  %v693 = vadd.f32 0.0, %v692
  %694 = vdwg.mxu0
  %v695 = vadd.f32 %v386, %v631
  %v696 = vadd.f32 %v388, %v633
  %v697 = vadd.f32 %v391, %v636
  %v698 = vadd.f32 %v393, %v638
  %v699 = vadd.f32 %v396, %v641
  %v700 = vadd.f32 %v398, %v643
  %v701 = vadd.f32 %v401, %v646
  %v702 = vadd.f32 %v403, %v648
  %v703 = vadd.f32 %v406, %v651
  %v704 = vadd.f32 %v408, %v653
  %v705 = vadd.f32 %v411, %v656
  %v706 = vadd.f32 %v413, %v658
  %v707 = vadd.f32 %v416, %v661
  %v708 = vadd.f32 %v418, %v663
  %v709 = vadd.f32 %v421, %v666
  %v710 = vadd.f32 %v423, %v668
  %v711 = vadd.f32 %v426, %v671
  %v712 = vadd.f32 %v428, %v673
  %v713 = vadd.f32 %v431, %v676
  %v714 = vadd.f32 %v433, %v678
  %v715 = vadd.f32 %v436, %v681
  %v716 = vadd.f32 %v438, %v683
  %v717 = vadd.f32 %v441, %v686
  %v718 = vadd.f32 %v443, %v688
  %v719 = vadd.f32 %v446, %v691
  %v720 = vadd.f32 %v448, %v693
  %v721 = vld [vmem:[%s0 + $0x6c] sm:$0x3]
  %s722 = scalar_lea.vmem %s1, 24
  %v723 = vld [vmem:[%s722] sm:$0xf]
  %v724 = vld [vmem:[%s722 + $0x4] sm:$0xf]
  %v726 = vunpack.c.l.b16 %v721
  %v727 = vpack.c.b16 %v726, %v726
  %vm728 = vsmask.f32 6400
  %v730 = vshrl.u32 %v534, 16
  %v732 = vrot.slane %v730, 1
  %v733 = vshll.u32 %v534, 16
  %v735 = vrot.slane %v733, 2
  %v736 = vor.u32 %v732, %v735
  %v738 = vshrl.u32 %v535, 16
  %v740 = vrot.slane %v738, 1
  %v741 = vshll.u32 %v535, 16
  %v743 = vrot.slane %v741, 2
  %v744 = vor.u32 %v740, %v743
  %v745 = vsel %vm728, %v736, %v744
  %v747 = vshrl.u32 %v536, 16
  %v749 = vrot.slane %v747, 1
  %v750 = vshll.u32 %v536, 16
  %v752 = vrot.slane %v750, 2
  %v753 = vor.u32 %v749, %v752
  %v754 = vsel %vm728, %v744, %v753
  %v756 = vshrl.u32 %v537, 16
  %v758 = vrot.slane %v756, 1
  %v759 = vshll.u32 %v537, 16
  %v761 = vrot.slane %v759, 2
  %v762 = vor.u32 %v758, %v761
  %v763 = vsel %vm728, %v753, %v762
  %v765 = vshrl.u32 %v538, 16
  %v767 = vrot.slane %v765, 1
  %v768 = vshll.u32 %v538, 16
  %v770 = vrot.slane %v768, 2
  %v771 = vor.u32 %v767, %v770
  %v772 = vsel %vm728, %v762, %v771
  %v774 = vshrl.u32 %v539, 16
  %v776 = vrot.slane %v774, 1
  %v777 = vshll.u32 %v539, 16
  %v779 = vrot.slane %v777, 2
  %v780 = vor.u32 %v776, %v779
  %v781 = vsel %vm728, %v771, %v780
  %v783 = vshrl.u32 %v540, 16
  %v785 = vrot.slane %v783, 1
  %v786 = vshll.u32 %v540, 16
  %v788 = vrot.slane %v786, 2
  %v789 = vor.u32 %v785, %v788
  %v790 = vsel %vm728, %v780, %v789
  %v792 = vshrl.u32 %v541, 16
  %v794 = vrot.slane %v792, 1
  %v795 = vshll.u32 %v541, 16
  %v797 = vrot.slane %v795, 2
  %v798 = vor.u32 %v794, %v797
  %v799 = vsel %vm728, %v789, %v798
  %v801 = vshrl.u32 %v542, 16
  %v803 = vrot.slane %v801, 1
  %v804 = vshll.u32 %v542, 16
  %v806 = vrot.slane %v804, 2
  %v807 = vor.u32 %v803, %v806
  %v808 = vsel %vm728, %v798, %v807
  %v810 = vshrl.u32 %v543, 16
  %v812 = vrot.slane %v810, 1
  %v813 = vshll.u32 %v543, 16
  %v815 = vrot.slane %v813, 2
  %v816 = vor.u32 %v812, %v815
  %v817 = vsel %vm728, %v807, %v816
  %v819 = vshrl.u32 %v544, 16
  %v821 = vrot.slane %v819, 1
  %v822 = vshll.u32 %v544, 16
  %v824 = vrot.slane %v822, 2
  %v825 = vor.u32 %v821, %v824
  %v826 = vsel %vm728, %v816, %v825
  %v828 = vshrl.u32 %v545, 16
  %v830 = vrot.slane %v828, 1
  %v831 = vshll.u32 %v545, 16
  %v833 = vrot.slane %v831, 2
  %v834 = vor.u32 %v830, %v833
  %v835 = vsel %vm728, %v825, %v834
  %v837 = vshrl.u32 %v546, 16
  %v839 = vrot.slane %v837, 1
  %v840 = vshll.u32 %v546, 16
  %v842 = vrot.slane %v840, 2
  %v843 = vor.u32 %v839, %v842
  %v844 = vsel %vm728, %v834, %v843
  %v846 = vshrl.u32 %v727, 16
  %v848 = vrot.slane %v846, 1
  %v849 = vshll.u32 %v727, 16
  %v851 = vrot.slane %v849, 2
  %v852 = vor.u32 %v848, %v851
  %v853 = vsel %vm728, %v843, %v852
  %v856 = vunpack.c.l.b16 %v723
  %v857 = vunpack.c.l.b16 %v724
  %v858 = vpack.c.b16 %v857, %v856
  %v861 = vsel %vm230, %v745, 0
  %v864 = vsel %vm230, %v754, 0
  %v867 = vsel %vm230, %v763, 0
  %v870 = vsel %vm230, %v772, 0
  %v873 = vsel %vm230, %v781, 0
  %v876 = vsel %vm230, %v790, 0
  %v879 = vsel %vm230, %v799, 0
  %v882 = vsel %vm230, %v808, 0
  %v885 = vsel %vm230, %v817, 0
  %v888 = vsel %vm230, %v826, 0
  %v891 = vsel %vm230, %v835, 0
  %v894 = vsel %vm230, %v844, 0
  %v897 = vsel %vm230, %v853, 0
  %899 = vmatpush.bf16.msra.mxu0 0
  %900 = vmatpush.bf16.msra.mxu0 0
  %901 = vmatpush.bf16.msra.mxu0 0
  %902 = vmatpush.bf16.msra.mxu0 0
  %903 = vmatpush.bf16.msra.mxu0 0
  %904 = vmatpush.bf16.msra.mxu0 0
  %905 = vmatpush.bf16.msra.mxu0 0
  %906 = vmatpush.bf16.msra.mxu0 %v858
  %907 = vmatmul.bf16.gmra.mxu0 %v861
  %v908 = vpop.f32.mrf.mxu0
  %v909 = vadd.f32 0.0, %v908
  %v910 = vpop.f32.mrf.mxu0
  %v911 = vadd.f32 0.0, %v910
  %912 = vmatmul.bf16.gmra.mxu0 %v864
  %v913 = vpop.f32.mrf.mxu0
  %v914 = vadd.f32 0.0, %v913
  %v915 = vpop.f32.mrf.mxu0
  %v916 = vadd.f32 0.0, %v915
  %917 = vmatmul.bf16.gmra.mxu0 %v867
  %v918 = vpop.f32.mrf.mxu0
  %v919 = vadd.f32 0.0, %v918
  %v920 = vpop.f32.mrf.mxu0
  %v921 = vadd.f32 0.0, %v920
  %922 = vmatmul.bf16.gmra.mxu0 %v870
  %v923 = vpop.f32.mrf.mxu0
  %v924 = vadd.f32 0.0, %v923
  %v925 = vpop.f32.mrf.mxu0
  %v926 = vadd.f32 0.0, %v925
  %927 = vmatmul.bf16.gmra.mxu0 %v873
  %v928 = vpop.f32.mrf.mxu0
  %v929 = vadd.f32 0.0, %v928
  %v930 = vpop.f32.mrf.mxu0
  %v931 = vadd.f32 0.0, %v930
  %932 = vmatmul.bf16.gmra.mxu0 %v876
  %v933 = vpop.f32.mrf.mxu0
  %v934 = vadd.f32 0.0, %v933
  %v935 = vpop.f32.mrf.mxu0
  %v936 = vadd.f32 0.0, %v935
  %937 = vmatmul.bf16.gmra.mxu0 %v879
  %v938 = vpop.f32.mrf.mxu0
  %v939 = vadd.f32 0.0, %v938
  %v940 = vpop.f32.mrf.mxu0
  %v941 = vadd.f32 0.0, %v940
  %942 = vmatmul.bf16.gmra.mxu0 %v882
  %v943 = vpop.f32.mrf.mxu0
  %v944 = vadd.f32 0.0, %v943
  %v945 = vpop.f32.mrf.mxu0
  %v946 = vadd.f32 0.0, %v945
  %947 = vmatmul.bf16.gmra.mxu0 %v885
  %v948 = vpop.f32.mrf.mxu0
  %v949 = vadd.f32 0.0, %v948
  %v950 = vpop.f32.mrf.mxu0
  %v951 = vadd.f32 0.0, %v950
  %952 = vmatmul.bf16.gmra.mxu0 %v888
  %v953 = vpop.f32.mrf.mxu0
  %v954 = vadd.f32 0.0, %v953
  %v955 = vpop.f32.mrf.mxu0
  %v956 = vadd.f32 0.0, %v955
  %957 = vmatmul.bf16.gmra.mxu0 %v891
  %v958 = vpop.f32.mrf.mxu0
  %v959 = vadd.f32 0.0, %v958
  %v960 = vpop.f32.mrf.mxu0
  %v961 = vadd.f32 0.0, %v960
  %962 = vmatmul.bf16.gmra.mxu0 %v894
  %v963 = vpop.f32.mrf.mxu0
  %v964 = vadd.f32 0.0, %v963
  %v965 = vpop.f32.mrf.mxu0
  %v966 = vadd.f32 0.0, %v965
  %967 = vmatmul.bf16.gmra.mxu0 %v897
  %v968 = vpop.f32.mrf.mxu0
  %v969 = vadd.f32 0.0, %v968
  %v970 = vpop.f32.mrf.mxu0
  %v971 = vadd.f32 0.0, %v970
  %972 = vdwg.mxu0
  %v973 = vadd.f32 %v695, %v909
  %v974 = vadd.f32 %v696, %v911
  %v975 = vadd.f32 %v697, %v914
  %v976 = vadd.f32 %v698, %v916
  %v977 = vadd.f32 %v699, %v919
  %v978 = vadd.f32 %v700, %v921
  %v979 = vadd.f32 %v701, %v924
  %v980 = vadd.f32 %v702, %v926
  %v981 = vadd.f32 %v703, %v929
  %v982 = vadd.f32 %v704, %v931
  %v983 = vadd.f32 %v705, %v934
  %v984 = vadd.f32 %v706, %v936
  %v985 = vadd.f32 %v707, %v939
  %v986 = vadd.f32 %v708, %v941
  %v987 = vadd.f32 %v709, %v944
  %v988 = vadd.f32 %v710, %v946
  %v989 = vadd.f32 %v711, %v949
  %v990 = vadd.f32 %v712, %v951
  %v991 = vadd.f32 %v713, %v954
  %v992 = vadd.f32 %v714, %v956
  %v993 = vadd.f32 %v715, %v959
  %v994 = vadd.f32 %v716, %v961
  %v995 = vadd.f32 %v717, %v964
  %v996 = vadd.f32 %v718, %v966
  %v997 = vadd.f32 %v719, %v969
  %v998 = vadd.f32 %v720, %v971
  %v999 = vld [vmem:[%s2] sm:$0x1]
  %v1001 = vperm.slane %v999, 0
  %v1003 = vadd.f32 %v973, %v1001
  %v1004 = vadd.f32 %v974, %v1001
  %v1005 = vadd.f32 %v975, %v1001
  %v1006 = vadd.f32 %v976, %v1001
  %v1007 = vadd.f32 %v977, %v1001
  %v1008 = vadd.f32 %v978, %v1001
  %v1009 = vadd.f32 %v979, %v1001
  %v1010 = vadd.f32 %v980, %v1001
  %v1011 = vadd.f32 %v981, %v1001
  %v1012 = vadd.f32 %v982, %v1001
  %v1013 = vadd.f32 %v983, %v1001
  %v1014 = vadd.f32 %v984, %v1001
  %v1015 = vadd.f32 %v985, %v1001
  %v1016 = vadd.f32 %v986, %v1001
  %v1017 = vadd.f32 %v987, %v1001
  %v1018 = vadd.f32 %v988, %v1001
  %v1019 = vadd.f32 %v989, %v1001
  %v1020 = vadd.f32 %v990, %v1001
  %v1021 = vadd.f32 %v991, %v1001
  %v1022 = vadd.f32 %v992, %v1001
  %v1023 = vadd.f32 %v993, %v1001
  %v1024 = vadd.f32 %v994, %v1001
  %v1025 = vadd.f32 %v995, %v1001
  %v1026 = vadd.f32 %v996, %v1001
  %v1027 = vadd.f32 %v997, %v1001
  %v1028 = vadd.f32 %v998, %v1001
  %v1029 = vxor.u32 %v1003, 2147483648
  %v1030 = vxor.u32 %v1004, 2147483648
  %v1031 = vxor.u32 %v1005, 2147483648
  %v1032 = vxor.u32 %v1006, 2147483648
  %v1033 = vxor.u32 %v1007, 2147483648
  %v1034 = vxor.u32 %v1008, 2147483648
  %v1035 = vxor.u32 %v1009, 2147483648
  %v1036 = vxor.u32 %v1010, 2147483648
  %v1037 = vxor.u32 %v1011, 2147483648
  %v1038 = vxor.u32 %v1012, 2147483648
  %v1039 = vxor.u32 %v1013, 2147483648
  %v1040 = vxor.u32 %v1014, 2147483648
  %v1041 = vxor.u32 %v1015, 2147483648
  %v1042 = vxor.u32 %v1016, 2147483648
  %v1043 = vxor.u32 %v1017, 2147483648
  %v1044 = vxor.u32 %v1018, 2147483648
  %v1045 = vxor.u32 %v1019, 2147483648
  %v1046 = vxor.u32 %v1020, 2147483648
  %v1047 = vxor.u32 %v1021, 2147483648
  %v1048 = vxor.u32 %v1022, 2147483648
  %v1049 = vxor.u32 %v1023, 2147483648
  %v1050 = vxor.u32 %v1024, 2147483648
  %v1051 = vxor.u32 %v1025, 2147483648
  %v1052 = vxor.u32 %v1026, 2147483648
  %v1053 = vxor.u32 %v1027, 2147483648
  %v1054 = vxor.u32 %v1028, 2147483648
  %v1055 = vmul.f32 %v1029, 1.442695
  %v1056 = vpow.pop %v1055
  %v1057 = vmul.f32 %v1030, 1.442695
  %v1058 = vpow.pop %v1057
  %v1059 = vmul.f32 %v1031, 1.442695
  %v1060 = vpow.pop %v1059
  %v1061 = vmul.f32 %v1032, 1.442695
  %v1062 = vpow.pop %v1061
  %v1063 = vmul.f32 %v1033, 1.442695
  %v1064 = vpow.pop %v1063
  %v1065 = vmul.f32 %v1034, 1.442695
  %v1066 = vpow.pop %v1065
  %v1067 = vmul.f32 %v1035, 1.442695
  %v1068 = vpow.pop %v1067
  %v1069 = vmul.f32 %v1036, 1.442695
  %v1070 = vpow.pop %v1069
  %v1071 = vmul.f32 %v1037, 1.442695
  %v1072 = vpow.pop %v1071
  %v1073 = vmul.f32 %v1038, 1.442695
  %v1074 = vpow.pop %v1073
  %v1075 = vmul.f32 %v1039, 1.442695
  %v1076 = vpow.pop %v1075
  %v1077 = vmul.f32 %v1040, 1.442695
  %v1078 = vpow.pop %v1077
  %v1079 = vmul.f32 %v1041, 1.442695
  %v1080 = vpow.pop %v1079
  %v1081 = vmul.f32 %v1042, 1.442695
  %v1082 = vpow.pop %v1081
  %v1083 = vmul.f32 %v1043, 1.442695
  %v1084 = vpow.pop %v1083
  %v1085 = vmul.f32 %v1044, 1.442695
  %v1086 = vpow.pop %v1085
  %v1087 = vmul.f32 %v1045, 1.442695
  %v1088 = vpow.pop %v1087
  %v1089 = vmul.f32 %v1046, 1.442695
  %v1090 = vpow.pop %v1089
  %v1091 = vmul.f32 %v1047, 1.442695
  %v1092 = vpow.pop %v1091
  %v1093 = vmul.f32 %v1048, 1.442695
  %v1094 = vpow.pop %v1093
  %v1095 = vmul.f32 %v1049, 1.442695
  %v1096 = vpow.pop %v1095
  %v1097 = vmul.f32 %v1050, 1.442695
  %v1098 = vpow.pop %v1097
  %v1099 = vmul.f32 %v1051, 1.442695
  %v1100 = vpow.pop %v1099
  %v1101 = vmul.f32 %v1052, 1.442695
  %v1102 = vpow.pop %v1101
  %v1103 = vmul.f32 %v1053, 1.442695
  %v1104 = vpow.pop %v1103
  %v1105 = vmul.f32 %v1054, 1.442695
  %v1106 = vpow.pop %v1105
  %v1107 = vadd.f32 %v1056, 1.0
  %v1108 = vadd.f32 %v1058, 1.0
  %v1109 = vadd.f32 %v1060, 1.0
  %v1110 = vadd.f32 %v1062, 1.0
  %v1111 = vadd.f32 %v1064, 1.0
  %v1112 = vadd.f32 %v1066, 1.0
  %v1113 = vadd.f32 %v1068, 1.0
  %v1114 = vadd.f32 %v1070, 1.0
  %v1115 = vadd.f32 %v1072, 1.0
  %v1116 = vadd.f32 %v1074, 1.0
  %v1117 = vadd.f32 %v1076, 1.0
  %v1118 = vadd.f32 %v1078, 1.0
  %v1119 = vadd.f32 %v1080, 1.0
  %v1120 = vadd.f32 %v1082, 1.0
  %v1121 = vadd.f32 %v1084, 1.0
  %v1122 = vadd.f32 %v1086, 1.0
  %v1123 = vadd.f32 %v1088, 1.0
  %v1124 = vadd.f32 %v1090, 1.0
  %v1125 = vadd.f32 %v1092, 1.0
  %v1126 = vadd.f32 %v1094, 1.0
  %v1127 = vadd.f32 %v1096, 1.0
  %v1128 = vadd.f32 %v1098, 1.0
  %v1129 = vadd.f32 %v1100, 1.0
  %v1130 = vadd.f32 %v1102, 1.0
  %v1131 = vadd.f32 %v1104, 1.0
  %v1132 = vadd.f32 %v1106, 1.0
  %v1133 = vrcp.pop %v1107
  %v1134 = vmul.f32 %v1107, %v1133
  %v1135 = vsub.f32 1.0, %v1134
  %v1136 = vmul.f32 %v1133, %v1135
  %v1137 = vadd.f32 %v1133, %v1136
  %vm1138 = vweird.f32 %v1107
  %vm1139 = vweird.f32 %v1133
  %vm1140 = vmor %vm1138, %vm1139
  %v1141 = vsel %vm1140, %v1133, %v1137
  %v1142 = vand.u32 2147483647, %v1107
  %vm1143 = vcmp.eq.f32.partialorder %v1142, 8.507059e+37
  %v1144 = vand.u32 %v1107, 2147483648
  %v1145 = vor.u32 1.1754944e-38, %v1144
  %v1146 = vsel %vm1143, %v1145, %v1141
  %v1147 = vmul.f32 1.0, %v1146
  %v1148 = vrcp.pop %v1108
  %v1149 = vmul.f32 %v1108, %v1148
  %v1150 = vsub.f32 1.0, %v1149
  %v1151 = vmul.f32 %v1148, %v1150
  %v1152 = vadd.f32 %v1148, %v1151
  %vm1153 = vweird.f32 %v1108
  %vm1154 = vweird.f32 %v1148
  %vm1155 = vmor %vm1153, %vm1154
  %v1156 = vsel %vm1155, %v1148, %v1152
  %v1157 = vand.u32 2147483647, %v1108
  %vm1158 = vcmp.eq.f32.partialorder %v1157, 8.507059e+37
  %v1159 = vand.u32 %v1108, 2147483648
  %v1160 = vor.u32 1.1754944e-38, %v1159
  %v1161 = vsel %vm1158, %v1160, %v1156
  %v1162 = vmul.f32 1.0, %v1161
  %v1163 = vrcp.pop %v1109
  %v1164 = vmul.f32 %v1109, %v1163
  %v1165 = vsub.f32 1.0, %v1164
  %v1166 = vmul.f32 %v1163, %v1165
  %v1167 = vadd.f32 %v1163, %v1166
  %vm1168 = vweird.f32 %v1109
  %vm1169 = vweird.f32 %v1163
  %vm1170 = vmor %vm1168, %vm1169
  %v1171 = vsel %vm1170, %v1163, %v1167
  %v1172 = vand.u32 2147483647, %v1109
  %vm1173 = vcmp.eq.f32.partialorder %v1172, 8.507059e+37
  %v1174 = vand.u32 %v1109, 2147483648
  %v1175 = vor.u32 1.1754944e-38, %v1174
  %v1176 = vsel %vm1173, %v1175, %v1171
  %v1177 = vmul.f32 1.0, %v1176
  %v1178 = vrcp.pop %v1110
  %v1179 = vmul.f32 %v1110, %v1178
  %v1180 = vsub.f32 1.0, %v1179
  %v1181 = vmul.f32 %v1178, %v1180
  %v1182 = vadd.f32 %v1178, %v1181
  %vm1183 = vweird.f32 %v1110
  %vm1184 = vweird.f32 %v1178
  %vm1185 = vmor %vm1183, %vm1184
  %v1186 = vsel %vm1185, %v1178, %v1182
  %v1187 = vand.u32 2147483647, %v1110
  %vm1188 = vcmp.eq.f32.partialorder %v1187, 8.507059e+37
  %v1189 = vand.u32 %v1110, 2147483648
  %v1190 = vor.u32 1.1754944e-38, %v1189
  %v1191 = vsel %vm1188, %v1190, %v1186
  %v1192 = vmul.f32 1.0, %v1191
  %v1193 = vrcp.pop %v1111
  %v1194 = vmul.f32 %v1111, %v1193
  %v1195 = vsub.f32 1.0, %v1194
  %v1196 = vmul.f32 %v1193, %v1195
  %v1197 = vadd.f32 %v1193, %v1196
  %vm1198 = vweird.f32 %v1111
  %vm1199 = vweird.f32 %v1193
  %vm1200 = vmor %vm1198, %vm1199
  %v1201 = vsel %vm1200, %v1193, %v1197
  %v1202 = vand.u32 2147483647, %v1111
  %vm1203 = vcmp.eq.f32.partialorder %v1202, 8.507059e+37
  %v1204 = vand.u32 %v1111, 2147483648
  %v1205 = vor.u32 1.1754944e-38, %v1204
  %v1206 = vsel %vm1203, %v1205, %v1201
  %v1207 = vmul.f32 1.0, %v1206
  %v1208 = vrcp.pop %v1112
  %v1209 = vmul.f32 %v1112, %v1208
  %v1210 = vsub.f32 1.0, %v1209
  %v1211 = vmul.f32 %v1208, %v1210
  %v1212 = vadd.f32 %v1208, %v1211
  %vm1213 = vweird.f32 %v1112
  %vm1214 = vweird.f32 %v1208
  %vm1215 = vmor %vm1213, %vm1214
  %v1216 = vsel %vm1215, %v1208, %v1212
  %v1217 = vand.u32 2147483647, %v1112
  %vm1218 = vcmp.eq.f32.partialorder %v1217, 8.507059e+37
  %v1219 = vand.u32 %v1112, 2147483648
  %v1220 = vor.u32 1.1754944e-38, %v1219
  %v1221 = vsel %vm1218, %v1220, %v1216
  %v1222 = vmul.f32 1.0, %v1221
  %v1223 = vrcp.pop %v1113
  %v1224 = vmul.f32 %v1113, %v1223
  %v1225 = vsub.f32 1.0, %v1224
  %v1226 = vmul.f32 %v1223, %v1225
  %v1227 = vadd.f32 %v1223, %v1226
  %vm1228 = vweird.f32 %v1113
  %vm1229 = vweird.f32 %v1223
  %vm1230 = vmor %vm1228, %vm1229
  %v1231 = vsel %vm1230, %v1223, %v1227
  %v1232 = vand.u32 2147483647, %v1113
  %vm1233 = vcmp.eq.f32.partialorder %v1232, 8.507059e+37
  %v1234 = vand.u32 %v1113, 2147483648
  %v1235 = vor.u32 1.1754944e-38, %v1234
  %v1236 = vsel %vm1233, %v1235, %v1231
  %v1237 = vmul.f32 1.0, %v1236
  %v1238 = vrcp.pop %v1114
  %v1239 = vmul.f32 %v1114, %v1238
  %v1240 = vsub.f32 1.0, %v1239
  %v1241 = vmul.f32 %v1238, %v1240
  %v1242 = vadd.f32 %v1238, %v1241
  %vm1243 = vweird.f32 %v1114
  %vm1244 = vweird.f32 %v1238
  %vm1245 = vmor %vm1243, %vm1244
  %v1246 = vsel %vm1245, %v1238, %v1242
  %v1247 = vand.u32 2147483647, %v1114
  %vm1248 = vcmp.eq.f32.partialorder %v1247, 8.507059e+37
  %v1249 = vand.u32 %v1114, 2147483648
  %v1250 = vor.u32 1.1754944e-38, %v1249
  %v1251 = vsel %vm1248, %v1250, %v1246
  %v1252 = vmul.f32 1.0, %v1251
  %v1253 = vrcp.pop %v1115
  %v1254 = vmul.f32 %v1115, %v1253
  %v1255 = vsub.f32 1.0, %v1254
  %v1256 = vmul.f32 %v1253, %v1255
  %v1257 = vadd.f32 %v1253, %v1256
  %vm1258 = vweird.f32 %v1115
  %vm1259 = vweird.f32 %v1253
  %vm1260 = vmor %vm1258, %vm1259
  %v1261 = vsel %vm1260, %v1253, %v1257
  %v1262 = vand.u32 2147483647, %v1115
  %vm1263 = vcmp.eq.f32.partialorder %v1262, 8.507059e+37
  %v1264 = vand.u32 %v1115, 2147483648
  %v1265 = vor.u32 1.1754944e-38, %v1264
  %v1266 = vsel %vm1263, %v1265, %v1261
  %v1267 = vmul.f32 1.0, %v1266
  %v1268 = vrcp.pop %v1116
  %v1269 = vmul.f32 %v1116, %v1268
  %v1270 = vsub.f32 1.0, %v1269
  %v1271 = vmul.f32 %v1268, %v1270
  %v1272 = vadd.f32 %v1268, %v1271
  %vm1273 = vweird.f32 %v1116
  %vm1274 = vweird.f32 %v1268
  %vm1275 = vmor %vm1273, %vm1274
  %v1276 = vsel %vm1275, %v1268, %v1272
  %v1277 = vand.u32 2147483647, %v1116
  %vm1278 = vcmp.eq.f32.partialorder %v1277, 8.507059e+37
  %v1279 = vand.u32 %v1116, 2147483648
  %v1280 = vor.u32 1.1754944e-38, %v1279
  %v1281 = vsel %vm1278, %v1280, %v1276
  %v1282 = vmul.f32 1.0, %v1281
  %v1283 = vrcp.pop %v1117
  %v1284 = vmul.f32 %v1117, %v1283
  %v1285 = vsub.f32 1.0, %v1284
  %v1286 = vmul.f32 %v1283, %v1285
  %v1287 = vadd.f32 %v1283, %v1286
  %vm1288 = vweird.f32 %v1117
  %vm1289 = vweird.f32 %v1283
  %vm1290 = vmor %vm1288, %vm1289
  %v1291 = vsel %vm1290, %v1283, %v1287
  %v1292 = vand.u32 2147483647, %v1117
  %vm1293 = vcmp.eq.f32.partialorder %v1292, 8.507059e+37
  %v1294 = vand.u32 %v1117, 2147483648
  %v1295 = vor.u32 1.1754944e-38, %v1294
  %v1296 = vsel %vm1293, %v1295, %v1291
  %v1297 = vmul.f32 1.0, %v1296
  %v1298 = vrcp.pop %v1118
  %v1299 = vmul.f32 %v1118, %v1298
  %v1300 = vsub.f32 1.0, %v1299
  %v1301 = vmul.f32 %v1298, %v1300
  %v1302 = vadd.f32 %v1298, %v1301
  %vm1303 = vweird.f32 %v1118
  %vm1304 = vweird.f32 %v1298
  %vm1305 = vmor %vm1303, %vm1304
  %v1306 = vsel %vm1305, %v1298, %v1302
  %v1307 = vand.u32 2147483647, %v1118
  %vm1308 = vcmp.eq.f32.partialorder %v1307, 8.507059e+37
  %v1309 = vand.u32 %v1118, 2147483648
  %v1310 = vor.u32 1.1754944e-38, %v1309
  %v1311 = vsel %vm1308, %v1310, %v1306
  %v1312 = vmul.f32 1.0, %v1311
  %v1313 = vrcp.pop %v1119
  %v1314 = vmul.f32 %v1119, %v1313
  %v1315 = vsub.f32 1.0, %v1314
  %v1316 = vmul.f32 %v1313, %v1315
  %v1317 = vadd.f32 %v1313, %v1316
  %vm1318 = vweird.f32 %v1119
  %vm1319 = vweird.f32 %v1313
  %vm1320 = vmor %vm1318, %vm1319
  %v1321 = vsel %vm1320, %v1313, %v1317
  %v1322 = vand.u32 2147483647, %v1119
  %vm1323 = vcmp.eq.f32.partialorder %v1322, 8.507059e+37
  %v1324 = vand.u32 %v1119, 2147483648
  %v1325 = vor.u32 1.1754944e-38, %v1324
  %v1326 = vsel %vm1323, %v1325, %v1321
  %v1327 = vmul.f32 1.0, %v1326
  %v1328 = vrcp.pop %v1120
  %v1329 = vmul.f32 %v1120, %v1328
  %v1330 = vsub.f32 1.0, %v1329
  %v1331 = vmul.f32 %v1328, %v1330
  %v1332 = vadd.f32 %v1328, %v1331
  %vm1333 = vweird.f32 %v1120
  %vm1334 = vweird.f32 %v1328
  %vm1335 = vmor %vm1333, %vm1334
  %v1336 = vsel %vm1335, %v1328, %v1332
  %v1337 = vand.u32 2147483647, %v1120
  %vm1338 = vcmp.eq.f32.partialorder %v1337, 8.507059e+37
  %v1339 = vand.u32 %v1120, 2147483648
  %v1340 = vor.u32 1.1754944e-38, %v1339
  %v1341 = vsel %vm1338, %v1340, %v1336
  %v1342 = vmul.f32 1.0, %v1341
  %v1343 = vrcp.pop %v1121
  %v1344 = vmul.f32 %v1121, %v1343
  %v1345 = vsub.f32 1.0, %v1344
  %v1346 = vmul.f32 %v1343, %v1345
  %v1347 = vadd.f32 %v1343, %v1346
  %vm1348 = vweird.f32 %v1121
  %vm1349 = vweird.f32 %v1343
  %vm1350 = vmor %vm1348, %vm1349
  %v1351 = vsel %vm1350, %v1343, %v1347
  %v1352 = vand.u32 2147483647, %v1121
  %vm1353 = vcmp.eq.f32.partialorder %v1352, 8.507059e+37
  %v1354 = vand.u32 %v1121, 2147483648
  %v1355 = vor.u32 1.1754944e-38, %v1354
  %v1356 = vsel %vm1353, %v1355, %v1351
  %v1357 = vmul.f32 1.0, %v1356
  %v1358 = vrcp.pop %v1122
  %v1359 = vmul.f32 %v1122, %v1358
  %v1360 = vsub.f32 1.0, %v1359
  %v1361 = vmul.f32 %v1358, %v1360
  %v1362 = vadd.f32 %v1358, %v1361
  %vm1363 = vweird.f32 %v1122
  %vm1364 = vweird.f32 %v1358
  %vm1365 = vmor %vm1363, %vm1364
  %v1366 = vsel %vm1365, %v1358, %v1362
  %v1367 = vand.u32 2147483647, %v1122
  %vm1368 = vcmp.eq.f32.partialorder %v1367, 8.507059e+37
  %v1369 = vand.u32 %v1122, 2147483648
  %v1370 = vor.u32 1.1754944e-38, %v1369
  %v1371 = vsel %vm1368, %v1370, %v1366
  %v1372 = vmul.f32 1.0, %v1371
  %v1373 = vrcp.pop %v1123
  %v1374 = vmul.f32 %v1123, %v1373
  %v1375 = vsub.f32 1.0, %v1374
  %v1376 = vmul.f32 %v1373, %v1375
  %v1377 = vadd.f32 %v1373, %v1376
  %vm1378 = vweird.f32 %v1123
  %vm1379 = vweird.f32 %v1373
  %vm1380 = vmor %vm1378, %vm1379
  %v1381 = vsel %vm1380, %v1373, %v1377
  %v1382 = vand.u32 2147483647, %v1123
  %vm1383 = vcmp.eq.f32.partialorder %v1382, 8.507059e+37
  %v1384 = vand.u32 %v1123, 2147483648
  %v1385 = vor.u32 1.1754944e-38, %v1384
  %v1386 = vsel %vm1383, %v1385, %v1381
  %v1387 = vmul.f32 1.0, %v1386
  %v1388 = vrcp.pop %v1124
  %v1389 = vmul.f32 %v1124, %v1388
  %v1390 = vsub.f32 1.0, %v1389
  %v1391 = vmul.f32 %v1388, %v1390
  %v1392 = vadd.f32 %v1388, %v1391
  %vm1393 = vweird.f32 %v1124
  %vm1394 = vweird.f32 %v1388
  %vm1395 = vmor %vm1393, %vm1394
  %v1396 = vsel %vm1395, %v1388, %v1392
  %v1397 = vand.u32 2147483647, %v1124
  %vm1398 = vcmp.eq.f32.partialorder %v1397, 8.507059e+37
  %v1399 = vand.u32 %v1124, 2147483648
  %v1400 = vor.u32 1.1754944e-38, %v1399
  %v1401 = vsel %vm1398, %v1400, %v1396
  %v1402 = vmul.f32 1.0, %v1401
  %v1403 = vrcp.pop %v1125
  %v1404 = vmul.f32 %v1125, %v1403
  %v1405 = vsub.f32 1.0, %v1404
  %v1406 = vmul.f32 %v1403, %v1405
  %v1407 = vadd.f32 %v1403, %v1406
  %vm1408 = vweird.f32 %v1125
  %vm1409 = vweird.f32 %v1403
  %vm1410 = vmor %vm1408, %vm1409
  %v1411 = vsel %vm1410, %v1403, %v1407
  %v1412 = vand.u32 2147483647, %v1125
  %vm1413 = vcmp.eq.f32.partialorder %v1412, 8.507059e+37
  %v1414 = vand.u32 %v1125, 2147483648
  %v1415 = vor.u32 1.1754944e-38, %v1414
  %v1416 = vsel %vm1413, %v1415, %v1411
  %v1417 = vmul.f32 1.0, %v1416
  %v1418 = vrcp.pop %v1126
  %v1419 = vmul.f32 %v1126, %v1418
  %v1420 = vsub.f32 1.0, %v1419
  %v1421 = vmul.f32 %v1418, %v1420
  %v1422 = vadd.f32 %v1418, %v1421
  %vm1423 = vweird.f32 %v1126
  %vm1424 = vweird.f32 %v1418
  %vm1425 = vmor %vm1423, %vm1424
  %v1426 = vsel %vm1425, %v1418, %v1422
  %v1427 = vand.u32 2147483647, %v1126
  %vm1428 = vcmp.eq.f32.partialorder %v1427, 8.507059e+37
  %v1429 = vand.u32 %v1126, 2147483648
  %v1430 = vor.u32 1.1754944e-38, %v1429
  %v1431 = vsel %vm1428, %v1430, %v1426
  %v1432 = vmul.f32 1.0, %v1431
  %v1433 = vrcp.pop %v1127
  %v1434 = vmul.f32 %v1127, %v1433
  %v1435 = vsub.f32 1.0, %v1434
  %v1436 = vmul.f32 %v1433, %v1435
  %v1437 = vadd.f32 %v1433, %v1436
  %vm1438 = vweird.f32 %v1127
  %vm1439 = vweird.f32 %v1433
  %vm1440 = vmor %vm1438, %vm1439
  %v1441 = vsel %vm1440, %v1433, %v1437
  %v1442 = vand.u32 2147483647, %v1127
  %vm1443 = vcmp.eq.f32.partialorder %v1442, 8.507059e+37
  %v1444 = vand.u32 %v1127, 2147483648
  %v1445 = vor.u32 1.1754944e-38, %v1444
  %v1446 = vsel %vm1443, %v1445, %v1441
  %v1447 = vmul.f32 1.0, %v1446
  %v1448 = vrcp.pop %v1128
  %v1449 = vmul.f32 %v1128, %v1448
  %v1450 = vsub.f32 1.0, %v1449
  %v1451 = vmul.f32 %v1448, %v1450
  %v1452 = vadd.f32 %v1448, %v1451
  %vm1453 = vweird.f32 %v1128
  %vm1454 = vweird.f32 %v1448
  %vm1455 = vmor %vm1453, %vm1454
  %v1456 = vsel %vm1455, %v1448, %v1452
  %v1457 = vand.u32 2147483647, %v1128
  %vm1458 = vcmp.eq.f32.partialorder %v1457, 8.507059e+37
  %v1459 = vand.u32 %v1128, 2147483648
  %v1460 = vor.u32 1.1754944e-38, %v1459
  %v1461 = vsel %vm1458, %v1460, %v1456
  %v1462 = vmul.f32 1.0, %v1461
  %v1463 = vrcp.pop %v1129
  %v1464 = vmul.f32 %v1129, %v1463
  %v1465 = vsub.f32 1.0, %v1464
  %v1466 = vmul.f32 %v1463, %v1465
  %v1467 = vadd.f32 %v1463, %v1466
  %vm1468 = vweird.f32 %v1129
  %vm1469 = vweird.f32 %v1463
  %vm1470 = vmor %vm1468, %vm1469
  %v1471 = vsel %vm1470, %v1463, %v1467
  %v1472 = vand.u32 2147483647, %v1129
  %vm1473 = vcmp.eq.f32.partialorder %v1472, 8.507059e+37
  %v1474 = vand.u32 %v1129, 2147483648
  %v1475 = vor.u32 1.1754944e-38, %v1474
  %v1476 = vsel %vm1473, %v1475, %v1471
  %v1477 = vmul.f32 1.0, %v1476
  %v1478 = vrcp.pop %v1130
  %v1479 = vmul.f32 %v1130, %v1478
  %v1480 = vsub.f32 1.0, %v1479
  %v1481 = vmul.f32 %v1478, %v1480
  %v1482 = vadd.f32 %v1478, %v1481
  %vm1483 = vweird.f32 %v1130
  %vm1484 = vweird.f32 %v1478
  %vm1485 = vmor %vm1483, %vm1484
  %v1486 = vsel %vm1485, %v1478, %v1482
  %v1487 = vand.u32 2147483647, %v1130
  %vm1488 = vcmp.eq.f32.partialorder %v1487, 8.507059e+37
  %v1489 = vand.u32 %v1130, 2147483648
  %v1490 = vor.u32 1.1754944e-38, %v1489
  %v1491 = vsel %vm1488, %v1490, %v1486
  %v1492 = vmul.f32 1.0, %v1491
  %v1493 = vrcp.pop %v1131
  %v1494 = vmul.f32 %v1131, %v1493
  %v1495 = vsub.f32 1.0, %v1494
  %v1496 = vmul.f32 %v1493, %v1495
  %v1497 = vadd.f32 %v1493, %v1496
  %vm1498 = vweird.f32 %v1131
  %vm1499 = vweird.f32 %v1493
  %vm1500 = vmor %vm1498, %vm1499
  %v1501 = vsel %vm1500, %v1493, %v1497
  %v1502 = vand.u32 2147483647, %v1131
  %vm1503 = vcmp.eq.f32.partialorder %v1502, 8.507059e+37
  %v1504 = vand.u32 %v1131, 2147483648
  %v1505 = vor.u32 1.1754944e-38, %v1504
  %v1506 = vsel %vm1503, %v1505, %v1501
  %v1507 = vmul.f32 1.0, %v1506
  %v1508 = vrcp.pop %v1132
  %v1509 = vmul.f32 %v1132, %v1508
  %v1510 = vsub.f32 1.0, %v1509
  %v1511 = vmul.f32 %v1508, %v1510
  %v1512 = vadd.f32 %v1508, %v1511
  %vm1513 = vweird.f32 %v1132
  %vm1514 = vweird.f32 %v1508
  %vm1515 = vmor %vm1513, %vm1514
  %v1516 = vsel %vm1515, %v1508, %v1512
  %v1517 = vand.u32 2147483647, %v1132
  %vm1518 = vcmp.eq.f32.partialorder %v1517, 8.507059e+37
  %v1519 = vand.u32 %v1132, 2147483648
  %v1520 = vor.u32 1.1754944e-38, %v1519
  %v1521 = vsel %vm1518, %v1520, %v1516
  %v1522 = vmul.f32 1.0, %v1521
  %v1523 = vpack.c.bf16 %v1147, %v1147
  %v1524 = vpack.c.bf16 %v1162, %v1162
  %v1525 = vpack.c.bf16 %v1177, %v1177
  %v1526 = vpack.c.bf16 %v1192, %v1192
  %v1527 = vpack.c.bf16 %v1207, %v1207
  %v1528 = vpack.c.bf16 %v1222, %v1222
  %v1529 = vpack.c.bf16 %v1237, %v1237
  %v1530 = vpack.c.bf16 %v1252, %v1252
  %v1531 = vpack.c.bf16 %v1267, %v1267
  %v1532 = vpack.c.bf16 %v1282, %v1282
  %v1533 = vpack.c.bf16 %v1297, %v1297
  %v1534 = vpack.c.bf16 %v1312, %v1312
  %v1535 = vpack.c.bf16 %v1327, %v1327
  %v1536 = vpack.c.bf16 %v1342, %v1342
  %v1537 = vpack.c.bf16 %v1357, %v1357
  %v1538 = vpack.c.bf16 %v1372, %v1372
  %v1539 = vpack.c.bf16 %v1387, %v1387
  %v1540 = vpack.c.bf16 %v1402, %v1402
  %v1541 = vpack.c.bf16 %v1417, %v1417
  %v1542 = vpack.c.bf16 %v1432, %v1432
  %v1543 = vpack.c.bf16 %v1447, %v1447
  %v1544 = vpack.c.bf16 %v1462, %v1462
  %v1545 = vpack.c.bf16 %v1477, %v1477
  %v1546 = vpack.c.bf16 %v1492, %v1492
  %v1547 = vpack.c.bf16 %v1507, %v1507
  %v1548 = vpack.c.bf16 %v1522, %v1522
  %1549 = vst [vmem:[%s3] sm:$0xf] %v1523
  %1550 = vst [vmem:[%s3 + $0x4] sm:$0xf] %v1524
  %1551 = vst [vmem:[%s3 + $0x8] sm:$0xf] %v1525
  %1552 = vst [vmem:[%s3 + $0xc] sm:$0xf] %v1526
  %1553 = vst [vmem:[%s3 + $0x10] sm:$0xf] %v1527
  %1554 = vst [vmem:[%s3 + $0x14] sm:$0xf] %v1528
  %1555 = vst [vmem:[%s3 + $0x18] sm:$0xf] %v1529
  %1556 = vst [vmem:[%s3 + $0x1c] sm:$0xf] %v1530
  %1557 = vst [vmem:[%s3 + $0x20] sm:$0xf] %v1531
  %1558 = vst [vmem:[%s3 + $0x24] sm:$0xf] %v1532
  %1559 = vst [vmem:[%s3 + $0x28] sm:$0xf] %v1533
  %1560 = vst [vmem:[%s3 + $0x2c] sm:$0xf] %v1534
  %1561 = vst [vmem:[%s3 + $0x30] sm:$0xf] %v1535
  %1562 = vst [vmem:[%s3 + $0x34] sm:$0xf] %v1536
  %1563 = vst [vmem:[%s3 + $0x38] sm:$0xf] %v1537
  %1564 = vst [vmem:[%s3 + $0x3c] sm:$0xf] %v1538
  %1565 = vst [vmem:[%s3 + $0x40] sm:$0xf] %v1539
  %1566 = vst [vmem:[%s3 + $0x44] sm:$0xf] %v1540
  %1567 = vst [vmem:[%s3 + $0x48] sm:$0xf] %v1541
  %1568 = vst [vmem:[%s3 + $0x4c] sm:$0xf] %v1542
  %1569 = vst [vmem:[%s3 + $0x50] sm:$0xf] %v1543
  %1570 = vst [vmem:[%s3 + $0x54] sm:$0xf] %v1544
  %1571 = vst [vmem:[%s3 + $0x58] sm:$0xf] %v1545
  %1572 = vst [vmem:[%s3 + $0x5c] sm:$0xf] %v1546
  %1573 = vst [vmem:[%s3 + $0x60] sm:$0xf] %v1547
  %1574 = vst [vmem:[%s3 + $0x64] sm:$0xf] %v1548
  // Predicated region
  $region14: #{autoencoder_forward.15} parent=0 // pred_check
    _
  $region15: #{autoencoder_forward.15} parent=0 // pred_check_branch
    %1576 = sbr.rel (0) target = $region17
  $region16: #{autoencoder_forward.15} parent=0 // pred_region
    _
  $region17: #{autoencoder_forward.15} parent=0 // pred_fallthru
    _
  // Predicated region
  $region18: #{autoencoder_forward.15} parent=0 // pred_check
    _
  $region19: #{autoencoder_forward.15} parent=0 // pred_check_branch
    %1578 = sbr.rel (0) target = $region21
  $region20: #{autoencoder_forward.15} parent=0 // pred_region
    _
  $region21: #{autoencoder_forward.15} parent=0 // pred_fallthru
    _

</llo_original>
